<compile_context>
chip_gen: v7x
topology: tpu7x:2x2x1
jax: 0.10.0
libtpu: 0.0.40
codegen_flags: <defaults>
</compile_context>

<pallas_src>
import functools
import math

import jax
import jax.numpy as jnp
from jax import lax
from jax.experimental import pallas as pl
from jax.experimental.pallas import tpu as pltpu

EPS = 1e-5          # config.layer_norm_epsilon
NEG_INF = -1e9      # causal-mask fill value (scores stay f32, so -1e9 is safe)


# ---------------------------------------------------------------------------
# In-kernel helpers
# ---------------------------------------------------------------------------
def _layernorm(h, w, b):
    mu = jnp.mean(h, axis=-1, keepdims=True)
    var = jnp.mean((h - mu) ** 2, axis=-1, keepdims=True)
    return (h - mu) * jax.lax.rsqrt(var + EPS) * w + b


def _gelu_new(x):
    # GPT-2 "gelu_new" (tanh approximation).  Kept f32 (v5e VPU/EUP are f32-only).
    # TODO(synk): compute this chain in bf16 on v6e/v7x (bf16-native VPU/EUP).
    return 0.5 * x * (1.0 + jnp.tanh(0.7978845608028654 * (x + 0.044715 * x * x * x)))


# ---------------------------------------------------------------------------
# Pass 1: LN1 + fused QKV projection (q pre-scaled by 1/sqrt(head_dim))
# ---------------------------------------------------------------------------
def _ln_qkv_kernel(n_head, x_ref, ln1w_ref, ln1b_ref, wqkv_ref, bqkv_ref, qkv_ref):
    x = x_ref[0]                                   # (TR, H) f32
    H = x.shape[-1]
    scale = 1.0 / math.sqrt(H // n_head)           # scale_attn_weights, folded into q

    h = _layernorm(x, ln1w_ref[0], ln1b_ref[0])    # f32 stats
    qkv = jnp.dot(h.astype(jnp.bfloat16), wqkv_ref[...],
                  preferred_element_type=jnp.float32) + bqkv_ref[0]   # (TR, 3H) f32

    # Fold the attention scale into q before the bf16 cast (TR*H mults instead of
    # TQ*S mults per head on the score path).  Lane-aligned static slices.
    qkv_ref[0, :, 0:H] = (qkv[:, 0:H] * scale).astype(qkv_ref.dtype)
    qkv_ref[0, :, H:3 * H] = qkv[:, H:3 * H].astype(qkv_ref.dtype)


# ---------------------------------------------------------------------------
# Pass 2: causal MHA + c_proj + residual + LN2 + MLP + residual (per query tile)
# ---------------------------------------------------------------------------
def _attn_mlp_kernel(n_head, x_ref, q_ref, k_ref, v_ref,
                     wo_ref, bo_ref, ln2w_ref, ln2b_ref,
                     wfc_ref, bfc_ref, wpr_ref, bpr_ref,
                     o_ref, ctx_ref):
    x = x_ref[0]                                   # (TQ, H) f32, residual input
    TQ, H = x.shape
    S = k_ref.shape[1]
    hd = H // n_head

    q = q_ref[0]                                   # (TQ, H) bf16, already scaled
    k = k_ref[0]                                   # (S,  H) bf16
    v = v_ref[0]                                   # (S,  H) bf16

    q_base = pl.program_id(1) * TQ
    row = lax.broadcasted_iota(jnp.int32, (TQ, S), 0) + q_base
    col = lax.broadcasted_iota(jnp.int32, (TQ, S), 1)
    causal = row >= col

    # Per-head attention.  ctx goes into lane-disjoint column slices of a bf16 VMEM
    # scratch (not a relayout), so no f32 (TQ,H) accumulator stays live across heads
    # and c_proj below is a single K=H matmul (full MXU fill on v6e/v7x).
    # TODO(synk): switch to lax.fori_loop + pl.ds column slices for large n_head.
    for hi in range(n_head):
        c0, c1 = hi * hd, (hi + 1) * hd
        # q @ k^T via dot_general contracting the last dims (no explicit transpose).
        # TODO(synk): if the Mosaic dump shows a per-head vxpose of k, materialize K
        # in (hd, S) layout in the qkv pass instead.
        s = lax.dot_general(q[:, c0:c1], k[:, c0:c1], (((1,), (1,)), ((), ())),
                            preferred_element_type=jnp.float32)          # (TQ, S) f32
        s = jnp.where(causal, s, NEG_INF)
        s = s - jnp.max(s, axis=-1, keepdims=True)
        p = jnp.exp(s)                                                   # EUP
        denom = jnp.sum(p, axis=-1, keepdims=True)
        p = p * pl.reciprocal(denom, approx=True)                        # EUP, not VPU div
        ctx = jnp.dot(p.astype(jnp.bfloat16), v[:, c0:c1],
                      preferred_element_type=jnp.float32)                # (TQ, hd) f32
        ctx_ref[:, c0:c1] = ctx.astype(ctx_ref.dtype)

    # Single c_proj over all heads (K=H), then residual.
    attn = jnp.dot(ctx_ref[...], wo_ref[...],
                   preferred_element_type=jnp.float32) + bo_ref[0]
    x = x + attn

    # MLP sub-block (pre-norm), tiled over the same query rows.
    h = _layernorm(x, ln2w_ref[0], ln2b_ref[0])
    h = jnp.dot(h.astype(jnp.bfloat16), wfc_ref[...],
                preferred_element_type=jnp.float32) + bfc_ref[0]
    h = _gelu_new(h)
    h = jnp.dot(h.astype(jnp.bfloat16), wpr_ref[...],
                preferred_element_type=jnp.float32) + bpr_ref[0]
    o_ref[0] = (x + h).astype(o_ref.dtype)
    # TODO(synk): on v5e, take/return bf16 activations at the block boundary
    # (keep LN/softmax/residual math f32) to halve activation HBM traffic.


# ---------------------------------------------------------------------------
# Wrapper
# ---------------------------------------------------------------------------
def _nbytes(shape, dtype):
    n = 1
    for d in shape:
        n *= int(d)
    return n * jnp.dtype(dtype).itemsize


def _vmem_limit_bytes(buffer_bytes):
    """Size the scoped-VMEM limit from the actual buffer footprint (not hardcoded)."""
    try:
        cap = int(pltpu.get_tpu_info().vmem_capacity_bytes)
    except Exception:
        cap = 64 * 1024 * 1024                     # most restrictive: v7x per-TC VMEM
    limit = max(buffer_bytes + (8 << 20), 32 << 20)            # headroom for internals
    limit = min(limit, max(cap - (16 << 20), buffer_bytes + (2 << 20)))
    return int(limit)


def _jadio_block_impl(x, params, n_head, tile_q, tile_r, single_buffer_weights):
    B, S, H = x.shape
    I = params["wfc"].shape[1]
    assert S % tile_q == 0 and S % tile_r == 0 and H % n_head == 0

    wbuf = 1 if single_buffer_weights else 2

    def const_spec(shape):
        ndim = len(shape)
        idx = lambda b, t: (0,) * ndim             # constant block across the grid
        if single_buffer_weights:
            return pl.BlockSpec(shape, idx, pipeline_mode=pl.Buffered(1))
        return pl.BlockSpec(shape, idx)

    wdt = params["wqkv"].dtype                     # bf16 weights stored persistently

    # ------------------ pass 1: LN1 + QKV projection ------------------
    p1_bufs = (2 * _nbytes((1, tile_r, H), x.dtype)
               + 2 * _nbytes((1, tile_r, 3 * H), jnp.bfloat16)
               + wbuf * (_nbytes((1, H), jnp.float32) * 2
                         + _nbytes((H, 3 * H), wdt)
                         + _nbytes((1, 3 * H), jnp.float32)))
    qkv = pl.pallas_call(
        functools.partial(_ln_qkv_kernel, n_head),
        out_shape=jax.ShapeDtypeStruct((B, S, 3 * H), jnp.bfloat16),
        grid=(B, S // tile_r),
        in_specs=[
            pl.BlockSpec((1, tile_r, H), lambda b, r: (b, r, 0)),     # x
            const_spec((1, H)), const_spec((1, H)),                   # ln_1 w / b
            const_spec((H, 3 * H)), const_spec((1, 3 * H)),           # c_attn W / b
        ],
        out_specs=pl.BlockSpec((1, tile_r, 3 * H), lambda b, r: (b, r, 0)),
        compiler_params=pltpu.CompilerParams(
            dimension_semantics=("parallel", "parallel"),
            vmem_limit_bytes=_vmem_limit_bytes(p1_bufs)),
        cost_estimate=pl.CostEstimate(
            flops=2 * B * S * H * 3 * H,
            transcendentals=B * S,
            bytes_accessed=_nbytes((B, S, H), x.dtype)
                           + _nbytes((B, S, 3 * H), jnp.bfloat16)
                           + _nbytes((H, 3 * H), wdt)),
    )(x, params["ln1w"], params["ln1b"], params["wqkv"], params["bqkv"])

    # ------------------ pass 2: attention + MLP per query tile ------------------
    p2_bufs = (2 * _nbytes((1, tile_q, H), x.dtype)                   # x residual
               + 2 * _nbytes((1, tile_q, H), jnp.bfloat16)            # q
               + 2 * 2 * _nbytes((1, S, H), jnp.bfloat16)             # k, v (full seq)
               + 2 * _nbytes((1, tile_q, H), x.dtype)                 # out
               + _nbytes((tile_q, H), jnp.bfloat16)                   # ctx scratch
               + wbuf * (_nbytes((H, H), wdt) + _nbytes((H, I), wdt) + _nbytes((I, H), wdt)
                         + _nbytes((1, H), jnp.float32) * 4 + _nbytes((1, I), jnp.float32)))
    flops = 2 * B * S * (2 * S * H + H * H + 2 * H * I)
    transcendentals = B * (n_head * S * S + S * I)
    bytes_accessed = (2 * _nbytes((B, S, H), x.dtype)
                      + _nbytes((B, S, 3 * H), jnp.bfloat16)
                      + _nbytes((H, H), wdt) + _nbytes((H, I), wdt) + _nbytes((I, H), wdt))

    out = pl.pallas_call(
        functools.partial(_attn_mlp_kernel, n_head),
        out_shape=jax.ShapeDtypeStruct((B, S, H), x.dtype),
        grid=(B, S // tile_q),
        in_specs=[
            pl.BlockSpec((1, tile_q, H), lambda b, q: (b, q, 0)),     # x residual tile
            pl.BlockSpec((1, tile_q, H), lambda b, q: (b, q, 0)),     # q tile (cols 0:H)
            pl.BlockSpec((1, S, H), lambda b, q: (b, 0, 1)),          # k full (cols H:2H)
            pl.BlockSpec((1, S, H), lambda b, q: (b, 0, 2)),          # v full (cols 2H:3H)
            const_spec((H, H)), const_spec((1, H)),                   # c_proj W / b
            const_spec((1, H)), const_spec((1, H)),                   # ln_2 w / b
            const_spec((H, I)), const_spec((1, I)),                   # mlp c_fc W / b
            const_spec((I, H)), const_spec((1, H)),                   # mlp c_proj W / b
        ],
        out_specs=pl.BlockSpec((1, tile_q, H), lambda b, q: (b, q, 0)),
        scratch_shapes=[pltpu.VMEM((tile_q, H), jnp.bfloat16)],       # per-head ctx slab
        compiler_params=pltpu.CompilerParams(
            dimension_semantics=("parallel", "parallel"),
            vmem_limit_bytes=_vmem_limit_bytes(p2_bufs)),
        cost_estimate=pl.CostEstimate(flops=flops,
                                      transcendentals=transcendentals,
                                      bytes_accessed=bytes_accessed),
    )(x, qkv, qkv, qkv,
      params["wo"], params["bo"], params["ln2w"], params["ln2b"],
      params["wfc"], params["bfc"], params["wpr"], params["bpr"])
    return out


_SINGLE_BUFFER_WEIGHTS = True   # flipped off if pl.Buffered(1) is rejected by this jax


def jadio_block(x, params, n_head, *, tile_q=64, tile_r=128):
    """JadioBlock forward pass (inference: dropout = identity, no KV cache)."""
    global _SINGLE_BUFFER_WEIGHTS
    if _SINGLE_BUFFER_WEIGHTS:
        try:
            return _jadio_block_impl(x, params, n_head, tile_q, tile_r, True)
        except Exception:
            # Fall back to default double-buffered weight blocks if pipeline_mode /
            # Buffered(1) is unsupported by this jax / libtpu combination.
            _SINGLE_BUFFER_WEIGHTS = False
    return _jadio_block_impl(x, params, n_head, tile_q, tile_r, False)


# ---------------------------------------------------------------------------
# Pure-JAX f32 reference (same math, same bf16-valued weights upcast to f32)
# ---------------------------------------------------------------------------
def jadio_block_ref(x, p, n_head):
    B, S, H = x.shape
    hd = H // n_head
    f = lambda a: a.astype(jnp.float32)

    def ln(h, w, b):
        mu = jnp.mean(h, axis=-1, keepdims=True)
        var = jnp.mean((h - mu) ** 2, axis=-1, keepdims=True)
        return (h - mu) * jax.lax.rsqrt(var + EPS) * w + b

    h = ln(x, f(p["ln1w"])[0], f(p["ln1b"])[0])
    qkv = h @ f(p["wqkv"]) + f(p["bqkv"])[0]
    q, k, v = jnp.split(qkv, 3, axis=-1)
    q = q.reshape(B, S, n_head, hd).transpose(0, 2, 1, 3)
    k = k.reshape(B, S, n_head, hd).transpose(0, 2, 1, 3)
    v = v.reshape(B, S, n_head, hd).transpose(0, 2, 1, 3)
    scores = jnp.einsum("bhqd,bhkd->bhqk", q, k) / math.sqrt(hd)
    causal = jnp.tril(jnp.ones((S, S), dtype=bool))
    scores = jnp.where(causal, scores, NEG_INF)
    probs = jax.nn.softmax(scores, axis=-1)
    attn = jnp.einsum("bhqk,bhkd->bhqd", probs, v)
    attn = attn.transpose(0, 2, 1, 3).reshape(B, S, H)
    attn = attn @ f(p["wo"]) + f(p["bo"])[0]
    x = x + attn

    h = ln(x, f(p["ln2w"])[0], f(p["ln2b"])[0])
    h = h @ f(p["wfc"]) + f(p["bfc"])[0]
    h = 0.5 * h * (1.0 + jnp.tanh(0.7978845608028654 * (h + 0.044715 * h ** 3)))
    h = h @ f(p["wpr"]) + f(p["bpr"])[0]
    return x + h


# ---------------------------------------------------------------------------
# Main
# ---------------------------------------------------------------------------
if __name__ == "__main__":
    # Small but lane-aligned demo: head_dim = 128, H multiple of 128, S multiple of
    # the 64-row query tile -> lane-dense stores and >1 query tile per sequence.
    B, S, H = 2, 256, 256    # batch, seq_len, n_embd
    N_HEAD = 2               # head_dim = 128
    I = 4 * H                # n_inner default = 4 * n_embd

    key = jax.random.PRNGKey(0)
    ks = jax.random.split(key, 9)
    std = 0.02
    # MXU-facing weights stored persistently in bf16 (no per-call cast traffic);
    # biases and LayerNorm params stay f32.
    params = {
        "ln1w": jnp.ones((1, H), jnp.float32),
        "ln1b": jnp.zeros((1, H), jnp.float32),
        "wqkv": (std * jax.random.normal(ks[0], (H, 3 * H), jnp.float32)).astype(jnp.bfloat16),
        "bqkv": std * jax.random.normal(ks[1], (1, 3 * H), jnp.float32),
        "wo":   (std * jax.random.normal(ks[2], (H, H), jnp.float32)).astype(jnp.bfloat16),
        "bo":   std * jax.random.normal(ks[3], (1, H), jnp.float32),
        "ln2w": jnp.ones((1, H), jnp.float32),
        "ln2b": jnp.zeros((1, H), jnp.float32),
        "wfc":  (std * jax.random.normal(ks[4], (H, I), jnp.float32)).astype(jnp.bfloat16),
        "bfc":  std * jax.random.normal(ks[5], (1, I), jnp.float32),
        "wpr":  (std * jax.random.normal(ks[6], (I, H), jnp.float32)).astype(jnp.bfloat16),
        "bpr":  std * jax.random.normal(ks[7], (1, H), jnp.float32),
    }
    x = jax.random.normal(ks[8], (B, S, H), jnp.float32)

    out = jadio_block(x, params, N_HEAD, tile_q=64, tile_r=128)
    out = jax.block_until_ready(out)
    assert out.shape == (B, S, H) and out.dtype == x.dtype

    ref = jadio_block_ref(x, params, N_HEAD)
    max_err = float(jnp.max(jnp.abs(out - ref)))
    # bf16 MXU operands / bf16 qkv intermediate / approx EUP reciprocal vs the f32
    # reference -> tolerance comfortably covers bf16 rounding.
    assert jnp.allclose(out, ref, atol=2e-2, rtol=2e-2), \
        f"mismatch vs f32 JAX reference (max abs err {max_err})"

    print("KERNEL_OK")
</pallas_src>

<mosaic_0001>
module attributes {stable_mosaic.version = 11 : i64} {
  func.func @_ln_qkv_kernel(%arg0: i32, %arg1: i32, %arg2: memref<1x128x256xf32, #tpu.memory_space<vmem>>, %arg3: memref<1x256xf32, #tpu.memory_space<vmem>>, %arg4: memref<1x256xf32, #tpu.memory_space<vmem>>, %arg5: memref<256x768xbf16, #tpu.memory_space<vmem>>, %arg6: memref<1x768xf32, #tpu.memory_space<vmem>>, %arg7: memref<1x128x768xbf16, #tpu.memory_space<vmem>>) attributes {dimension_semantics = [#tpu.dimension_semantics<parallel>, #tpu.dimension_semantics<parallel>], iteration_bounds = array<i64: 2, 2>, scalar_prefetch = 0 : i64, scratch_operands = 0 : i64, tpu.core_type = #tpu.core_type<tc>, window_params = [{transform_indices = @transform_0, window_bounds = array<i64: 1, 128, 256>}, {pipeline_mode = #tpu.pipeline_mode<synchronous>, transform_indices = @transform_1, window_bounds = array<i64: 1, 256>}, {pipeline_mode = #tpu.pipeline_mode<synchronous>, transform_indices = @transform_2, window_bounds = array<i64: 1, 256>}, {pipeline_mode = #tpu.pipeline_mode<synchronous>, transform_indices = @transform_3, window_bounds = array<i64: 256, 768>}, {pipeline_mode = #tpu.pipeline_mode<synchronous>, transform_indices = @transform_4, window_bounds = array<i64: 1, 768>}, {transform_indices = @transform_5, window_bounds = array<i64: 1, 128, 768>}]} {
    %c0 = arith.constant 0 : index
    %c0_0 = arith.constant 0 : index
    %c0_1 = arith.constant 0 : index
    %0 = vector.load %arg2[%c0, %c0_0, %c0_1] : memref<1x128x256xf32, #tpu.memory_space<vmem>>, vector<1x128x256xf32>
    %1 = vector.shape_cast %0 : vector<1x128x256xf32> to vector<128x256xf32>
    %c0_2 = arith.constant 0 : index
    %c0_3 = arith.constant 0 : index
    %2 = vector.load %arg3[%c0_2, %c0_3] : memref<1x256xf32, #tpu.memory_space<vmem>>, vector<1x256xf32>
    %3 = vector.shape_cast %2 : vector<1x256xf32> to vector<256xf32>
    %c0_4 = arith.constant 0 : index
    %c0_5 = arith.constant 0 : index
    %4 = vector.load %arg4[%c0_4, %c0_5] : memref<1x256xf32, #tpu.memory_space<vmem>>, vector<1x256xf32>
    %5 = vector.shape_cast %4 : vector<1x256xf32> to vector<256xf32>
    %cst = arith.constant dense<0.000000e+00> : vector<128xf32>
    %6 = vector.multi_reduction <add>, %1, %cst [1] : vector<128x256xf32> to vector<128xf32>
    %7 = vector.shape_cast %6 : vector<128xf32> to vector<128x1xf32>
    %cst_6 = arith.constant 2.560000e+02 : f32
    %8 = vector.broadcast %cst_6 : f32 to vector<128x1xf32>
    %9 = arith.divf %7, %8 : vector<128x1xf32>
    %10 = vector.broadcast %9 : vector<128x1xf32> to vector<128x256xf32>
    %11 = arith.subf %1, %10 : vector<128x256xf32>
    %12 = arith.mulf %11, %11 : vector<128x256xf32>
    %cst_7 = arith.constant dense<0.000000e+00> : vector<128xf32>
    %13 = vector.multi_reduction <add>, %12, %cst_7 [1] : vector<128x256xf32> to vector<128xf32>
    %14 = vector.shape_cast %13 : vector<128xf32> to vector<128x1xf32>
    %cst_8 = arith.constant 2.560000e+02 : f32
    %15 = vector.broadcast %cst_8 : f32 to vector<128x1xf32>
    %16 = arith.divf %14, %15 : vector<128x1xf32>
    %17 = vector.broadcast %9 : vector<128x1xf32> to vector<128x256xf32>
    %18 = arith.subf %1, %17 : vector<128x256xf32>
    %cst_9 = arith.constant 9.99999974E-6 : f32
    %19 = vector.broadcast %cst_9 : f32 to vector<128x1xf32>
    %20 = arith.addf %16, %19 : vector<128x1xf32>
    %21 = math.rsqrt %20 : vector<128x1xf32>
    %22 = vector.broadcast %21 : vector<128x1xf32> to vector<128x256xf32>
    %23 = arith.mulf %18, %22 : vector<128x256xf32>
    %24 = vector.shape_cast %3 : vector<256xf32> to vector<1x256xf32>
    %25 = vector.broadcast %24 : vector<1x256xf32> to vector<128x256xf32>
    %26 = arith.mulf %23, %25 : vector<128x256xf32>
    %27 = vector.shape_cast %5 : vector<256xf32> to vector<1x256xf32>
    %28 = vector.broadcast %27 : vector<1x256xf32> to vector<128x256xf32>
    %29 = arith.addf %26, %28 : vector<128x256xf32>
    %30 = arith.truncf %29 : vector<128x256xf32> to vector<128x256xbf16>
    %c0_10 = arith.constant 0 : index
    %c0_11 = arith.constant 0 : index
    %31 = vector.load %arg5[%c0_10, %c0_11] : memref<256x768xbf16, #tpu.memory_space<vmem>>, vector<256x768xbf16>
    %cst_12 = arith.constant dense<0.000000e+00> : vector<128x768xf32>
    %32 = tpu.matmul %30, %31, %cst_12 {dimension_numbers = #tpu.dot_dimension_numbers<[1], [0], [0], [1], [0, 0, 1, 1], [], []>} : vector<128x256xbf16>, vector<256x768xbf16>, vector<128x768xf32> -> vector<128x768xf32>
    %c0_13 = arith.constant 0 : index
    %c0_14 = arith.constant 0 : index
    %33 = vector.load %arg6[%c0_13, %c0_14] : memref<1x768xf32, #tpu.memory_space<vmem>>, vector<1x768xf32>
    %34 = vector.shape_cast %33 : vector<1x768xf32> to vector<768xf32>
    %35 = vector.shape_cast %34 : vector<768xf32> to vector<1x768xf32>
    %36 = vector.broadcast %35 : vector<1x768xf32> to vector<128x768xf32>
    %37 = arith.addf %32, %36 : vector<128x768xf32>
    %38 = vector.extract_strided_slice %37 {offsets = [0, 0], sizes = [128, 256], strides = [1, 1]} : vector<128x768xf32> to vector<128x256xf32>
    %cst_15 = arith.constant 0.0883883461 : f32
    %39 = vector.broadcast %cst_15 : f32 to vector<128x256xf32>
    %40 = arith.mulf %38, %39 : vector<128x256xf32>
    %41 = arith.truncf %40 : vector<128x256xf32> to vector<128x256xbf16>
    %c0_16 = arith.constant 0 : index
    %c0_17 = arith.constant 0 : index
    %c0_18 = arith.constant 0 : index
    %42 = vector.load %arg7[%c0_16, %c0_17, %c0_18] : memref<1x128x768xbf16, #tpu.memory_space<vmem>>, vector<1x128x256xbf16>
    %43 = vector.shape_cast %42 : vector<1x128x256xbf16> to vector<128x256xbf16>
    %44 = vector.shape_cast %41 : vector<128x256xbf16> to vector<1x128x256xbf16>
    tpu.vector_store %arg7[%c0_16, %c0_17, %c0_18], %44 {strides = array<i32>} : memref<1x128x768xbf16, #tpu.memory_space<vmem>>, vector<1x128x256xbf16>,
    %45 = vector.extract_strided_slice %37 {offsets = [0, 256], sizes = [128, 512], strides = [1, 1]} : vector<128x768xf32> to vector<128x512xf32>
    %46 = arith.truncf %45 : vector<128x512xf32> to vector<128x512xbf16>
    %c0_19 = arith.constant 0 : index
    %c0_20 = arith.constant 0 : index
    %c256 = arith.constant 256 : index
    %47 = vector.load %arg7[%c0_19, %c0_20, %c256] : memref<1x128x768xbf16, #tpu.memory_space<vmem>>, vector<1x128x512xbf16>
    %48 = vector.shape_cast %47 : vector<1x128x512xbf16> to vector<128x512xbf16>
    %49 = vector.shape_cast %46 : vector<128x512xbf16> to vector<1x128x512xbf16>
    tpu.vector_store %arg7[%c0_19, %c0_20, %c256], %49 {strides = array<i32>} : memref<1x128x768xbf16, #tpu.memory_space<vmem>>, vector<1x128x512xbf16>,
    return
  }
  func.func @transform_0(%arg0: i32, %arg1: i32) -> (i32, i32, i32) {
    %c0_i32 = arith.constant 0 : i32
    %c0_i32_0 = arith.constant 0 : i32
    return %arg0, %arg1, %c0_i32 : i32, i32, i32
  }
  func.func @transform_1(%arg0: i32, %arg1: i32) -> (i32, i32) {
    %c0_i32 = arith.constant 0 : i32
    %c0_i32_0 = arith.constant 0 : i32
    %c0_i32_1 = arith.constant 0 : i32
    return %c0_i32, %c0_i32_0 : i32, i32
  }
  func.func @transform_2(%arg0: i32, %arg1: i32) -> (i32, i32) {
    %c0_i32 = arith.constant 0 : i32
    %c0_i32_0 = arith.constant 0 : i32
    %c0_i32_1 = arith.constant 0 : i32
    return %c0_i32, %c0_i32_0 : i32, i32
  }
  func.func @transform_3(%arg0: i32, %arg1: i32) -> (i32, i32) {
    %c0_i32 = arith.constant 0 : i32
    %c0_i32_0 = arith.constant 0 : i32
    %c0_i32_1 = arith.constant 0 : i32
    return %c0_i32, %c0_i32_0 : i32, i32
  }
  func.func @transform_4(%arg0: i32, %arg1: i32) -> (i32, i32) {
    %c0_i32 = arith.constant 0 : i32
    %c0_i32_0 = arith.constant 0 : i32
    %c0_i32_1 = arith.constant 0 : i32
    return %c0_i32, %c0_i32_0 : i32, i32
  }
  func.func @transform_5(%arg0: i32, %arg1: i32) -> (i32, i32, i32) {
    %c0_i32 = arith.constant 0 : i32
    %c0_i32_0 = arith.constant 0 : i32
    return %arg0, %arg1, %c0_i32 : i32, i32, i32
  }
}

module attributes {stable_mosaic.version = 11 : i64} {
  func.func @_ln_qkv_kernel(%arg0: i32, %arg1: i32, %arg2: memref<1x128x256xf32, #tpu.memory_space<vmem>>, %arg3: memref<1x256xf32, #tpu.memory_space<vmem>>, %arg4: memref<1x256xf32, #tpu.memory_space<vmem>>, %arg5: memref<256x768xbf16, #tpu.memory_space<vmem>>, %arg6: memref<1x768xf32, #tpu.memory_space<vmem>>, %arg7: memref<1x128x768xbf16, #tpu.memory_space<vmem>>) attributes {dimension_semantics = [#tpu.dimension_semantics<parallel>, #tpu.dimension_semantics<parallel>], iteration_bounds = array<i64: 2, 2>, scalar_prefetch = 0 : i64, scratch_operands = 0 : i64, tpu.core_type = #tpu.core_type<tc>, window_params = [{transform_indices = @transform_0, window_bounds = array<i64: 1, 128, 256>}, {pipeline_mode = #tpu.pipeline_mode<synchronous>, transform_indices = @transform_1, window_bounds = array<i64: 1, 256>}, {pipeline_mode = #tpu.pipeline_mode<synchronous>, transform_indices = @transform_2, window_bounds = array<i64: 1, 256>}, {pipeline_mode = #tpu.pipeline_mode<synchronous>, transform_indices = @transform_3, window_bounds = array<i64: 256, 768>}, {pipeline_mode = #tpu.pipeline_mode<synchronous>, transform_indices = @transform_4, window_bounds = array<i64: 1, 768>}, {transform_indices = @transform_5, window_bounds = array<i64: 1, 128, 768>}]} {
    %c0 = arith.constant 0 : index
    %c0_0 = arith.constant 0 : index
    %c0_1 = arith.constant 0 : index
    %0 = vector.load %arg2[%c0, %c0_0, %c0_1] : memref<1x128x256xf32, #tpu.memory_space<vmem>>, vector<1x128x256xf32>
    %1 = vector.shape_cast %0 : vector<1x128x256xf32> to vector<128x256xf32>
    %c0_2 = arith.constant 0 : index
    %c0_3 = arith.constant 0 : index
    %2 = vector.load %arg3[%c0_2, %c0_3] : memref<1x256xf32, #tpu.memory_space<vmem>>, vector<1x256xf32>
    %3 = vector.shape_cast %2 : vector<1x256xf32> to vector<256xf32>
    %c0_4 = arith.constant 0 : index
    %c0_5 = arith.constant 0 : index
    %4 = vector.load %arg4[%c0_4, %c0_5] : memref<1x256xf32, #tpu.memory_space<vmem>>, vector<1x256xf32>
    %5 = vector.shape_cast %4 : vector<1x256xf32> to vector<256xf32>
    %cst = arith.constant dense<0.000000e+00> : vector<128xf32>
    %6 = vector.multi_reduction <add>, %1, %cst [1] : vector<128x256xf32> to vector<128xf32>
    %7 = vector.shape_cast %6 : vector<128xf32> to vector<128x1xf32>
    %cst_6 = arith.constant 2.560000e+02 : f32
    %8 = vector.broadcast %cst_6 : f32 to vector<128x1xf32>
    %9 = arith.divf %7, %8 : vector<128x1xf32>
    %10 = vector.broadcast %9 : vector<128x1xf32> to vector<128x256xf32>
    %11 = arith.subf %1, %10 : vector<128x256xf32>
    %12 = arith.mulf %11, %11 : vector<128x256xf32>
    %cst_7 = arith.constant dense<0.000000e+00> : vector<128xf32>
    %13 = vector.multi_reduction <add>, %12, %cst_7 [1] : vector<128x256xf32> to vector<128xf32>
    %14 = vector.shape_cast %13 : vector<128xf32> to vector<128x1xf32>
    %cst_8 = arith.constant 2.560000e+02 : f32
    %15 = vector.broadcast %cst_8 : f32 to vector<128x1xf32>
    %16 = arith.divf %14, %15 : vector<128x1xf32>
    %17 = vector.broadcast %9 : vector<128x1xf32> to vector<128x256xf32>
    %18 = arith.subf %1, %17 : vector<128x256xf32>
    %cst_9 = arith.constant 9.99999974E-6 : f32
    %19 = vector.broadcast %cst_9 : f32 to vector<128x1xf32>
    %20 = arith.addf %16, %19 : vector<128x1xf32>
    %21 = math.rsqrt %20 : vector<128x1xf32>
    %22 = vector.broadcast %21 : vector<128x1xf32> to vector<128x256xf32>
    %23 = arith.mulf %18, %22 : vector<128x256xf32>
    %24 = vector.shape_cast %3 : vector<256xf32> to vector<1x256xf32>
    %25 = vector.broadcast %24 : vector<1x256xf32> to vector<128x256xf32>
    %26 = arith.mulf %23, %25 : vector<128x256xf32>
    %27 = vector.shape_cast %5 : vector<256xf32> to vector<1x256xf32>
    %28 = vector.broadcast %27 : vector<1x256xf32> to vector<128x256xf32>
    %29 = arith.addf %26, %28 : vector<128x256xf32>
    %30 = arith.truncf %29 : vector<128x256xf32> to vector<128x256xbf16>
    %c0_10 = arith.constant 0 : index
    %c0_11 = arith.constant 0 : index
    %31 = vector.load %arg5[%c0_10, %c0_11] : memref<256x768xbf16, #tpu.memory_space<vmem>>, vector<256x768xbf16>
    %cst_12 = arith.constant dense<0.000000e+00> : vector<128x768xf32>
    %32 = tpu.matmul %30, %31, %cst_12 {dimension_numbers = #tpu.dot_dimension_numbers<[1], [0], [0], [1], [0, 0, 1, 1], [], []>} : vector<128x256xbf16>, vector<256x768xbf16>, vector<128x768xf32> -> vector<128x768xf32>
    %c0_13 = arith.constant 0 : index
    %c0_14 = arith.constant 0 : index
    %33 = vector.load %arg6[%c0_13, %c0_14] : memref<1x768xf32, #tpu.memory_space<vmem>>, vector<1x768xf32>
    %34 = vector.shape_cast %33 : vector<1x768xf32> to vector<768xf32>
    %35 = vector.shape_cast %34 : vector<768xf32> to vector<1x768xf32>
    %36 = vector.broadcast %35 : vector<1x768xf32> to vector<128x768xf32>
    %37 = arith.addf %32, %36 : vector<128x768xf32>
    %38 = vector.extract_strided_slice %37 {offsets = [0, 0], sizes = [128, 256], strides = [1, 1]} : vector<128x768xf32> to vector<128x256xf32>
    %cst_15 = arith.constant 0.0883883461 : f32
    %39 = vector.broadcast %cst_15 : f32 to vector<128x256xf32>
    %40 = arith.mulf %38, %39 : vector<128x256xf32>
    %41 = arith.truncf %40 : vector<128x256xf32> to vector<128x256xbf16>
    %c0_16 = arith.constant 0 : index
    %c0_17 = arith.constant 0 : index
    %c0_18 = arith.constant 0 : index
    %42 = vector.load %arg7[%c0_16, %c0_17, %c0_18] : memref<1x128x768xbf16, #tpu.memory_space<vmem>>, vector<1x128x256xbf16>
    %43 = vector.shape_cast %42 : vector<1x128x256xbf16> to vector<128x256xbf16>
    %44 = vector.shape_cast %41 : vector<128x256xbf16> to vector<1x128x256xbf16>
    tpu.vector_store %arg7[%c0_16, %c0_17, %c0_18], %44 {strides = array<i32>} : memref<1x128x768xbf16, #tpu.memory_space<vmem>>, vector<1x128x256xbf16>,
    %45 = vector.extract_strided_slice %37 {offsets = [0, 256], sizes = [128, 512], strides = [1, 1]} : vector<128x768xf32> to vector<128x512xf32>
    %46 = arith.truncf %45 : vector<128x512xf32> to vector<128x512xbf16>
    %c0_19 = arith.constant 0 : index
    %c0_20 = arith.constant 0 : index
    %c256 = arith.constant 256 : index
    %47 = vector.load %arg7[%c0_19, %c0_20, %c256] : memref<1x128x768xbf16, #tpu.memory_space<vmem>>, vector<1x128x512xbf16>
    %48 = vector.shape_cast %47 : vector<1x128x512xbf16> to vector<128x512xbf16>
    %49 = vector.shape_cast %46 : vector<128x512xbf16> to vector<1x128x512xbf16>
    tpu.vector_store %arg7[%c0_19, %c0_20, %c256], %49 {strides = array<i32>} : memref<1x128x768xbf16, #tpu.memory_space<vmem>>, vector<1x128x512xbf16>,
    return
  }
  func.func @transform_0(%arg0: i32, %arg1: i32) -> (i32, i32, i32) {
    %c0_i32 = arith.constant 0 : i32
    %c0_i32_0 = arith.constant 0 : i32
    return %arg0, %arg1, %c0_i32 : i32, i32, i32
  }
  func.func @transform_1(%arg0: i32, %arg1: i32) -> (i32, i32) {
    %c0_i32 = arith.constant 0 : i32
    %c0_i32_0 = arith.constant 0 : i32
    %c0_i32_1 = arith.constant 0 : i32
    return %c0_i32, %c0_i32_0 : i32, i32
  }
  func.func @transform_2(%arg0: i32, %arg1: i32) -> (i32, i32) {
    %c0_i32 = arith.constant 0 : i32
    %c0_i32_0 = arith.constant 0 : i32
    %c0_i32_1 = arith.constant 0 : i32
    return %c0_i32, %c0_i32_0 : i32, i32
  }
  func.func @transform_3(%arg0: i32, %arg1: i32) -> (i32, i32) {
    %c0_i32 = arith.constant 0 : i32
    %c0_i32_0 = arith.constant 0 : i32
    %c0_i32_1 = arith.constant 0 : i32
    return %c0_i32, %c0_i32_0 : i32, i32
  }
  func.func @transform_4(%arg0: i32, %arg1: i32) -> (i32, i32) {
    %c0_i32 = arith.constant 0 : i32
    %c0_i32_0 = arith.constant 0 : i32
    %c0_i32_1 = arith.constant 0 : i32
    return %c0_i32, %c0_i32_0 : i32, i32
  }
  func.func @transform_5(%arg0: i32, %arg1: i32) -> (i32, i32, i32) {
    %c0_i32 = arith.constant 0 : i32
    %c0_i32_0 = arith.constant 0 : i32
    return %arg0, %arg1, %c0_i32 : i32, i32, i32
  }
}

</mosaic_0001>

<llo_original>
// kernel: tpu_custom_call.1
$region0: #{tpu_custom_call.1}
  #allocation0 [shape = 'u32[]', space=smem, size = 0x4, offset = 0x4, fixed_abs, tag = 'smem constant byte address 0x4 - core index']
  #allocation1 [shape = 'u32[144,128]{1,0:T(1,128)}', space=vmem, size = 0x12000, scoped, tag = 'internal scratch']
  %s0 = inlined_call_operand.hbm [shape: f32[2,256,256], index: 0, kind: input, shape index: {}]
  %s1 = inlined_call_operand.vmem [shape: f32[1,256], index: 1, kind: input, shape index: {}]
  %s2 = inlined_call_operand.vmem [shape: f32[1,256], index: 2, kind: input, shape index: {}]
  %s3 = inlined_call_operand.hbm [shape: bf16[256,768], index: 3, kind: input, shape index: {}]
  %s4 = inlined_call_operand.vmem [shape: f32[1,768], index: 4, kind: input, shape index: {}]
  %s5 = inlined_call_operand.hbm [shape: bf16[2,256,768], index: 5, kind: output, shape index: {}]
  %s6 = sld [smem:[#allocation0]]
  $region61: #{tpu_custom_call.1} parent=0
    _
  %s8 = ssub.s32 1, %s6
  %s9 = scalar_select 0, %s8, %s6
  $region1: #{tpu_custom_call.1} parent=0
    #allocation2 [shape = 'u8[262144]{0}', space=vmem, size = 0x40000, scoped, tag = 'input window, operand 0']
    #allocation3 [shape = 's32[2]{0}', space=sflag, size = 0x8, scoped, tag = 'scoped memory for tpu_custom_call.1']
    #allocation4 [shape = 's32[2]{0}', space=sflag, size = 0x8, scoped, tag = 'scoped memory for tpu_custom_call.1']
    #allocation5 [shape = 'u8[393216]{0}', space=vmem, size = 0x60000, scoped, tag = 'input window, operand 3, single buffered']
    #allocation6 [shape = 's32[1]{0}', space=sflag, size = 0x4, scoped, tag = 'scoped memory for tpu_custom_call.1']
    #allocation7 [shape = 'u8[393216]{0}', space=vmem, size = 0x60000, scoped, tag = 'output window, operand 0']
    %10 = vsyncpa [#allocation3], 0
    %s11 = scalar_lea.sflag [#allocation3], 1
    %12 = vsyncpa %s11, 0
    %13 = vsyncpa [#allocation6], 0
    %14 = vsyncpa [#allocation4], 0
    %s15 = scalar_lea.sflag [#allocation4], 1
    %16 = vsyncpa %s15, 0
    loop: start=0, step=1, limit=6
    $region2: #{tpu_custom_call.1} parent=1 // loop_pre_header
      _
    $region3: #{tpu_custom_call.1} parent=1 // loop_header
      %s18 = sphi 0, %s22
      %p19 = scmp.ge.s32.totalorder %s18, 6
      %s25 = sphi 0, %s37
      %s26 = sphi 0, %s33
      %s27 = sphi 0, %s25
      %s28 = sphi 0, %s26
      %s29 = sphi 0, %s27
      %s30 = sphi 0, %s28
      %s42 = sphi 0, %s44
      %s45 = sphi 0, %s42
      %s46 = sphi 0, %s45
      %s62 = sphi 0, %s46
      %s66 = sphi 0, %s66
      %s68 = sphi 0, %s66
      %s69 = sphi 0, %s68
      %s83 = sphi 0, %s69
      %s87 = sphi 0, %s87
      %s89 = sphi 0, %s87
      %s90 = sphi 0, %s89
      %s104 = sphi 0, %s90
      %s108 = sphi 0, %s108
      %s110 = sphi 0, %s108
      %s111 = sphi 0, %s110
      %s125 = sphi 0, %s111
      %s129 = sphi 0, %s129
      %s131 = sphi 0, %s129
      %s132 = sphi 0, %s131
      %s146 = sphi 0, %s132
      %s154 = sphi 0, %s156
      %s157 = sphi 0, %s154
      %s158 = sphi 0, %s157
      %s174 = sphi 0, %s158
    $region4: #{tpu_custom_call.1} parent=1 // loop_header_branch
      %21 = sbr.rel (%p19) target = $region8
    $region5: #{tpu_custom_call.1} parent=1 // loop_body
      %s23 = ssub.s32 %s18, 1
      %s24 = ssub.s32 %s18, 2
      %s31 = sadd.s32 1, %s26
      %p32 = scmp.ge.s32.totalorder %s31, 2
      %s33 = scalar_select %p32, 0, %s31
      %s34 = sadd.s32 1, %s25
      %s35 = scalar_select %p32, %s34, %s25
      %p36 = scmp.ge.s32.totalorder %s35, 2
      %s37 = scalar_select %p36, 0, %s35
      %s38 = ssub.s32 %s25, %s37
      %s39 = ssub.s32 %s26, %s33
      %s40 = sor.u32 %s38, %s39
      %p41 = scmp.eq.s32.totalorder %s40, 0
      %s43 = sadd.s32 %s42, 1
      %s44 = scalar_select %p41, %s42, %s43
      %p47 = pneg %p41
      %p48 = scmp.eq.s32.totalorder %s18, 3
      %p49 = por %p47, %p48
      %p50 = scmp.ne.s32.totalorder %s42, %s45
      %p51 = scmp.eq.s32.totalorder %s18, 0
      %p52 = por %p50, %p51
      %p53 = scmp.ne.s32.totalorder %s42, %s45
      %p54 = scmp.eq.s32.totalorder %s23, 3
      %p55 = por %p53, %p54
      %p56 = scmp.ne.s32.totalorder %s45, %s46
      %p57 = scmp.eq.s32.totalorder %s23, 0
      %p58 = por %p56, %p57
      %p59 = scmp.ne.s32.totalorder %s45, %s46
      %p60 = scmp.eq.s32.totalorder %s24, 3
      %p61 = por %p59, %p60
      %p63 = scmp.ne.s32.totalorder %s46, %s62
      %p64 = scmp.eq.s32.totalorder %s24, 0
      %p65 = por %p63, %p64
      %s67 = sadd.s32 %s66, 1
      %p70 = scmp.eq.s32.totalorder %s18, 3
      %p71 = scmp.ne.s32.totalorder %s66, %s68
      %p72 = scmp.eq.s32.totalorder %s18, 0
      %p73 = por %p71, %p72
      %p74 = scmp.ne.s32.totalorder %s66, %s68
      %p75 = scmp.eq.s32.totalorder %s23, 3
      %p76 = por %p74, %p75
      %p77 = scmp.ne.s32.totalorder %s68, %s69
      %p78 = scmp.eq.s32.totalorder %s23, 0
      %p79 = por %p77, %p78
      %p80 = scmp.ne.s32.totalorder %s68, %s69
      %p81 = scmp.eq.s32.totalorder %s24, 3
      %p82 = por %p80, %p81
      %p84 = scmp.ne.s32.totalorder %s69, %s83
      %p85 = scmp.eq.s32.totalorder %s24, 0
      %p86 = por %p84, %p85
      %s88 = sadd.s32 %s87, 1
      %p91 = scmp.eq.s32.totalorder %s18, 3
      %p92 = scmp.ne.s32.totalorder %s87, %s89
      %p93 = scmp.eq.s32.totalorder %s18, 0
      %p94 = por %p92, %p93
      %p95 = scmp.ne.s32.totalorder %s87, %s89
      %p96 = scmp.eq.s32.totalorder %s23, 3
      %p97 = por %p95, %p96
      %p98 = scmp.ne.s32.totalorder %s89, %s90
      %p99 = scmp.eq.s32.totalorder %s23, 0
      %p100 = por %p98, %p99
      %p101 = scmp.ne.s32.totalorder %s89, %s90
      %p102 = scmp.eq.s32.totalorder %s24, 3
      %p103 = por %p101, %p102
      %p105 = scmp.ne.s32.totalorder %s90, %s104
      %p106 = scmp.eq.s32.totalorder %s24, 0
      %p107 = por %p105, %p106
      %s109 = sadd.s32 %s108, 1
      %p112 = scmp.eq.s32.totalorder %s18, 3
      %p113 = scmp.ne.s32.totalorder %s108, %s110
      %p114 = scmp.eq.s32.totalorder %s18, 0
      %p115 = por %p113, %p114
      %p116 = scmp.ne.s32.totalorder %s108, %s110
      %p117 = scmp.eq.s32.totalorder %s23, 3
      %p118 = por %p116, %p117
      %p119 = scmp.ne.s32.totalorder %s110, %s111
      %p120 = scmp.eq.s32.totalorder %s23, 0
      %p121 = por %p119, %p120
      %p122 = scmp.ne.s32.totalorder %s110, %s111
      %p123 = scmp.eq.s32.totalorder %s24, 3
      %p124 = por %p122, %p123
      %p126 = scmp.ne.s32.totalorder %s111, %s125
      %p127 = scmp.eq.s32.totalorder %s24, 0
      %p128 = por %p126, %p127
      %s130 = sadd.s32 %s129, 1
      %p133 = scmp.eq.s32.totalorder %s18, 3
      %p134 = scmp.ne.s32.totalorder %s129, %s131
      %p135 = scmp.eq.s32.totalorder %s18, 0
      %p136 = por %p134, %p135
      %p137 = scmp.ne.s32.totalorder %s129, %s131
      %p138 = scmp.eq.s32.totalorder %s23, 3
      %p139 = por %p137, %p138
      %p140 = scmp.ne.s32.totalorder %s131, %s132
      %p141 = scmp.eq.s32.totalorder %s23, 0
      %p142 = por %p140, %p141
      %p143 = scmp.ne.s32.totalorder %s131, %s132
      %p144 = scmp.eq.s32.totalorder %s24, 3
      %p145 = por %p143, %p144
      %p147 = scmp.ne.s32.totalorder %s132, %s146
      %p148 = scmp.eq.s32.totalorder %s24, 0
      %p149 = por %p147, %p148
      %s150 = ssub.s32 %s25, %s37
      %s151 = ssub.s32 %s26, %s33
      %s152 = sor.u32 %s150, %s151
      %p153 = scmp.eq.s32.totalorder %s152, 0
      %s155 = sadd.s32 %s154, 1
      %s156 = scalar_select %p153, %s154, %s155
      %p159 = pneg %p153
      %p160 = scmp.eq.s32.totalorder %s18, 3
      %p161 = por %p159, %p160
      %p162 = scmp.ne.s32.totalorder %s154, %s157
      %p163 = scmp.eq.s32.totalorder %s18, 0
      %p164 = por %p162, %p163
      %p165 = scmp.ne.s32.totalorder %s154, %s157
      %p166 = scmp.eq.s32.totalorder %s23, 3
      %p167 = por %p165, %p166
      %p168 = scmp.ne.s32.totalorder %s157, %s158
      %p169 = scmp.eq.s32.totalorder %s23, 0
      %p170 = por %p168, %p169
      %p171 = scmp.ne.s32.totalorder %s157, %s158
      %p172 = scmp.eq.s32.totalorder %s24, 3
      %p173 = por %p171, %p172
      %p175 = scmp.ne.s32.totalorder %s158, %s174
      %p176 = scmp.eq.s32.totalorder %s24, 0
      %p177 = por %p175, %p176
      %p178 = scmp.le.s32.totalorder 1, %s18
      %p179 = scmp.lt.s32.totalorder %s18, 5
      %p180 = pnand %p178, %p179
      %p181 = pneg %p180
      // Predicated region
      $region9: #{tpu_custom_call.1} parent=5 // pred_check
        _
      $region10: #{tpu_custom_call.1} parent=5 // pred_check_branch
        %183 = sbr.rel (%p180) target = $region12
      $region11: #{tpu_custom_call.1} parent=5 // pred_region
        %s184 = ssub.s32 %s18, 1
        // Predicated region
        $region13: #{tpu_custom_call.1} parent=11 // pred_check
          %p185 = pneg %p79
        $region14: #{tpu_custom_call.1} parent=11 // pred_check_branch
          %187 = sbr.rel (%p185) target = $region16
        $region15: #{tpu_custom_call.1} parent=11 // pred_region
          _
        $region16: #{tpu_custom_call.1} parent=11 // pred_fallthru
          _
        // Predicated region
        $region17: #{tpu_custom_call.1} parent=11 // pred_check
          %p188 = pneg %p100
        $region18: #{tpu_custom_call.1} parent=11 // pred_check_branch
          %190 = sbr.rel (%p188) target = $region20
        $region19: #{tpu_custom_call.1} parent=11 // pred_region
          _
        $region20: #{tpu_custom_call.1} parent=11 // pred_fallthru
          _
        // Predicated region
        $region21: #{tpu_custom_call.1} parent=11 // pred_check
          %p191 = pneg %p121
        $region22: #{tpu_custom_call.1} parent=11 // pred_check_branch
          %193 = sbr.rel (%p191) target = $region24
        $region23: #{tpu_custom_call.1} parent=11 // pred_region
          %s195 = ssub.s32 12288, 12288
          %196 = vsyncadd [#allocation6], %s195
          %s197 = sshll.u32 [#allocation5], 4
          %s198 = int_to_ptr.vmem [resolvable:$true] %s197
          %203 = dma.hbm_to_vmem [thread:$0]  %s3, 12288, %s198, [#allocation6], 384, 384, 24
        $region24: #{tpu_custom_call.1} parent=11 // pred_fallthru
          _
        // Predicated region
        $region25: #{tpu_custom_call.1} parent=11 // pred_check
          %p204 = pneg %p142
        $region26: #{tpu_custom_call.1} parent=11 // pred_check_branch
          %206 = sbr.rel (%p204) target = $region28
        $region27: #{tpu_custom_call.1} parent=11 // pred_region
          _
        $region28: #{tpu_custom_call.1} parent=11 // pred_fallthru
          _
      $region12: #{tpu_custom_call.1} parent=5 // pred_fallthru
        _
      %p207 = scmp.lt.s32.totalorder %s18, 4
      // Predicated region
      $region29: #{tpu_custom_call.1} parent=5 // pred_check
        %p208 = pneg %p207
      $region30: #{tpu_custom_call.1} parent=5 // pred_check_branch
        %210 = sbr.rel (%p208) target = $region32
      $region31: #{tpu_custom_call.1} parent=5 // pred_region
        // Predicated region
        $region33: #{tpu_custom_call.1} parent=31 // pred_check
          %p211 = pneg %p52
        $region34: #{tpu_custom_call.1} parent=31 // pred_check_branch
          %213 = sbr.rel (%p211) target = $region36
        $region35: #{tpu_custom_call.1} parent=31 // pred_region
          %s214 = sand.u32 %s42, 1
          %s215 = scalar_lea.sflag [#allocation3], %s214
          %s216 = sand.u32 %s42, 1
          %s217 = smul.addr %s216, 256
          %s218 = scalar_lea.vmem [#allocation2], %s217
          %s219 = smul.u32 16, %s26
          %s221 = ssub.s32 4096, 4096
          %222 = vsyncadd %s215, %s221
          %s223 = smul.addr %s219, 2
          %s224 = smul.addr %s25, 64
          %s225 = sadd.s32 %s223, %s224
          %s226 = smul.addr %s225, 128
          %s227 = scalar_lea.hbm %s0, %s226
          %s228 = sshll.u32 %s218, 4
          %s229 = int_to_ptr.vmem [resolvable:$true] %s228
          %234 = dma.hbm_to_vmem [thread:$0]  %s227, 4096, %s229, %s215, 256, 256, 16
        $region36: #{tpu_custom_call.1} parent=31 // pred_fallthru
          _
      $region32: #{tpu_custom_call.1} parent=5 // pred_fallthru
        _
      %p235 = scmp.le.s32.totalorder 1, %s18
      %p236 = scmp.lt.s32.totalorder %s18, 5
      %p237 = pnand %p235, %p236
      %p238 = pneg %p237
      // Predicated region
      $region37: #{tpu_custom_call.1} parent=5 // pred_check
        _
      $region38: #{tpu_custom_call.1} parent=5 // pred_check_branch
        %240 = sbr.rel (%p237) target = $region40
      $region39: #{tpu_custom_call.1} parent=5 // pred_region
        %s241 = ssub.s32 %s18, 1
        %s242 = sand.u32 %s45, 1
        %s243 = scalar_lea.sflag [#allocation3], %s242
        %s244 = sand.u32 %s45, 1
        %s245 = smul.addr %s244, 256
        %s246 = scalar_lea.vmem [#allocation2], %s245
        // Predicated region
        $region41: #{tpu_custom_call.1} parent=39 // pred_check
          %p247 = pneg %p58
        $region42: #{tpu_custom_call.1} parent=39 // pred_check_branch
          %249 = sbr.rel (%p247) target = $region44
        $region43: #{tpu_custom_call.1} parent=39 // pred_region
          %250 = dma.done %s243, 4096
        $region44: #{tpu_custom_call.1} parent=39 // pred_fallthru
          _
        // Predicated region
        $region45: #{tpu_custom_call.1} parent=39 // pred_check
          %p251 = pneg %p121
        $region46: #{tpu_custom_call.1} parent=39 // pred_check_branch
          %253 = sbr.rel (%p251) target = $region48
        $region47: #{tpu_custom_call.1} parent=39 // pred_region
          %254 = dma.done [#allocation6], 12288
        $region48: #{tpu_custom_call.1} parent=39 // pred_fallthru
          _
        %s255 = sand.u32 %s45, 1
        %s256 = scalar_lea.sflag [#allocation3], %s255
        %s257 = sand.u32 %s45, 1
        %s258 = smul.addr %s257, 256
        %s259 = scalar_lea.vmem [#allocation2], %s258
        %p260 = pneg %p58
        %p261 = pneg %p55
        %p262 = pneg %p79
        %p263 = pneg %p76
        %p264 = pneg %p100
        %p265 = pneg %p97
        %p266 = pneg %p121
        %p267 = pneg %p118
        %p268 = pneg %p142
        %p269 = pneg %p139
        %p270 = pneg %p170
        %p271 = pneg %p167
        %s272 = sand.u32 %s157, 1
        %s273 = scalar_lea.sflag [#allocation4], %s272
        %s274 = sand.u32 %s157, 1
        %s275 = smul.addr %s274, 384
        %s276 = scalar_lea.vmem [#allocation7], %s275
        %s277 = smul.u32 16, %s28
        %s278 = smul.u32 16, %s28
        %v279 = vld [vmem:[%s246] sm:$0xff]
        %v280 = vld [vmem:[%s246 + $0x8] sm:$0xff]
        %v281 = vld [vmem:[%s246 + $0x10] sm:$0xff]
        %v282 = vld [vmem:[%s246 + $0x18] sm:$0xff]
        %v283 = vld [vmem:[%s246 + $0x20] sm:$0xff]
        %v284 = vld [vmem:[%s246 + $0x28] sm:$0xff]
        %v285 = vld [vmem:[%s246 + $0x30] sm:$0xff]
        %v286 = vld [vmem:[%s246 + $0x38] sm:$0xff]
        %v287 = vld [vmem:[%s246 + $0x40] sm:$0xff]
        %v288 = vld [vmem:[%s246 + $0x48] sm:$0xff]
        %v289 = vld [vmem:[%s246 + $0x50] sm:$0xff]
        %v290 = vld [vmem:[%s246 + $0x58] sm:$0xff]
        %v291 = vld [vmem:[%s246 + $0x60] sm:$0xff]
        %v292 = vld [vmem:[%s246 + $0x68] sm:$0xff]
        %v293 = vld [vmem:[%s246 + $0x70] sm:$0xff]
        %v294 = vld [vmem:[%s246 + $0x78] sm:$0xff]
        %v295 = vld [vmem:[%s246 + $0x80] sm:$0xff]
        %v296 = vld [vmem:[%s246 + $0x88] sm:$0xff]
        %v297 = vld [vmem:[%s246 + $0x90] sm:$0xff]
        %v298 = vld [vmem:[%s246 + $0x98] sm:$0xff]
        %v299 = vld [vmem:[%s246 + $0xa0] sm:$0xff]
        %v300 = vld [vmem:[%s246 + $0xa8] sm:$0xff]
        %v301 = vld [vmem:[%s246 + $0xb0] sm:$0xff]
        %v302 = vld [vmem:[%s246 + $0xb8] sm:$0xff]
        %v303 = vld [vmem:[%s246 + $0xc0] sm:$0xff]
        %v304 = vld [vmem:[%s246 + $0xc8] sm:$0xff]
        %v305 = vld [vmem:[%s246 + $0xd0] sm:$0xff]
        %v306 = vld [vmem:[%s246 + $0xd8] sm:$0xff]
        %v307 = vld [vmem:[%s246 + $0xe0] sm:$0xff]
        %v308 = vld [vmem:[%s246 + $0xe8] sm:$0xff]
        %v309 = vld [vmem:[%s246 + $0xf0] sm:$0xff]
        %v310 = vld [vmem:[%s246 + $0xf8] sm:$0xff]
        %v311 = vld [vmem:[%s1] sm:$0x3]
        %v312 = vld [vmem:[%s2] sm:$0x3]
        %v313 = vadd.f32 %v279, %v280
        %314 = vadd.xlane.f32.xlu0 %v313
        %v315 = vpop.xlane.xlu0 %314
        %v316 = vadd.f32 %v281, %v282
        %317 = vadd.xlane.f32.xlu0 %v316
        %v318 = vpop.xlane.xlu0 %317
        %v319 = vadd.f32 %v283, %v284
        %320 = vadd.xlane.f32.xlu0 %v319
        %v321 = vpop.xlane.xlu0 %320
        %v322 = vadd.f32 %v285, %v286
        %323 = vadd.xlane.f32.xlu0 %v322
        %v324 = vpop.xlane.xlu0 %323
        %v325 = vadd.f32 %v287, %v288
        %326 = vadd.xlane.f32.xlu0 %v325
        %v327 = vpop.xlane.xlu0 %326
        %v328 = vadd.f32 %v289, %v290
        %329 = vadd.xlane.f32.xlu0 %v328
        %v330 = vpop.xlane.xlu0 %329
        %v331 = vadd.f32 %v291, %v292
        %332 = vadd.xlane.f32.xlu0 %v331
        %v333 = vpop.xlane.xlu0 %332
        %v334 = vadd.f32 %v293, %v294
        %335 = vadd.xlane.f32.xlu0 %v334
        %v336 = vpop.xlane.xlu0 %335
        %v337 = vadd.f32 %v295, %v296
        %338 = vadd.xlane.f32.xlu0 %v337
        %v339 = vpop.xlane.xlu0 %338
        %v340 = vadd.f32 %v297, %v298
        %341 = vadd.xlane.f32.xlu0 %v340
        %v342 = vpop.xlane.xlu0 %341
        %v343 = vadd.f32 %v299, %v300
        %344 = vadd.xlane.f32.xlu0 %v343
        %v345 = vpop.xlane.xlu0 %344
        %v346 = vadd.f32 %v301, %v302
        %347 = vadd.xlane.f32.xlu0 %v346
        %v348 = vpop.xlane.xlu0 %347
        %v349 = vadd.f32 %v303, %v304
        %350 = vadd.xlane.f32.xlu0 %v349
        %v351 = vpop.xlane.xlu0 %350
        %v352 = vadd.f32 %v305, %v306
        %353 = vadd.xlane.f32.xlu0 %v352
        %v354 = vpop.xlane.xlu0 %353
        %v355 = vadd.f32 %v307, %v308
        %356 = vadd.xlane.f32.xlu0 %v355
        %v357 = vpop.xlane.xlu0 %356
        %v358 = vadd.f32 %v309, %v310
        %359 = vadd.xlane.f32.xlu0 %v358
        %v360 = vpop.xlane.xlu0 %359
        %v361 = vrcp.pop 256.0
        %v362 = vmul.f32 %v315, %v361
        %v363 = vmul.f32 %v318, %v361
        %v364 = vmul.f32 %v321, %v361
        %v365 = vmul.f32 %v324, %v361
        %v366 = vmul.f32 %v327, %v361
        %v367 = vmul.f32 %v330, %v361
        %v368 = vmul.f32 %v333, %v361
        %v369 = vmul.f32 %v336, %v361
        %v370 = vmul.f32 %v339, %v361
        %v371 = vmul.f32 %v342, %v361
        %v372 = vmul.f32 %v345, %v361
        %v373 = vmul.f32 %v348, %v361
        %v374 = vmul.f32 %v351, %v361
        %v375 = vmul.f32 %v354, %v361
        %v376 = vmul.f32 %v357, %v361
        %v377 = vmul.f32 %v360, %v361
        %v378 = vsub.f32 %v279, %v362
        %v379 = vsub.f32 %v280, %v362
        %v380 = vsub.f32 %v281, %v363
        %v381 = vsub.f32 %v282, %v363
        %v382 = vsub.f32 %v283, %v364
        %v383 = vsub.f32 %v284, %v364
        %v384 = vsub.f32 %v285, %v365
        %v385 = vsub.f32 %v286, %v365
        %v386 = vsub.f32 %v287, %v366
        %v387 = vsub.f32 %v288, %v366
        %v388 = vsub.f32 %v289, %v367
        %v389 = vsub.f32 %v290, %v367
        %v390 = vsub.f32 %v291, %v368
        %v391 = vsub.f32 %v292, %v368
        %v392 = vsub.f32 %v293, %v369
        %v393 = vsub.f32 %v294, %v369
        %v394 = vsub.f32 %v295, %v370
        %v395 = vsub.f32 %v296, %v370
        %v396 = vsub.f32 %v297, %v371
        %v397 = vsub.f32 %v298, %v371
        %v398 = vsub.f32 %v299, %v372
        %v399 = vsub.f32 %v300, %v372
        %v400 = vsub.f32 %v301, %v373
        %v401 = vsub.f32 %v302, %v373
        %v402 = vsub.f32 %v303, %v374
        %v403 = vsub.f32 %v304, %v374
        %v404 = vsub.f32 %v305, %v375
        %v405 = vsub.f32 %v306, %v375
        %v406 = vsub.f32 %v307, %v376
        %v407 = vsub.f32 %v308, %v376
        %v408 = vsub.f32 %v309, %v377
        %v409 = vsub.f32 %v310, %v377
        %v410 = vmul.f32 %v378, %v378
        %v411 = vmul.f32 %v379, %v379
        %v412 = vmul.f32 %v380, %v380
        %v413 = vmul.f32 %v381, %v381
        %v414 = vmul.f32 %v382, %v382
        %v415 = vmul.f32 %v383, %v383
        %v416 = vmul.f32 %v384, %v384
        %v417 = vmul.f32 %v385, %v385
        %v418 = vmul.f32 %v386, %v386
        %v419 = vmul.f32 %v387, %v387
        %v420 = vmul.f32 %v388, %v388
        %v421 = vmul.f32 %v389, %v389
        %v422 = vmul.f32 %v390, %v390
        %v423 = vmul.f32 %v391, %v391
        %v424 = vmul.f32 %v392, %v392
        %v425 = vmul.f32 %v393, %v393
        %v426 = vmul.f32 %v394, %v394
        %v427 = vmul.f32 %v395, %v395
        %v428 = vmul.f32 %v396, %v396
        %v429 = vmul.f32 %v397, %v397
        %v430 = vmul.f32 %v398, %v398
        %v431 = vmul.f32 %v399, %v399
        %v432 = vmul.f32 %v400, %v400
        %v433 = vmul.f32 %v401, %v401
        %v434 = vmul.f32 %v402, %v402
        %v435 = vmul.f32 %v403, %v403
        %v436 = vmul.f32 %v404, %v404
        %v437 = vmul.f32 %v405, %v405
        %v438 = vmul.f32 %v406, %v406
        %v439 = vmul.f32 %v407, %v407
        %v440 = vmul.f32 %v408, %v408
        %v441 = vmul.f32 %v409, %v409
        %v442 = vadd.f32 %v410, %v411
        %443 = vadd.xlane.f32.xlu0 %v442
        %v444 = vpop.xlane.xlu0 %443
        %v445 = vadd.f32 %v412, %v413
        %446 = vadd.xlane.f32.xlu0 %v445
        %v447 = vpop.xlane.xlu0 %446
        %v448 = vadd.f32 %v414, %v415
        %449 = vadd.xlane.f32.xlu0 %v448
        %v450 = vpop.xlane.xlu0 %449
        %v451 = vadd.f32 %v416, %v417
        %452 = vadd.xlane.f32.xlu0 %v451
        %v453 = vpop.xlane.xlu0 %452
        %v454 = vadd.f32 %v418, %v419
        %455 = vadd.xlane.f32.xlu0 %v454
        %v456 = vpop.xlane.xlu0 %455
        %v457 = vadd.f32 %v420, %v421
        %458 = vadd.xlane.f32.xlu0 %v457
        %v459 = vpop.xlane.xlu0 %458
        %v460 = vadd.f32 %v422, %v423
        %461 = vadd.xlane.f32.xlu0 %v460
        %v462 = vpop.xlane.xlu0 %461
        %v463 = vadd.f32 %v424, %v425
        %464 = vadd.xlane.f32.xlu0 %v463
        %v465 = vpop.xlane.xlu0 %464
        %v466 = vadd.f32 %v426, %v427
        %467 = vadd.xlane.f32.xlu0 %v466
        %v468 = vpop.xlane.xlu0 %467
        %v469 = vadd.f32 %v428, %v429
        %470 = vadd.xlane.f32.xlu0 %v469
        %v471 = vpop.xlane.xlu0 %470
        %v472 = vadd.f32 %v430, %v431
        %473 = vadd.xlane.f32.xlu0 %v472
        %v474 = vpop.xlane.xlu0 %473
        %v475 = vadd.f32 %v432, %v433
        %476 = vadd.xlane.f32.xlu0 %v475
        %v477 = vpop.xlane.xlu0 %476
        %v478 = vadd.f32 %v434, %v435
        %479 = vadd.xlane.f32.xlu0 %v478
        %v480 = vpop.xlane.xlu0 %479
        %v481 = vadd.f32 %v436, %v437
        %482 = vadd.xlane.f32.xlu0 %v481
        %v483 = vpop.xlane.xlu0 %482
        %v484 = vadd.f32 %v438, %v439
        %485 = vadd.xlane.f32.xlu0 %v484
        %v486 = vpop.xlane.xlu0 %485
        %v487 = vadd.f32 %v440, %v441
        %488 = vadd.xlane.f32.xlu0 %v487
        %v489 = vpop.xlane.xlu0 %488
        %v490 = vmul.f32 %v444, %v361
        %v491 = vmul.f32 %v447, %v361
        %v492 = vmul.f32 %v450, %v361
        %v493 = vmul.f32 %v453, %v361
        %v494 = vmul.f32 %v456, %v361
        %v495 = vmul.f32 %v459, %v361
        %v496 = vmul.f32 %v462, %v361
        %v497 = vmul.f32 %v465, %v361
        %v498 = vmul.f32 %v468, %v361
        %v499 = vmul.f32 %v471, %v361
        %v500 = vmul.f32 %v474, %v361
        %v501 = vmul.f32 %v477, %v361
        %v502 = vmul.f32 %v480, %v361
        %v503 = vmul.f32 %v483, %v361
        %v504 = vmul.f32 %v486, %v361
        %v505 = vmul.f32 %v489, %v361
        %v506 = vadd.f32 %v490, 1e-05
        %v507 = vadd.f32 %v491, 1e-05
        %v508 = vadd.f32 %v492, 1e-05
        %v509 = vadd.f32 %v493, 1e-05
        %v510 = vadd.f32 %v494, 1e-05
        %v511 = vadd.f32 %v495, 1e-05
        %v512 = vadd.f32 %v496, 1e-05
        %v513 = vadd.f32 %v497, 1e-05
        %v514 = vadd.f32 %v498, 1e-05
        %v515 = vadd.f32 %v499, 1e-05
        %v516 = vadd.f32 %v500, 1e-05
        %v517 = vadd.f32 %v501, 1e-05
        %v518 = vadd.f32 %v502, 1e-05
        %v519 = vadd.f32 %v503, 1e-05
        %v520 = vadd.f32 %v504, 1e-05
        %v521 = vadd.f32 %v505, 1e-05
        %v522 = vrsqrt.pop %v506
        %v523 = vrsqrt.pop %v507
        %v524 = vrsqrt.pop %v508
        %v525 = vrsqrt.pop %v509
        %v526 = vrsqrt.pop %v510
        %v527 = vrsqrt.pop %v511
        %v528 = vrsqrt.pop %v512
        %v529 = vrsqrt.pop %v513
        %v530 = vrsqrt.pop %v514
        %v531 = vrsqrt.pop %v515
        %v532 = vrsqrt.pop %v516
        %v533 = vrsqrt.pop %v517
        %v534 = vrsqrt.pop %v518
        %v535 = vrsqrt.pop %v519
        %v536 = vrsqrt.pop %v520
        %v537 = vrsqrt.pop %v521
        %v538 = vmul.f32 %v378, %v522
        %v539 = vmul.f32 %v379, %v522
        %v540 = vmul.f32 %v380, %v523
        %v541 = vmul.f32 %v381, %v523
        %v542 = vmul.f32 %v382, %v524
        %v543 = vmul.f32 %v383, %v524
        %v544 = vmul.f32 %v384, %v525
        %v545 = vmul.f32 %v385, %v525
        %v546 = vmul.f32 %v386, %v526
        %v547 = vmul.f32 %v387, %v526
        %v548 = vmul.f32 %v388, %v527
        %v549 = vmul.f32 %v389, %v527
        %v550 = vmul.f32 %v390, %v528
        %v551 = vmul.f32 %v391, %v528
        %v552 = vmul.f32 %v392, %v529
        %v553 = vmul.f32 %v393, %v529
        %v554 = vmul.f32 %v394, %v530
        %v555 = vmul.f32 %v395, %v530
        %v556 = vmul.f32 %v396, %v531
        %v557 = vmul.f32 %v397, %v531
        %v558 = vmul.f32 %v398, %v532
        %v559 = vmul.f32 %v399, %v532
        %v560 = vmul.f32 %v400, %v533
        %v561 = vmul.f32 %v401, %v533
        %v562 = vmul.f32 %v402, %v534
        %v563 = vmul.f32 %v403, %v534
        %v564 = vmul.f32 %v404, %v535
        %v565 = vmul.f32 %v405, %v535
        %v566 = vmul.f32 %v406, %v536
        %v567 = vmul.f32 %v407, %v536
        %v568 = vmul.f32 %v408, %v537
        %v569 = vmul.f32 %v409, %v537
        %v571 = vlaneseq
        %v572 = vshrl.u32 %v571, 7
        %v573 = vsub.s32 0, %v572
        %v574 = vrot.slane %v311, %v573
        %v575 = vlaneseq
        %v576 = vshrl.u32 %v575, 7
        %v577 = vsub.s32 1, %v576
        %v578 = vrot.slane %v311, %v577
        %v581 = vmul.f32 %v538, %v574
        %v582 = vmul.f32 %v539, %v578
        %v583 = vmul.f32 %v540, %v574
        %v584 = vmul.f32 %v541, %v578
        %v585 = vmul.f32 %v542, %v574
        %v586 = vmul.f32 %v543, %v578
        %v587 = vmul.f32 %v544, %v574
        %v588 = vmul.f32 %v545, %v578
        %v589 = vmul.f32 %v546, %v574
        %v590 = vmul.f32 %v547, %v578
        %v591 = vmul.f32 %v548, %v574
        %v592 = vmul.f32 %v549, %v578
        %v593 = vmul.f32 %v550, %v574
        %v594 = vmul.f32 %v551, %v578
        %v595 = vmul.f32 %v552, %v574
        %v596 = vmul.f32 %v553, %v578
        %v597 = vmul.f32 %v554, %v574
        %v598 = vmul.f32 %v555, %v578
        %v599 = vmul.f32 %v556, %v574
        %v600 = vmul.f32 %v557, %v578
        %v601 = vmul.f32 %v558, %v574
        %v602 = vmul.f32 %v559, %v578
        %v603 = vmul.f32 %v560, %v574
        %v604 = vmul.f32 %v561, %v578
        %v605 = vmul.f32 %v562, %v574
        %v606 = vmul.f32 %v563, %v578
        %v607 = vmul.f32 %v564, %v574
        %v608 = vmul.f32 %v565, %v578
        %v609 = vmul.f32 %v566, %v574
        %v610 = vmul.f32 %v567, %v578
        %v611 = vmul.f32 %v568, %v574
        %v612 = vmul.f32 %v569, %v578
        %v614 = vlaneseq
        %v615 = vshrl.u32 %v614, 7
        %v616 = vsub.s32 0, %v615
        %v617 = vrot.slane %v312, %v616
        %v618 = vlaneseq
        %v619 = vshrl.u32 %v618, 7
        %v620 = vsub.s32 1, %v619
        %v621 = vrot.slane %v312, %v620
        %v624 = vadd.f32 %v581, %v617
        %v625 = vadd.f32 %v582, %v621
        %v626 = vadd.f32 %v583, %v617
        %v627 = vadd.f32 %v584, %v621
        %v628 = vadd.f32 %v585, %v617
        %v629 = vadd.f32 %v586, %v621
        %v630 = vadd.f32 %v587, %v617
        %v631 = vadd.f32 %v588, %v621
        %v632 = vadd.f32 %v589, %v617
        %v633 = vadd.f32 %v590, %v621
        %v634 = vadd.f32 %v591, %v617
        %v635 = vadd.f32 %v592, %v621
        %v636 = vadd.f32 %v593, %v617
        %v637 = vadd.f32 %v594, %v621
        %v638 = vadd.f32 %v595, %v617
        %v639 = vadd.f32 %v596, %v621
        %v640 = vadd.f32 %v597, %v617
        %v641 = vadd.f32 %v598, %v621
        %v642 = vadd.f32 %v599, %v617
        %v643 = vadd.f32 %v600, %v621
        %v644 = vadd.f32 %v601, %v617
        %v645 = vadd.f32 %v602, %v621
        %v646 = vadd.f32 %v603, %v617
        %v647 = vadd.f32 %v604, %v621
        %v648 = vadd.f32 %v605, %v617
        %v649 = vadd.f32 %v606, %v621
        %v650 = vadd.f32 %v607, %v617
        %v651 = vadd.f32 %v608, %v621
        %v652 = vadd.f32 %v609, %v617
        %v653 = vadd.f32 %v610, %v621
        %v654 = vadd.f32 %v611, %v617
        %v655 = vadd.f32 %v612, %v621
        %v656 = vpack.c.bf16 %v626, %v624
        %v657 = vpack.c.bf16 %v627, %v625
        %v658 = vpack.c.bf16 %v630, %v628
        %v659 = vpack.c.bf16 %v631, %v629
        %v660 = vpack.c.bf16 %v634, %v632
        %v661 = vpack.c.bf16 %v635, %v633
        %v662 = vpack.c.bf16 %v638, %v636
        %v663 = vpack.c.bf16 %v639, %v637
        %v664 = vpack.c.bf16 %v642, %v640
        %v665 = vpack.c.bf16 %v643, %v641
        %v666 = vpack.c.bf16 %v646, %v644
        %v667 = vpack.c.bf16 %v647, %v645
        %v668 = vpack.c.bf16 %v650, %v648
        %v669 = vpack.c.bf16 %v651, %v649
        %v670 = vpack.c.bf16 %v654, %v652
        %v671 = vpack.c.bf16 %v655, %v653
        %v672 = vld [vmem:[#allocation5] sm:$0xff]
        %v673 = vld [vmem:[#allocation5 + $0x8] sm:$0xff]
        %v674 = vld [vmem:[#allocation5 + $0x10] sm:$0xff]
        %v675 = vld [vmem:[#allocation5 + $0x18] sm:$0xff]
        %v676 = vld [vmem:[#allocation5 + $0x20] sm:$0xff]
        %v677 = vld [vmem:[#allocation5 + $0x28] sm:$0xff]
        %v678 = vld [vmem:[#allocation5 + $0x30] sm:$0xff]
        %v679 = vld [vmem:[#allocation5 + $0x38] sm:$0xff]
        %v680 = vld [vmem:[#allocation5 + $0x40] sm:$0xff]
        %v681 = vld [vmem:[#allocation5 + $0x48] sm:$0xff]
        %v682 = vld [vmem:[#allocation5 + $0x50] sm:$0xff]
        %v683 = vld [vmem:[#allocation5 + $0x58] sm:$0xff]
        %v684 = vld [vmem:[#allocation5 + $0x60] sm:$0xff]
        %v685 = vld [vmem:[#allocation5 + $0x68] sm:$0xff]
        %v686 = vld [vmem:[#allocation5 + $0x70] sm:$0xff]
        %v687 = vld [vmem:[#allocation5 + $0x78] sm:$0xff]
        %v688 = vld [vmem:[#allocation5 + $0x80] sm:$0xff]
        %v689 = vld [vmem:[#allocation5 + $0x88] sm:$0xff]
        %v690 = vld [vmem:[#allocation5 + $0x90] sm:$0xff]
        %v691 = vld [vmem:[#allocation5 + $0x98] sm:$0xff]
        %v692 = vld [vmem:[#allocation5 + $0xa0] sm:$0xff]
        %v693 = vld [vmem:[#allocation5 + $0xa8] sm:$0xff]
        %v694 = vld [vmem:[#allocation5 + $0xb0] sm:$0xff]
        %v695 = vld [vmem:[#allocation5 + $0xb8] sm:$0xff]
        %v696 = vld [vmem:[#allocation5 + $0xc0] sm:$0xff]
        %v697 = vld [vmem:[#allocation5 + $0xc8] sm:$0xff]
        %v698 = vld [vmem:[#allocation5 + $0xd0] sm:$0xff]
        %v699 = vld [vmem:[#allocation5 + $0xd8] sm:$0xff]
        %v700 = vld [vmem:[#allocation5 + $0xe0] sm:$0xff]
        %v701 = vld [vmem:[#allocation5 + $0xe8] sm:$0xff]
        %v702 = vld [vmem:[#allocation5 + $0xf0] sm:$0xff]
        %v703 = vld [vmem:[#allocation5 + $0xf8] sm:$0xff]
        %v704 = vld [vmem:[#allocation5 + $0x100] sm:$0xff]
        %v705 = vld [vmem:[#allocation5 + $0x108] sm:$0xff]
        %v706 = vld [vmem:[#allocation5 + $0x110] sm:$0xff]
        %v707 = vld [vmem:[#allocation5 + $0x118] sm:$0xff]
        %v708 = vld [vmem:[#allocation5 + $0x120] sm:$0xff]
        %v709 = vld [vmem:[#allocation5 + $0x128] sm:$0xff]
        %v710 = vld [vmem:[#allocation5 + $0x130] sm:$0xff]
        %v711 = vld [vmem:[#allocation5 + $0x138] sm:$0xff]
        %v712 = vld [vmem:[#allocation5 + $0x140] sm:$0xff]
        %v713 = vld [vmem:[#allocation5 + $0x148] sm:$0xff]
        %v714 = vld [vmem:[#allocation5 + $0x150] sm:$0xff]
        %v715 = vld [vmem:[#allocation5 + $0x158] sm:$0xff]
        %v716 = vld [vmem:[#allocation5 + $0x160] sm:$0xff]
        %v717 = vld [vmem:[#allocation5 + $0x168] sm:$0xff]
        %v718 = vld [vmem:[#allocation5 + $0x170] sm:$0xff]
        %v719 = vld [vmem:[#allocation5 + $0x178] sm:$0xff]
        %v720 = vld [vmem:[#allocation5 + $0x180] sm:$0xff]
        %v721 = vld [vmem:[#allocation5 + $0x188] sm:$0xff]
        %v722 = vld [vmem:[#allocation5 + $0x190] sm:$0xff]
        %v723 = vld [vmem:[#allocation5 + $0x198] sm:$0xff]
        %v724 = vld [vmem:[#allocation5 + $0x1a0] sm:$0xff]
        %v725 = vld [vmem:[#allocation5 + $0x1a8] sm:$0xff]
        %v726 = vld [vmem:[#allocation5 + $0x1b0] sm:$0xff]
        %v727 = vld [vmem:[#allocation5 + $0x1b8] sm:$0xff]
        %v728 = vld [vmem:[#allocation5 + $0x1c0] sm:$0xff]
        %v729 = vld [vmem:[#allocation5 + $0x1c8] sm:$0xff]
        %v730 = vld [vmem:[#allocation5 + $0x1d0] sm:$0xff]
        %v731 = vld [vmem:[#allocation5 + $0x1d8] sm:$0xff]
        %v732 = vld [vmem:[#allocation5 + $0x1e0] sm:$0xff]
        %v733 = vld [vmem:[#allocation5 + $0x1e8] sm:$0xff]
        %v734 = vld [vmem:[#allocation5 + $0x1f0] sm:$0xff]
        %v735 = vld [vmem:[#allocation5 + $0x1f8] sm:$0xff]
        %v736 = vld [vmem:[#allocation5 + $0x200] sm:$0xff]
        %v737 = vld [vmem:[#allocation5 + $0x208] sm:$0xff]
        %v738 = vld [vmem:[#allocation5 + $0x210] sm:$0xff]
        %v739 = vld [vmem:[#allocation5 + $0x218] sm:$0xff]
        %v740 = vld [vmem:[#allocation5 + $0x220] sm:$0xff]
        %v741 = vld [vmem:[#allocation5 + $0x228] sm:$0xff]
        %v742 = vld [vmem:[#allocation5 + $0x230] sm:$0xff]
        %v743 = vld [vmem:[#allocation5 + $0x238] sm:$0xff]
        %v744 = vld [vmem:[#allocation5 + $0x240] sm:$0xff]
        %v745 = vld [vmem:[#allocation5 + $0x248] sm:$0xff]
        %v746 = vld [vmem:[#allocation5 + $0x250] sm:$0xff]
        %v747 = vld [vmem:[#allocation5 + $0x258] sm:$0xff]
        %v748 = vld [vmem:[#allocation5 + $0x260] sm:$0xff]
        %v749 = vld [vmem:[#allocation5 + $0x268] sm:$0xff]
        %v750 = vld [vmem:[#allocation5 + $0x270] sm:$0xff]
        %v751 = vld [vmem:[#allocation5 + $0x278] sm:$0xff]
        %v752 = vld [vmem:[#allocation5 + $0x280] sm:$0xff]
        %v753 = vld [vmem:[#allocation5 + $0x288] sm:$0xff]
        %v754 = vld [vmem:[#allocation5 + $0x290] sm:$0xff]
        %v755 = vld [vmem:[#allocation5 + $0x298] sm:$0xff]
        %v756 = vld [vmem:[#allocation5 + $0x2a0] sm:$0xff]
        %v757 = vld [vmem:[#allocation5 + $0x2a8] sm:$0xff]
        %v758 = vld [vmem:[#allocation5 + $0x2b0] sm:$0xff]
        %v759 = vld [vmem:[#allocation5 + $0x2b8] sm:$0xff]
        %v760 = vld [vmem:[#allocation5 + $0x2c0] sm:$0xff]
        %v761 = vld [vmem:[#allocation5 + $0x2c8] sm:$0xff]
        %v762 = vld [vmem:[#allocation5 + $0x2d0] sm:$0xff]
        %v763 = vld [vmem:[#allocation5 + $0x2d8] sm:$0xff]
        %v764 = vld [vmem:[#allocation5 + $0x2e0] sm:$0xff]
        %v765 = vld [vmem:[#allocation5 + $0x2e8] sm:$0xff]
        %v766 = vld [vmem:[#allocation5 + $0x2f0] sm:$0xff]
        %v767 = vld [vmem:[#allocation5 + $0x2f8] sm:$0xff]
        %v768 = vld [vmem:[%s4] sm:$0x3f]
        %v770 = vlaneseq
        %v771 = vshrl.u32 %v770, 7
        %v772 = vsub.s32 0, %v771
        %v773 = vrot.slane %v768, %v772
        %v774 = vlaneseq
        %v775 = vshrl.u32 %v774, 7
        %v776 = vsub.s32 1, %v775
        %v777 = vrot.slane %v768, %v776
        %v778 = vlaneseq
        %v779 = vshrl.u32 %v778, 7
        %v780 = vsub.s32 2, %v779
        %v781 = vrot.slane %v768, %v780
        %v782 = vlaneseq
        %v783 = vshrl.u32 %v782, 7
        %v784 = vsub.s32 3, %v783
        %v785 = vrot.slane %v768, %v784
        %v786 = vlaneseq
        %v787 = vshrl.u32 %v786, 7
        %v788 = vsub.s32 4, %v787
        %v789 = vrot.slane %v768, %v788
        %v790 = vlaneseq
        %v791 = vshrl.u32 %v790, 7
        %v792 = vsub.s32 5, %v791
        %v793 = vrot.slane %v768, %v792
        %v896 = vunpack.c.l.b16 %v672
        %v897 = vunpack.c.h.b16 %v672
        %v898 = vunpack.c.l.b16 %v673
        %v899 = vunpack.c.h.b16 %v673
        %v900 = vunpack.c.l.b16 %v674
        %v901 = vunpack.c.h.b16 %v674
        %v902 = vunpack.c.l.b16 %v675
        %v903 = vunpack.c.h.b16 %v675
        %v904 = vunpack.c.l.b16 %v676
        %v905 = vunpack.c.h.b16 %v676
        %v906 = vunpack.c.l.b16 %v677
        %v907 = vunpack.c.h.b16 %v677
        %v908 = vunpack.c.l.b16 %v678
        %v909 = vunpack.c.h.b16 %v678
        %v910 = vunpack.c.l.b16 %v679
        %v911 = vunpack.c.h.b16 %v679
        %v912 = vunpack.c.l.b16 %v680
        %v913 = vunpack.c.h.b16 %v680
        %v914 = vunpack.c.l.b16 %v681
        %v915 = vunpack.c.h.b16 %v681
        %v916 = vunpack.c.l.b16 %v682
        %v917 = vunpack.c.h.b16 %v682
        %v918 = vunpack.c.l.b16 %v683
        %v919 = vunpack.c.h.b16 %v683
        %v920 = vunpack.c.l.b16 %v684
        %v921 = vunpack.c.h.b16 %v684
        %v922 = vunpack.c.l.b16 %v685
        %v923 = vunpack.c.h.b16 %v685
        %v924 = vunpack.c.l.b16 %v686
        %v925 = vunpack.c.h.b16 %v686
        %v926 = vunpack.c.l.b16 %v687
        %v927 = vunpack.c.h.b16 %v687
        %v928 = vunpack.c.l.b16 %v688
        %v929 = vunpack.c.h.b16 %v688
        %v930 = vunpack.c.l.b16 %v689
        %v931 = vunpack.c.h.b16 %v689
        %v932 = vunpack.c.l.b16 %v690
        %v933 = vunpack.c.h.b16 %v690
        %v934 = vunpack.c.l.b16 %v691
        %v935 = vunpack.c.h.b16 %v691
        %v936 = vunpack.c.l.b16 %v692
        %v937 = vunpack.c.h.b16 %v692
        %v938 = vunpack.c.l.b16 %v693
        %v939 = vunpack.c.h.b16 %v693
        %v940 = vunpack.c.l.b16 %v694
        %v941 = vunpack.c.h.b16 %v694
        %v942 = vunpack.c.l.b16 %v695
        %v943 = vunpack.c.h.b16 %v695
        %v944 = vunpack.c.l.b16 %v696
        %v945 = vunpack.c.h.b16 %v696
        %v946 = vunpack.c.l.b16 %v697
        %v947 = vunpack.c.h.b16 %v697
        %v948 = vunpack.c.l.b16 %v698
        %v949 = vunpack.c.h.b16 %v698
        %v950 = vunpack.c.l.b16 %v699
        %v951 = vunpack.c.h.b16 %v699
        %v952 = vunpack.c.l.b16 %v700
        %v953 = vunpack.c.h.b16 %v700
        %v954 = vunpack.c.l.b16 %v701
        %v955 = vunpack.c.h.b16 %v701
        %v956 = vunpack.c.l.b16 %v702
        %v957 = vunpack.c.h.b16 %v702
        %v958 = vunpack.c.l.b16 %v703
        %v959 = vunpack.c.h.b16 %v703
        %v960 = vunpack.c.l.b16 %v704
        %v961 = vunpack.c.h.b16 %v704
        %v962 = vunpack.c.l.b16 %v705
        %v963 = vunpack.c.h.b16 %v705
        %v964 = vunpack.c.l.b16 %v706
        %v965 = vunpack.c.h.b16 %v706
        %v966 = vunpack.c.l.b16 %v707
        %v967 = vunpack.c.h.b16 %v707
        %v968 = vunpack.c.l.b16 %v708
        %v969 = vunpack.c.h.b16 %v708
        %v970 = vunpack.c.l.b16 %v709
        %v971 = vunpack.c.h.b16 %v709
        %v972 = vunpack.c.l.b16 %v710
        %v973 = vunpack.c.h.b16 %v710
        %v974 = vunpack.c.l.b16 %v711
        %v975 = vunpack.c.h.b16 %v711
        %v976 = vunpack.c.l.b16 %v712
        %v977 = vunpack.c.h.b16 %v712
        %v978 = vunpack.c.l.b16 %v713
        %v979 = vunpack.c.h.b16 %v713
        %v980 = vunpack.c.l.b16 %v714
        %v981 = vunpack.c.h.b16 %v714
        %v982 = vunpack.c.l.b16 %v715
        %v983 = vunpack.c.h.b16 %v715
        %v984 = vunpack.c.l.b16 %v716
        %v985 = vunpack.c.h.b16 %v716
        %v986 = vunpack.c.l.b16 %v717
        %v987 = vunpack.c.h.b16 %v717
        %v988 = vunpack.c.l.b16 %v718
        %v989 = vunpack.c.h.b16 %v718
        %v990 = vunpack.c.l.b16 %v719
        %v991 = vunpack.c.h.b16 %v719
        %v992 = vunpack.c.l.b16 %v720
        %v993 = vunpack.c.h.b16 %v720
        %v994 = vunpack.c.l.b16 %v721
        %v995 = vunpack.c.h.b16 %v721
        %v996 = vunpack.c.l.b16 %v722
        %v997 = vunpack.c.h.b16 %v722
        %v998 = vunpack.c.l.b16 %v723
        %v999 = vunpack.c.h.b16 %v723
        %v1000 = vunpack.c.l.b16 %v724
        %v1001 = vunpack.c.h.b16 %v724
        %v1002 = vunpack.c.l.b16 %v725
        %v1003 = vunpack.c.h.b16 %v725
        %v1004 = vunpack.c.l.b16 %v726
        %v1005 = vunpack.c.h.b16 %v726
        %v1006 = vunpack.c.l.b16 %v727
        %v1007 = vunpack.c.h.b16 %v727
        %v1008 = vunpack.c.l.b16 %v728
        %v1009 = vunpack.c.h.b16 %v728
        %v1010 = vunpack.c.l.b16 %v729
        %v1011 = vunpack.c.h.b16 %v729
        %v1012 = vunpack.c.l.b16 %v730
        %v1013 = vunpack.c.h.b16 %v730
        %v1014 = vunpack.c.l.b16 %v731
        %v1015 = vunpack.c.h.b16 %v731
        %v1016 = vunpack.c.l.b16 %v732
        %v1017 = vunpack.c.h.b16 %v732
        %v1018 = vunpack.c.l.b16 %v733
        %v1019 = vunpack.c.h.b16 %v733
        %v1020 = vunpack.c.l.b16 %v734
        %v1021 = vunpack.c.h.b16 %v734
        %v1022 = vunpack.c.l.b16 %v735
        %v1023 = vunpack.c.h.b16 %v735
        %v1024 = vunpack.c.l.b16 %v736
        %v1025 = vunpack.c.h.b16 %v736
        %v1026 = vunpack.c.l.b16 %v737
        %v1027 = vunpack.c.h.b16 %v737
        %v1028 = vunpack.c.l.b16 %v738
        %v1029 = vunpack.c.h.b16 %v738
        %v1030 = vunpack.c.l.b16 %v739
        %v1031 = vunpack.c.h.b16 %v739
        %v1032 = vunpack.c.l.b16 %v740
        %v1033 = vunpack.c.h.b16 %v740
        %v1034 = vunpack.c.l.b16 %v741
        %v1035 = vunpack.c.h.b16 %v741
        %v1036 = vunpack.c.l.b16 %v742
        %v1037 = vunpack.c.h.b16 %v742
        %v1038 = vunpack.c.l.b16 %v743
        %v1039 = vunpack.c.h.b16 %v743
        %v1040 = vunpack.c.l.b16 %v744
        %v1041 = vunpack.c.h.b16 %v744
        %v1042 = vunpack.c.l.b16 %v745
        %v1043 = vunpack.c.h.b16 %v745
        %v1044 = vunpack.c.l.b16 %v746
        %v1045 = vunpack.c.h.b16 %v746
        %v1046 = vunpack.c.l.b16 %v747
        %v1047 = vunpack.c.h.b16 %v747
        %v1048 = vunpack.c.l.b16 %v748
        %v1049 = vunpack.c.h.b16 %v748
        %v1050 = vunpack.c.l.b16 %v749
        %v1051 = vunpack.c.h.b16 %v749
        %v1052 = vunpack.c.l.b16 %v750
        %v1053 = vunpack.c.h.b16 %v750
        %v1054 = vunpack.c.l.b16 %v751
        %v1055 = vunpack.c.h.b16 %v751
        %v1056 = vunpack.c.l.b16 %v752
        %v1057 = vunpack.c.h.b16 %v752
        %v1058 = vunpack.c.l.b16 %v753
        %v1059 = vunpack.c.h.b16 %v753
        %v1060 = vunpack.c.l.b16 %v754
        %v1061 = vunpack.c.h.b16 %v754
        %v1062 = vunpack.c.l.b16 %v755
        %v1063 = vunpack.c.h.b16 %v755
        %v1064 = vunpack.c.l.b16 %v756
        %v1065 = vunpack.c.h.b16 %v756
        %v1066 = vunpack.c.l.b16 %v757
        %v1067 = vunpack.c.h.b16 %v757
        %v1068 = vunpack.c.l.b16 %v758
        %v1069 = vunpack.c.h.b16 %v758
        %v1070 = vunpack.c.l.b16 %v759
        %v1071 = vunpack.c.h.b16 %v759
        %v1072 = vunpack.c.l.b16 %v760
        %v1073 = vunpack.c.h.b16 %v760
        %v1074 = vunpack.c.l.b16 %v761
        %v1075 = vunpack.c.h.b16 %v761
        %v1076 = vunpack.c.l.b16 %v762
        %v1077 = vunpack.c.h.b16 %v762
        %v1078 = vunpack.c.l.b16 %v763
        %v1079 = vunpack.c.h.b16 %v763
        %v1080 = vunpack.c.l.b16 %v764
        %v1081 = vunpack.c.h.b16 %v764
        %v1082 = vunpack.c.l.b16 %v765
        %v1083 = vunpack.c.h.b16 %v765
        %v1084 = vunpack.c.l.b16 %v766
        %v1085 = vunpack.c.h.b16 %v766
        %v1086 = vunpack.c.l.b16 %v767
        %v1087 = vunpack.c.h.b16 %v767
        %v1088 = vpack.c.b16 %v902, %v896
        %v1089 = vpack.c.b16 %v903, %v897
        %v1090 = vpack.c.b16 %v904, %v898
        %v1091 = vpack.c.b16 %v905, %v899
        %v1092 = vpack.c.b16 %v906, %v900
        %v1093 = vpack.c.b16 %v907, %v901
        %v1094 = vpack.c.b16 %v914, %v908
        %v1095 = vpack.c.b16 %v915, %v909
        %v1096 = vpack.c.b16 %v916, %v910
        %v1097 = vpack.c.b16 %v917, %v911
        %v1098 = vpack.c.b16 %v918, %v912
        %v1099 = vpack.c.b16 %v919, %v913
        %v1100 = vpack.c.b16 %v926, %v920
        %v1101 = vpack.c.b16 %v927, %v921
        %v1102 = vpack.c.b16 %v928, %v922
        %v1103 = vpack.c.b16 %v929, %v923
        %v1104 = vpack.c.b16 %v930, %v924
        %v1105 = vpack.c.b16 %v931, %v925
        %v1106 = vpack.c.b16 %v938, %v932
        %v1107 = vpack.c.b16 %v939, %v933
        %v1108 = vpack.c.b16 %v940, %v934
        %v1109 = vpack.c.b16 %v941, %v935
        %v1110 = vpack.c.b16 %v942, %v936
        %v1111 = vpack.c.b16 %v943, %v937
        %v1112 = vpack.c.b16 %v950, %v944
        %v1113 = vpack.c.b16 %v951, %v945
        %v1114 = vpack.c.b16 %v952, %v946
        %v1115 = vpack.c.b16 %v953, %v947
        %v1116 = vpack.c.b16 %v954, %v948
        %v1117 = vpack.c.b16 %v955, %v949
        %v1118 = vpack.c.b16 %v962, %v956
        %v1119 = vpack.c.b16 %v963, %v957
        %v1120 = vpack.c.b16 %v964, %v958
        %v1121 = vpack.c.b16 %v965, %v959
        %v1122 = vpack.c.b16 %v966, %v960
        %v1123 = vpack.c.b16 %v967, %v961
        %v1124 = vpack.c.b16 %v974, %v968
        %v1125 = vpack.c.b16 %v975, %v969
        %v1126 = vpack.c.b16 %v976, %v970
        %v1127 = vpack.c.b16 %v977, %v971
        %v1128 = vpack.c.b16 %v978, %v972
        %v1129 = vpack.c.b16 %v979, %v973
        %v1130 = vpack.c.b16 %v986, %v980
        %v1131 = vpack.c.b16 %v987, %v981
        %v1132 = vpack.c.b16 %v988, %v982
        %v1133 = vpack.c.b16 %v989, %v983
        %v1134 = vpack.c.b16 %v990, %v984
        %v1135 = vpack.c.b16 %v991, %v985
        %v1136 = vpack.c.b16 %v998, %v992
        %v1137 = vpack.c.b16 %v999, %v993
        %v1138 = vpack.c.b16 %v1000, %v994
        %v1139 = vpack.c.b16 %v1001, %v995
        %v1140 = vpack.c.b16 %v1002, %v996
        %v1141 = vpack.c.b16 %v1003, %v997
        %v1142 = vpack.c.b16 %v1010, %v1004
        %v1143 = vpack.c.b16 %v1011, %v1005
        %v1144 = vpack.c.b16 %v1012, %v1006
        %v1145 = vpack.c.b16 %v1013, %v1007
        %v1146 = vpack.c.b16 %v1014, %v1008
        %v1147 = vpack.c.b16 %v1015, %v1009
        %v1148 = vpack.c.b16 %v1022, %v1016
        %v1149 = vpack.c.b16 %v1023, %v1017
        %v1150 = vpack.c.b16 %v1024, %v1018
        %v1151 = vpack.c.b16 %v1025, %v1019
        %v1152 = vpack.c.b16 %v1026, %v1020
        %v1153 = vpack.c.b16 %v1027, %v1021
        %v1154 = vpack.c.b16 %v1034, %v1028
        %v1155 = vpack.c.b16 %v1035, %v1029
        %v1156 = vpack.c.b16 %v1036, %v1030
        %v1157 = vpack.c.b16 %v1037, %v1031
        %v1158 = vpack.c.b16 %v1038, %v1032
        %v1159 = vpack.c.b16 %v1039, %v1033
        %v1160 = vpack.c.b16 %v1046, %v1040
        %v1161 = vpack.c.b16 %v1047, %v1041
        %v1162 = vpack.c.b16 %v1048, %v1042
        %v1163 = vpack.c.b16 %v1049, %v1043
        %v1164 = vpack.c.b16 %v1050, %v1044
        %v1165 = vpack.c.b16 %v1051, %v1045
        %v1166 = vpack.c.b16 %v1058, %v1052
        %v1167 = vpack.c.b16 %v1059, %v1053
        %v1168 = vpack.c.b16 %v1060, %v1054
        %v1169 = vpack.c.b16 %v1061, %v1055
        %v1170 = vpack.c.b16 %v1062, %v1056
        %v1171 = vpack.c.b16 %v1063, %v1057
        %v1172 = vpack.c.b16 %v1070, %v1064
        %v1173 = vpack.c.b16 %v1071, %v1065
        %v1174 = vpack.c.b16 %v1072, %v1066
        %v1175 = vpack.c.b16 %v1073, %v1067
        %v1176 = vpack.c.b16 %v1074, %v1068
        %v1177 = vpack.c.b16 %v1075, %v1069
        %v1178 = vpack.c.b16 %v1082, %v1076
        %v1179 = vpack.c.b16 %v1083, %v1077
        %v1180 = vpack.c.b16 %v1084, %v1078
        %v1181 = vpack.c.b16 %v1085, %v1079
        %v1182 = vpack.c.b16 %v1086, %v1080
        %v1183 = vpack.c.b16 %v1087, %v1081
        %1280 = vmatprep.subr.bf16.mxu0 %v1089
        %1281 = vmatpush1.bf16.msra.mxu0 %v1088
        %1282 = vmatprep.subr.bf16.mxu0 %v1095
        %1283 = vmatpush1.bf16.msra.mxu0 %v1094
        %1284 = vmatprep.subr.bf16.mxu0 %v1101
        %1285 = vmatpush1.bf16.msra.mxu0 %v1100
        %1286 = vmatprep.subr.bf16.mxu0 %v1107
        %1287 = vmatpush1.bf16.msra.mxu0 %v1106
        %1288 = vmatprep.subr.bf16.mxu0 %v1113
        %1289 = vmatpush1.bf16.msra.mxu0 %v1112
        %1290 = vmatprep.subr.bf16.mxu0 %v1119
        %1291 = vmatpush1.bf16.msra.mxu0 %v1118
        %1292 = vmatprep.subr.bf16.mxu0 %v1125
        %1293 = vmatpush1.bf16.msra.mxu0 %v1124
        %1294 = vmatprep.subr.bf16.mxu0 %v1131
        %1295 = vmatpush1.bf16.msra.mxu0 %v1130
        %1296 = vmatprep.subr.bf16.mxu0 %v1137
        %1297 = vmatpush1.bf16.msra.mxu0 %v1136
        %1298 = vmatprep.subr.bf16.mxu0 %v1143
        %1299 = vmatpush1.bf16.msra.mxu0 %v1142
        %1300 = vmatprep.subr.bf16.mxu0 %v1149
        %1301 = vmatpush1.bf16.msra.mxu0 %v1148
        %1302 = vmatprep.subr.bf16.mxu0 %v1155
        %1303 = vmatpush1.bf16.msra.mxu0 %v1154
        %1304 = vmatprep.subr.bf16.mxu0 %v1161
        %1305 = vmatpush1.bf16.msra.mxu0 %v1160
        %1306 = vmatprep.subr.bf16.mxu0 %v1167
        %1307 = vmatpush1.bf16.msra.mxu0 %v1166
        %1308 = vmatprep.subr.bf16.mxu0 %v1173
        %1309 = vmatpush1.bf16.msra.mxu0 %v1172
        %1310 = vmatprep.subr.bf16.mxu0 %v1179
        %1311 = vmatpush1.bf16.msra.mxu0 %v1178
        %1312 = vmatprep.mubr.bf16.mxu0 %v657
        %1313 = vmatmul.mubr.bf16.gmra.mrb[0].mxu0 %v656
        %v1314 = vpop.f32.mrb[0].mxu0
        %v1315 = vadd.f32 %v773, %v1314
        %v1316 = vpop.f32.mrb[0].mxu0
        %v1317 = vadd.f32 %v777, %v1316
        %v1318 = vpop.f32.mrb[0].mxu0
        %v1319 = vadd.f32 %v773, %v1318
        %v1320 = vpop.f32.mrb[0].mxu0
        %v1321 = vadd.f32 %v777, %v1320
        %1322 = vmatprep.mubr.bf16.mxu0 %v659
        %1323 = vmatmul.mubr.bf16.gmra.mrb[0].mxu0 %v658
        %v1324 = vpop.f32.mrb[0].mxu0
        %v1325 = vadd.f32 %v773, %v1324
        %v1326 = vpop.f32.mrb[0].mxu0
        %v1327 = vadd.f32 %v777, %v1326
        %v1328 = vpop.f32.mrb[0].mxu0
        %v1329 = vadd.f32 %v773, %v1328
        %v1330 = vpop.f32.mrb[0].mxu0
        %v1331 = vadd.f32 %v777, %v1330
        %1332 = vmatprep.mubr.bf16.mxu0 %v661
        %1333 = vmatmul.mubr.bf16.gmra.mrb[0].mxu0 %v660
        %v1334 = vpop.f32.mrb[0].mxu0
        %v1335 = vadd.f32 %v773, %v1334
        %v1336 = vpop.f32.mrb[0].mxu0
        %v1337 = vadd.f32 %v777, %v1336
        %v1338 = vpop.f32.mrb[0].mxu0
        %v1339 = vadd.f32 %v773, %v1338
        %v1340 = vpop.f32.mrb[0].mxu0
        %v1341 = vadd.f32 %v777, %v1340
        %1342 = vmatprep.mubr.bf16.mxu0 %v663
        %1343 = vmatmul.mubr.bf16.gmra.mrb[0].mxu0 %v662
        %v1344 = vpop.f32.mrb[0].mxu0
        %v1345 = vadd.f32 %v773, %v1344
        %v1346 = vpop.f32.mrb[0].mxu0
        %v1347 = vadd.f32 %v777, %v1346
        %v1348 = vpop.f32.mrb[0].mxu0
        %v1349 = vadd.f32 %v773, %v1348
        %v1350 = vpop.f32.mrb[0].mxu0
        %v1351 = vadd.f32 %v777, %v1350
        %1352 = vmatprep.mubr.bf16.mxu0 %v665
        %1353 = vmatmul.mubr.bf16.gmra.mrb[0].mxu0 %v664
        %v1354 = vpop.f32.mrb[0].mxu0
        %v1355 = vadd.f32 %v773, %v1354
        %v1356 = vpop.f32.mrb[0].mxu0
        %v1357 = vadd.f32 %v777, %v1356
        %v1358 = vpop.f32.mrb[0].mxu0
        %v1359 = vadd.f32 %v773, %v1358
        %v1360 = vpop.f32.mrb[0].mxu0
        %v1361 = vadd.f32 %v777, %v1360
        %1362 = vmatprep.mubr.bf16.mxu0 %v667
        %1363 = vmatmul.mubr.bf16.gmra.mrb[0].mxu0 %v666
        %v1364 = vpop.f32.mrb[0].mxu0
        %v1365 = vadd.f32 %v773, %v1364
        %v1366 = vpop.f32.mrb[0].mxu0
        %v1367 = vadd.f32 %v777, %v1366
        %v1368 = vpop.f32.mrb[0].mxu0
        %v1369 = vadd.f32 %v773, %v1368
        %v1370 = vpop.f32.mrb[0].mxu0
        %v1371 = vadd.f32 %v777, %v1370
        %1372 = vmatprep.mubr.bf16.mxu0 %v669
        %1373 = vmatmul.mubr.bf16.gmra.mrb[0].mxu0 %v668
        %v1374 = vpop.f32.mrb[0].mxu0
        %v1375 = vadd.f32 %v773, %v1374
        %v1376 = vpop.f32.mrb[0].mxu0
        %v1377 = vadd.f32 %v777, %v1376
        %v1378 = vpop.f32.mrb[0].mxu0
        %v1379 = vadd.f32 %v773, %v1378
        %v1380 = vpop.f32.mrb[0].mxu0
        %v1381 = vadd.f32 %v777, %v1380
        %1382 = vmatprep.mubr.bf16.mxu0 %v671
        %1383 = vmatmul.mubr.bf16.gmra.mrb[0].mxu0 %v670
        %v1384 = vpop.f32.mrb[0].mxu0
        %v1385 = vadd.f32 %v773, %v1384
        %v1386 = vpop.f32.mrb[0].mxu0
        %v1387 = vadd.f32 %v777, %v1386
        %v1388 = vpop.f32.mrb[0].mxu0
        %v1389 = vadd.f32 %v773, %v1388
        %v1390 = vpop.f32.mrb[0].mxu0
        %v1391 = vadd.f32 %v777, %v1390
        %1392 = vdwg.mxu0
        %1393 = vmatprep.subr.bf16.mxu0 %v1091
        %1394 = vmatpush1.bf16.msra.mxu0 %v1090
        %1395 = vmatprep.subr.bf16.mxu0 %v1097
        %1396 = vmatpush1.bf16.msra.mxu0 %v1096
        %1397 = vmatprep.subr.bf16.mxu0 %v1103
        %1398 = vmatpush1.bf16.msra.mxu0 %v1102
        %1399 = vmatprep.subr.bf16.mxu0 %v1109
        %1400 = vmatpush1.bf16.msra.mxu0 %v1108
        %1401 = vmatprep.subr.bf16.mxu0 %v1115
        %1402 = vmatpush1.bf16.msra.mxu0 %v1114
        %1403 = vmatprep.subr.bf16.mxu0 %v1121
        %1404 = vmatpush1.bf16.msra.mxu0 %v1120
        %1405 = vmatprep.subr.bf16.mxu0 %v1127
        %1406 = vmatpush1.bf16.msra.mxu0 %v1126
        %1407 = vmatprep.subr.bf16.mxu0 %v1133
        %1408 = vmatpush1.bf16.msra.mxu0 %v1132
        %1409 = vmatprep.subr.bf16.mxu0 %v1139
        %1410 = vmatpush1.bf16.msra.mxu0 %v1138
        %1411 = vmatprep.subr.bf16.mxu0 %v1145
        %1412 = vmatpush1.bf16.msra.mxu0 %v1144
        %1413 = vmatprep.subr.bf16.mxu0 %v1151
        %1414 = vmatpush1.bf16.msra.mxu0 %v1150
        %1415 = vmatprep.subr.bf16.mxu0 %v1157
        %1416 = vmatpush1.bf16.msra.mxu0 %v1156
        %1417 = vmatprep.subr.bf16.mxu0 %v1163
        %1418 = vmatpush1.bf16.msra.mxu0 %v1162
        %1419 = vmatprep.subr.bf16.mxu0 %v1169
        %1420 = vmatpush1.bf16.msra.mxu0 %v1168
        %1421 = vmatprep.subr.bf16.mxu0 %v1175
        %1422 = vmatpush1.bf16.msra.mxu0 %v1174
        %1423 = vmatprep.subr.bf16.mxu0 %v1181
        %1424 = vmatpush1.bf16.msra.mxu0 %v1180
        %1425 = vmatprep.mubr.bf16.mxu0 %v657
        %1426 = vmatmul.mubr.bf16.gmra.mrb[0].mxu0 %v656
        %v1427 = vpop.f32.mrb[0].mxu0
        %v1428 = vadd.f32 %v781, %v1427
        %v1429 = vpop.f32.mrb[0].mxu0
        %v1430 = vadd.f32 %v785, %v1429
        %v1431 = vpop.f32.mrb[0].mxu0
        %v1432 = vadd.f32 %v781, %v1431
        %v1433 = vpop.f32.mrb[0].mxu0
        %v1434 = vadd.f32 %v785, %v1433
        %1435 = vmatprep.mubr.bf16.mxu0 %v659
        %1436 = vmatmul.mubr.bf16.gmra.mrb[0].mxu0 %v658
        %v1437 = vpop.f32.mrb[0].mxu0
        %v1438 = vadd.f32 %v781, %v1437
        %v1439 = vpop.f32.mrb[0].mxu0
        %v1440 = vadd.f32 %v785, %v1439
        %v1441 = vpop.f32.mrb[0].mxu0
        %v1442 = vadd.f32 %v781, %v1441
        %v1443 = vpop.f32.mrb[0].mxu0
        %v1444 = vadd.f32 %v785, %v1443
        %1445 = vmatprep.mubr.bf16.mxu0 %v661
        %1446 = vmatmul.mubr.bf16.gmra.mrb[0].mxu0 %v660
        %v1447 = vpop.f32.mrb[0].mxu0
        %v1448 = vadd.f32 %v781, %v1447
        %v1449 = vpop.f32.mrb[0].mxu0
        %v1450 = vadd.f32 %v785, %v1449
        %v1451 = vpop.f32.mrb[0].mxu0
        %v1452 = vadd.f32 %v781, %v1451
        %v1453 = vpop.f32.mrb[0].mxu0
        %v1454 = vadd.f32 %v785, %v1453
        %1455 = vmatprep.mubr.bf16.mxu0 %v663
        %1456 = vmatmul.mubr.bf16.gmra.mrb[0].mxu0 %v662
        %v1457 = vpop.f32.mrb[0].mxu0
        %v1458 = vadd.f32 %v781, %v1457
        %v1459 = vpop.f32.mrb[0].mxu0
        %v1460 = vadd.f32 %v785, %v1459
        %v1461 = vpop.f32.mrb[0].mxu0
        %v1462 = vadd.f32 %v781, %v1461
        %v1463 = vpop.f32.mrb[0].mxu0
        %v1464 = vadd.f32 %v785, %v1463
        %1465 = vmatprep.mubr.bf16.mxu0 %v665
        %1466 = vmatmul.mubr.bf16.gmra.mrb[0].mxu0 %v664
        %v1467 = vpop.f32.mrb[0].mxu0
        %v1468 = vadd.f32 %v781, %v1467
        %v1469 = vpop.f32.mrb[0].mxu0
        %v1470 = vadd.f32 %v785, %v1469
        %v1471 = vpop.f32.mrb[0].mxu0
        %v1472 = vadd.f32 %v781, %v1471
        %v1473 = vpop.f32.mrb[0].mxu0
        %v1474 = vadd.f32 %v785, %v1473
        %1475 = vmatprep.mubr.bf16.mxu0 %v667
        %1476 = vmatmul.mubr.bf16.gmra.mrb[0].mxu0 %v666
        %v1477 = vpop.f32.mrb[0].mxu0
        %v1478 = vadd.f32 %v781, %v1477
        %v1479 = vpop.f32.mrb[0].mxu0
        %v1480 = vadd.f32 %v785, %v1479
        %v1481 = vpop.f32.mrb[0].mxu0
        %v1482 = vadd.f32 %v781, %v1481
        %v1483 = vpop.f32.mrb[0].mxu0
        %v1484 = vadd.f32 %v785, %v1483
        %1485 = vmatprep.mubr.bf16.mxu0 %v669
        %1486 = vmatmul.mubr.bf16.gmra.mrb[0].mxu0 %v668
        %v1487 = vpop.f32.mrb[0].mxu0
        %v1488 = vadd.f32 %v781, %v1487
        %v1489 = vpop.f32.mrb[0].mxu0
        %v1490 = vadd.f32 %v785, %v1489
        %v1491 = vpop.f32.mrb[0].mxu0
        %v1492 = vadd.f32 %v781, %v1491
        %v1493 = vpop.f32.mrb[0].mxu0
        %v1494 = vadd.f32 %v785, %v1493
        %1495 = vmatprep.mubr.bf16.mxu0 %v671
        %1496 = vmatmul.mubr.bf16.gmra.mrb[0].mxu0 %v670
        %v1497 = vpop.f32.mrb[0].mxu0
        %v1498 = vadd.f32 %v781, %v1497
        %v1499 = vpop.f32.mrb[0].mxu0
        %v1500 = vadd.f32 %v785, %v1499
        %v1501 = vpop.f32.mrb[0].mxu0
        %v1502 = vadd.f32 %v781, %v1501
        %v1503 = vpop.f32.mrb[0].mxu0
        %v1504 = vadd.f32 %v785, %v1503
        %1505 = vdwg.mxu0
        %1506 = vmatprep.subr.bf16.mxu0 %v1093
        %1507 = vmatpush1.bf16.msra.mxu0 %v1092
        %1508 = vmatprep.subr.bf16.mxu0 %v1099
        %1509 = vmatpush1.bf16.msra.mxu0 %v1098
        %1510 = vmatprep.subr.bf16.mxu0 %v1105
        %1511 = vmatpush1.bf16.msra.mxu0 %v1104
        %1512 = vmatprep.subr.bf16.mxu0 %v1111
        %1513 = vmatpush1.bf16.msra.mxu0 %v1110
        %1514 = vmatprep.subr.bf16.mxu0 %v1117
        %1515 = vmatpush1.bf16.msra.mxu0 %v1116
        %1516 = vmatprep.subr.bf16.mxu0 %v1123
        %1517 = vmatpush1.bf16.msra.mxu0 %v1122
        %1518 = vmatprep.subr.bf16.mxu0 %v1129
        %1519 = vmatpush1.bf16.msra.mxu0 %v1128
        %1520 = vmatprep.subr.bf16.mxu0 %v1135
        %1521 = vmatpush1.bf16.msra.mxu0 %v1134
        %1522 = vmatprep.subr.bf16.mxu0 %v1141
        %1523 = vmatpush1.bf16.msra.mxu0 %v1140
        %1524 = vmatprep.subr.bf16.mxu0 %v1147
        %1525 = vmatpush1.bf16.msra.mxu0 %v1146
        %1526 = vmatprep.subr.bf16.mxu0 %v1153
        %1527 = vmatpush1.bf16.msra.mxu0 %v1152
        %1528 = vmatprep.subr.bf16.mxu0 %v1159
        %1529 = vmatpush1.bf16.msra.mxu0 %v1158
        %1530 = vmatprep.subr.bf16.mxu0 %v1165
        %1531 = vmatpush1.bf16.msra.mxu0 %v1164
        %1532 = vmatprep.subr.bf16.mxu0 %v1171
        %1533 = vmatpush1.bf16.msra.mxu0 %v1170
        %1534 = vmatprep.subr.bf16.mxu0 %v1177
        %1535 = vmatpush1.bf16.msra.mxu0 %v1176
        %1536 = vmatprep.subr.bf16.mxu0 %v1183
        %1537 = vmatpush1.bf16.msra.mxu0 %v1182
        %1538 = vmatprep.mubr.bf16.mxu0 %v657
        %1539 = vmatmul.mubr.bf16.gmra.mrb[0].mxu0 %v656
        %v1540 = vpop.f32.mrb[0].mxu0
        %v1541 = vadd.f32 %v789, %v1540
        %v1542 = vpop.f32.mrb[0].mxu0
        %v1543 = vadd.f32 %v793, %v1542
        %v1544 = vpop.f32.mrb[0].mxu0
        %v1545 = vadd.f32 %v789, %v1544
        %v1546 = vpop.f32.mrb[0].mxu0
        %v1547 = vadd.f32 %v793, %v1546
        %1548 = vmatprep.mubr.bf16.mxu0 %v659
        %1549 = vmatmul.mubr.bf16.gmra.mrb[0].mxu0 %v658
        %v1550 = vpop.f32.mrb[0].mxu0
        %v1551 = vadd.f32 %v789, %v1550
        %v1552 = vpop.f32.mrb[0].mxu0
        %v1553 = vadd.f32 %v793, %v1552
        %v1554 = vpop.f32.mrb[0].mxu0
        %v1555 = vadd.f32 %v789, %v1554
        %v1556 = vpop.f32.mrb[0].mxu0
        %v1557 = vadd.f32 %v793, %v1556
        %1558 = vmatprep.mubr.bf16.mxu0 %v661
        %1559 = vmatmul.mubr.bf16.gmra.mrb[0].mxu0 %v660
        %v1560 = vpop.f32.mrb[0].mxu0
        %v1561 = vadd.f32 %v789, %v1560
        %v1562 = vpop.f32.mrb[0].mxu0
        %v1563 = vadd.f32 %v793, %v1562
        %v1564 = vpop.f32.mrb[0].mxu0
        %v1565 = vadd.f32 %v789, %v1564
        %v1566 = vpop.f32.mrb[0].mxu0
        %v1567 = vadd.f32 %v793, %v1566
        %1568 = vmatprep.mubr.bf16.mxu0 %v663
        %1569 = vmatmul.mubr.bf16.gmra.mrb[0].mxu0 %v662
        %v1570 = vpop.f32.mrb[0].mxu0
        %v1571 = vadd.f32 %v789, %v1570
        %v1572 = vpop.f32.mrb[0].mxu0
        %v1573 = vadd.f32 %v793, %v1572
        %v1574 = vpop.f32.mrb[0].mxu0
        %v1575 = vadd.f32 %v789, %v1574
        %v1576 = vpop.f32.mrb[0].mxu0
        %v1577 = vadd.f32 %v793, %v1576
        %1578 = vmatprep.mubr.bf16.mxu0 %v665
        %1579 = vmatmul.mubr.bf16.gmra.mrb[0].mxu0 %v664
        %v1580 = vpop.f32.mrb[0].mxu0
        %v1581 = vadd.f32 %v789, %v1580
        %v1582 = vpop.f32.mrb[0].mxu0
        %v1583 = vadd.f32 %v793, %v1582
        %v1584 = vpop.f32.mrb[0].mxu0
        %v1585 = vadd.f32 %v789, %v1584
        %v1586 = vpop.f32.mrb[0].mxu0
        %v1587 = vadd.f32 %v793, %v1586
        %1588 = vmatprep.mubr.bf16.mxu0 %v667
        %1589 = vmatmul.mubr.bf16.gmra.mrb[0].mxu0 %v666
        %v1590 = vpop.f32.mrb[0].mxu0
        %v1591 = vadd.f32 %v789, %v1590
        %v1592 = vpop.f32.mrb[0].mxu0
        %v1593 = vadd.f32 %v793, %v1592
        %v1594 = vpop.f32.mrb[0].mxu0
        %v1595 = vadd.f32 %v789, %v1594
        %v1596 = vpop.f32.mrb[0].mxu0
        %v1597 = vadd.f32 %v793, %v1596
        %1598 = vmatprep.mubr.bf16.mxu0 %v669
        %1599 = vmatmul.mubr.bf16.gmra.mrb[0].mxu0 %v668
        %v1600 = vpop.f32.mrb[0].mxu0
        %v1601 = vadd.f32 %v789, %v1600
        %v1602 = vpop.f32.mrb[0].mxu0
        %v1603 = vadd.f32 %v793, %v1602
        %v1604 = vpop.f32.mrb[0].mxu0
        %v1605 = vadd.f32 %v789, %v1604
        %v1606 = vpop.f32.mrb[0].mxu0
        %v1607 = vadd.f32 %v793, %v1606
        %1608 = vmatprep.mubr.bf16.mxu0 %v671
        %1609 = vmatmul.mubr.bf16.gmra.mrb[0].mxu0 %v670
        %v1610 = vpop.f32.mrb[0].mxu0
        %v1611 = vadd.f32 %v789, %v1610
        %v1612 = vpop.f32.mrb[0].mxu0
        %v1613 = vadd.f32 %v793, %v1612
        %v1614 = vpop.f32.mrb[0].mxu0
        %v1615 = vadd.f32 %v789, %v1614
        %v1616 = vpop.f32.mrb[0].mxu0
        %v1617 = vadd.f32 %v793, %v1616
        %1618 = vdwg.mxu0
        %v1619 = vmul.f32 %v1315, 0.088388346
        %v1620 = vmul.f32 %v1317, 0.088388346
        %v1621 = vmul.f32 %v1319, 0.088388346
        %v1622 = vmul.f32 %v1321, 0.088388346
        %v1623 = vmul.f32 %v1325, 0.088388346
        %v1624 = vmul.f32 %v1327, 0.088388346
        %v1625 = vmul.f32 %v1329, 0.088388346
        %v1626 = vmul.f32 %v1331, 0.088388346
        %v1627 = vmul.f32 %v1335, 0.088388346
        %v1628 = vmul.f32 %v1337, 0.088388346
        %v1629 = vmul.f32 %v1339, 0.088388346
        %v1630 = vmul.f32 %v1341, 0.088388346
        %v1631 = vmul.f32 %v1345, 0.088388346
        %v1632 = vmul.f32 %v1347, 0.088388346
        %v1633 = vmul.f32 %v1349, 0.088388346
        %v1634 = vmul.f32 %v1351, 0.088388346
        %v1635 = vmul.f32 %v1355, 0.088388346
        %v1636 = vmul.f32 %v1357, 0.088388346
        %v1637 = vmul.f32 %v1359, 0.088388346
        %v1638 = vmul.f32 %v1361, 0.088388346
        %v1639 = vmul.f32 %v1365, 0.088388346
        %v1640 = vmul.f32 %v1367, 0.088388346
        %v1641 = vmul.f32 %v1369, 0.088388346
        %v1642 = vmul.f32 %v1371, 0.088388346
        %v1643 = vmul.f32 %v1375, 0.088388346
        %v1644 = vmul.f32 %v1377, 0.088388346
        %v1645 = vmul.f32 %v1379, 0.088388346
        %v1646 = vmul.f32 %v1381, 0.088388346
        %v1647 = vmul.f32 %v1385, 0.088388346
        %v1648 = vmul.f32 %v1387, 0.088388346
        %v1649 = vmul.f32 %v1389, 0.088388346
        %v1650 = vmul.f32 %v1391, 0.088388346
        %v1651 = vpack.c.bf16 %v1621, %v1619
        %v1652 = vpack.c.bf16 %v1622, %v1620
        %v1653 = vpack.c.bf16 %v1625, %v1623
        %v1654 = vpack.c.bf16 %v1626, %v1624
        %v1655 = vpack.c.bf16 %v1629, %v1627
        %v1656 = vpack.c.bf16 %v1630, %v1628
        %v1657 = vpack.c.bf16 %v1633, %v1631
        %v1658 = vpack.c.bf16 %v1634, %v1632
        %v1659 = vpack.c.bf16 %v1637, %v1635
        %v1660 = vpack.c.bf16 %v1638, %v1636
        %v1661 = vpack.c.bf16 %v1641, %v1639
        %v1662 = vpack.c.bf16 %v1642, %v1640
        %v1663 = vpack.c.bf16 %v1645, %v1643
        %v1664 = vpack.c.bf16 %v1646, %v1644
        %v1665 = vpack.c.bf16 %v1649, %v1647
        %v1666 = vpack.c.bf16 %v1650, %v1648
        %v1683 = vunpack.c.l.b16 %v1651
        %v1684 = vunpack.c.l.b16 %v1652
        %v1685 = vunpack.c.h.b16 %v1651
        %v1686 = vunpack.c.h.b16 %v1652
        %v1687 = vunpack.c.l.b16 %v1653
        %v1688 = vunpack.c.l.b16 %v1654
        %v1689 = vunpack.c.h.b16 %v1653
        %v1690 = vunpack.c.h.b16 %v1654
        %v1691 = vunpack.c.l.b16 %v1655
        %v1692 = vunpack.c.l.b16 %v1656
        %v1693 = vunpack.c.h.b16 %v1655
        %v1694 = vunpack.c.h.b16 %v1656
        %v1695 = vunpack.c.l.b16 %v1657
        %v1696 = vunpack.c.l.b16 %v1658
        %v1697 = vunpack.c.h.b16 %v1657
        %v1698 = vunpack.c.h.b16 %v1658
        %v1699 = vunpack.c.l.b16 %v1659
        %v1700 = vunpack.c.l.b16 %v1660
        %v1701 = vunpack.c.h.b16 %v1659
        %v1702 = vunpack.c.h.b16 %v1660
        %v1703 = vunpack.c.l.b16 %v1661
        %v1704 = vunpack.c.l.b16 %v1662
        %v1705 = vunpack.c.h.b16 %v1661
        %v1706 = vunpack.c.h.b16 %v1662
        %v1707 = vunpack.c.l.b16 %v1663
        %v1708 = vunpack.c.l.b16 %v1664
        %v1709 = vunpack.c.h.b16 %v1663
        %v1710 = vunpack.c.h.b16 %v1664
        %v1711 = vunpack.c.l.b16 %v1665
        %v1712 = vunpack.c.l.b16 %v1666
        %v1713 = vunpack.c.h.b16 %v1665
        %v1714 = vunpack.c.h.b16 %v1666
        %v1715 = vpack.c.b16 %v1684, %v1683
        %v1716 = vpack.c.b16 %v1686, %v1685
        %v1717 = vpack.c.b16 %v1688, %v1687
        %v1718 = vpack.c.b16 %v1690, %v1689
        %v1719 = vpack.c.b16 %v1692, %v1691
        %v1720 = vpack.c.b16 %v1694, %v1693
        %v1721 = vpack.c.b16 %v1696, %v1695
        %v1722 = vpack.c.b16 %v1698, %v1697
        %v1723 = vpack.c.b16 %v1700, %v1699
        %v1724 = vpack.c.b16 %v1702, %v1701
        %v1725 = vpack.c.b16 %v1704, %v1703
        %v1726 = vpack.c.b16 %v1706, %v1705
        %v1727 = vpack.c.b16 %v1708, %v1707
        %v1728 = vpack.c.b16 %v1710, %v1709
        %v1729 = vpack.c.b16 %v1712, %v1711
        %v1730 = vpack.c.b16 %v1714, %v1713
        %1747 = vst [vmem:[%s276] sm:$0xff] %v1715
        %1748 = vst [vmem:[%s276 + $0x18] sm:$0xff] %v1716
        %1749 = vst [vmem:[%s276 + $0x30] sm:$0xff] %v1717
        %1750 = vst [vmem:[%s276 + $0x48] sm:$0xff] %v1718
        %1751 = vst [vmem:[%s276 + $0x60] sm:$0xff] %v1719
        %1752 = vst [vmem:[%s276 + $0x78] sm:$0xff] %v1720
        %1753 = vst [vmem:[%s276 + $0x90] sm:$0xff] %v1721
        %1754 = vst [vmem:[%s276 + $0xa8] sm:$0xff] %v1722
        %1755 = vst [vmem:[%s276 + $0xc0] sm:$0xff] %v1723
        %1756 = vst [vmem:[%s276 + $0xd8] sm:$0xff] %v1724
        %1757 = vst [vmem:[%s276 + $0xf0] sm:$0xff] %v1725
        %1758 = vst [vmem:[%s276 + $0x108] sm:$0xff] %v1726
        %1759 = vst [vmem:[%s276 + $0x120] sm:$0xff] %v1727
        %1760 = vst [vmem:[%s276 + $0x138] sm:$0xff] %v1728
        %1761 = vst [vmem:[%s276 + $0x150] sm:$0xff] %v1729
        %1762 = vst [vmem:[%s276 + $0x168] sm:$0xff] %v1730
        %v1763 = vpack.c.bf16 %v1432, %v1428
        %v1764 = vpack.c.bf16 %v1434, %v1430
        %v1765 = vpack.c.bf16 %v1545, %v1541
        %v1766 = vpack.c.bf16 %v1547, %v1543
        %v1767 = vpack.c.bf16 %v1442, %v1438
        %v1768 = vpack.c.bf16 %v1444, %v1440
        %v1769 = vpack.c.bf16 %v1555, %v1551
        %v1770 = vpack.c.bf16 %v1557, %v1553
        %v1771 = vpack.c.bf16 %v1452, %v1448
        %v1772 = vpack.c.bf16 %v1454, %v1450
        %v1773 = vpack.c.bf16 %v1565, %v1561
        %v1774 = vpack.c.bf16 %v1567, %v1563
        %v1775 = vpack.c.bf16 %v1462, %v1458
        %v1776 = vpack.c.bf16 %v1464, %v1460
        %v1777 = vpack.c.bf16 %v1575, %v1571
        %v1778 = vpack.c.bf16 %v1577, %v1573
        %v1779 = vpack.c.bf16 %v1472, %v1468
        %v1780 = vpack.c.bf16 %v1474, %v1470
        %v1781 = vpack.c.bf16 %v1585, %v1581
        %v1782 = vpack.c.bf16 %v1587, %v1583
        %v1783 = vpack.c.bf16 %v1482, %v1478
        %v1784 = vpack.c.bf16 %v1484, %v1480
        %v1785 = vpack.c.bf16 %v1595, %v1591
        %v1786 = vpack.c.bf16 %v1597, %v1593
        %v1787 = vpack.c.bf16 %v1492, %v1488
        %v1788 = vpack.c.bf16 %v1494, %v1490
        %v1789 = vpack.c.bf16 %v1605, %v1601
        %v1790 = vpack.c.bf16 %v1607, %v1603
        %v1791 = vpack.c.bf16 %v1502, %v1498
        %v1792 = vpack.c.bf16 %v1504, %v1500
        %v1793 = vpack.c.bf16 %v1615, %v1611
        %v1794 = vpack.c.bf16 %v1617, %v1613
        %v1827 = vunpack.c.l.b16 %v1763
        %v1828 = vunpack.c.l.b16 %v1764
        %v1829 = vunpack.c.l.b16 %v1765
        %v1830 = vunpack.c.l.b16 %v1766
        %v1831 = vunpack.c.h.b16 %v1763
        %v1832 = vunpack.c.h.b16 %v1764
        %v1833 = vunpack.c.h.b16 %v1765
        %v1834 = vunpack.c.h.b16 %v1766
        %v1835 = vunpack.c.l.b16 %v1767
        %v1836 = vunpack.c.l.b16 %v1768
        %v1837 = vunpack.c.l.b16 %v1769
        %v1838 = vunpack.c.l.b16 %v1770
        %v1839 = vunpack.c.h.b16 %v1767
        %v1840 = vunpack.c.h.b16 %v1768
        %v1841 = vunpack.c.h.b16 %v1769
        %v1842 = vunpack.c.h.b16 %v1770
        %v1843 = vunpack.c.l.b16 %v1771
        %v1844 = vunpack.c.l.b16 %v1772
        %v1845 = vunpack.c.l.b16 %v1773
        %v1846 = vunpack.c.l.b16 %v1774
        %v1847 = vunpack.c.h.b16 %v1771
        %v1848 = vunpack.c.h.b16 %v1772
        %v1849 = vunpack.c.h.b16 %v1773
        %v1850 = vunpack.c.h.b16 %v1774
        %v1851 = vunpack.c.l.b16 %v1775
        %v1852 = vunpack.c.l.b16 %v1776
        %v1853 = vunpack.c.l.b16 %v1777
        %v1854 = vunpack.c.l.b16 %v1778
        %v1855 = vunpack.c.h.b16 %v1775
        %v1856 = vunpack.c.h.b16 %v1776
        %v1857 = vunpack.c.h.b16 %v1777
        %v1858 = vunpack.c.h.b16 %v1778
        %v1859 = vunpack.c.l.b16 %v1779
        %v1860 = vunpack.c.l.b16 %v1780
        %v1861 = vunpack.c.l.b16 %v1781
        %v1862 = vunpack.c.l.b16 %v1782
        %v1863 = vunpack.c.h.b16 %v1779
        %v1864 = vunpack.c.h.b16 %v1780
        %v1865 = vunpack.c.h.b16 %v1781
        %v1866 = vunpack.c.h.b16 %v1782
        %v1867 = vunpack.c.l.b16 %v1783
        %v1868 = vunpack.c.l.b16 %v1784
        %v1869 = vunpack.c.l.b16 %v1785
        %v1870 = vunpack.c.l.b16 %v1786
        %v1871 = vunpack.c.h.b16 %v1783
        %v1872 = vunpack.c.h.b16 %v1784
        %v1873 = vunpack.c.h.b16 %v1785
        %v1874 = vunpack.c.h.b16 %v1786
        %v1875 = vunpack.c.l.b16 %v1787
        %v1876 = vunpack.c.l.b16 %v1788
        %v1877 = vunpack.c.l.b16 %v1789
        %v1878 = vunpack.c.l.b16 %v1790
        %v1879 = vunpack.c.h.b16 %v1787
        %v1880 = vunpack.c.h.b16 %v1788
        %v1881 = vunpack.c.h.b16 %v1789
        %v1882 = vunpack.c.h.b16 %v1790
        %v1883 = vunpack.c.l.b16 %v1791
        %v1884 = vunpack.c.l.b16 %v1792
        %v1885 = vunpack.c.l.b16 %v1793
        %v1886 = vunpack.c.l.b16 %v1794
        %v1887 = vunpack.c.h.b16 %v1791
        %v1888 = vunpack.c.h.b16 %v1792
        %v1889 = vunpack.c.h.b16 %v1793
        %v1890 = vunpack.c.h.b16 %v1794
        %v1891 = vpack.c.b16 %v1828, %v1827
        %v1892 = vpack.c.b16 %v1830, %v1829
        %v1893 = vpack.c.b16 %v1832, %v1831
        %v1894 = vpack.c.b16 %v1834, %v1833
        %v1895 = vpack.c.b16 %v1836, %v1835
        %v1896 = vpack.c.b16 %v1838, %v1837
        %v1897 = vpack.c.b16 %v1840, %v1839
        %v1898 = vpack.c.b16 %v1842, %v1841
        %v1899 = vpack.c.b16 %v1844, %v1843
        %v1900 = vpack.c.b16 %v1846, %v1845
        %v1901 = vpack.c.b16 %v1848, %v1847
        %v1902 = vpack.c.b16 %v1850, %v1849
        %v1903 = vpack.c.b16 %v1852, %v1851
        %v1904 = vpack.c.b16 %v1854, %v1853
        %v1905 = vpack.c.b16 %v1856, %v1855
        %v1906 = vpack.c.b16 %v1858, %v1857
        %v1907 = vpack.c.b16 %v1860, %v1859
        %v1908 = vpack.c.b16 %v1862, %v1861
        %v1909 = vpack.c.b16 %v1864, %v1863
        %v1910 = vpack.c.b16 %v1866, %v1865
        %v1911 = vpack.c.b16 %v1868, %v1867
        %v1912 = vpack.c.b16 %v1870, %v1869
        %v1913 = vpack.c.b16 %v1872, %v1871
        %v1914 = vpack.c.b16 %v1874, %v1873
        %v1915 = vpack.c.b16 %v1876, %v1875
        %v1916 = vpack.c.b16 %v1878, %v1877
        %v1917 = vpack.c.b16 %v1880, %v1879
        %v1918 = vpack.c.b16 %v1882, %v1881
        %v1919 = vpack.c.b16 %v1884, %v1883
        %v1920 = vpack.c.b16 %v1886, %v1885
        %v1921 = vpack.c.b16 %v1888, %v1887
        %v1922 = vpack.c.b16 %v1890, %v1889
        %1955 = vst [vmem:[%s276 + $0x8] sm:$0xff] %v1891
        %1956 = vst [vmem:[%s276 + $0x10] sm:$0xff] %v1892
        %1957 = vst [vmem:[%s276 + $0x20] sm:$0xff] %v1893
        %1958 = vst [vmem:[%s276 + $0x28] sm:$0xff] %v1894
        %1959 = vst [vmem:[%s276 + $0x38] sm:$0xff] %v1895
        %1960 = vst [vmem:[%s276 + $0x40] sm:$0xff] %v1896
        %1961 = vst [vmem:[%s276 + $0x50] sm:$0xff] %v1897
        %1962 = vst [vmem:[%s276 + $0x58] sm:$0xff] %v1898
        %1963 = vst [vmem:[%s276 + $0x68] sm:$0xff] %v1899
        %1964 = vst [vmem:[%s276 + $0x70] sm:$0xff] %v1900
        %1965 = vst [vmem:[%s276 + $0x80] sm:$0xff] %v1901
        %1966 = vst [vmem:[%s276 + $0x88] sm:$0xff] %v1902
        %1967 = vst [vmem:[%s276 + $0x98] sm:$0xff] %v1903
        %1968 = vst [vmem:[%s276 + $0xa0] sm:$0xff] %v1904
        %1969 = vst [vmem:[%s276 + $0xb0] sm:$0xff] %v1905
        %1970 = vst [vmem:[%s276 + $0xb8] sm:$0xff] %v1906
        %1971 = vst [vmem:[%s276 + $0xc8] sm:$0xff] %v1907
        %1972 = vst [vmem:[%s276 + $0xd0] sm:$0xff] %v1908
        %1973 = vst [vmem:[%s276 + $0xe0] sm:$0xff] %v1909
        %1974 = vst [vmem:[%s276 + $0xe8] sm:$0xff] %v1910
        %1975 = vst [vmem:[%s276 + $0xf8] sm:$0xff] %v1911
        %1976 = vst [vmem:[%s276 + $0x100] sm:$0xff] %v1912
        %1977 = vst [vmem:[%s276 + $0x110] sm:$0xff] %v1913
        %1978 = vst [vmem:[%s276 + $0x118] sm:$0xff] %v1914
        %1979 = vst [vmem:[%s276 + $0x128] sm:$0xff] %v1915
        %1980 = vst [vmem:[%s276 + $0x130] sm:$0xff] %v1916
        %1981 = vst [vmem:[%s276 + $0x140] sm:$0xff] %v1917
        %1982 = vst [vmem:[%s276 + $0x148] sm:$0xff] %v1918
        %1983 = vst [vmem:[%s276 + $0x158] sm:$0xff] %v1919
        %1984 = vst [vmem:[%s276 + $0x160] sm:$0xff] %v1920
        %1985 = vst [vmem:[%s276 + $0x170] sm:$0xff] %v1921
        %1986 = vst [vmem:[%s276 + $0x178] sm:$0xff] %v1922
        %s1987 = sand.u32 %s157, 1
        %s1988 = scalar_lea.sflag [#allocation4], %s1987
        %s1989 = sand.u32 %s157, 1
        %s1990 = smul.addr %s1989, 384
        %s1991 = scalar_lea.vmem [#allocation7], %s1990
        // Predicated region
        $region49: #{tpu_custom_call.1} parent=39 // pred_check
          %p1992 = pneg %p167
        $region50: #{tpu_custom_call.1} parent=39 // pred_check_branch
          %1994 = sbr.rel (%p1992) target = $region52
        $region51: #{tpu_custom_call.1} parent=39 // pred_region
          %s1995 = smul.u32 16, %s28
          %s1997 = ssub.s32 6144, 6144
          %1998 = vsyncadd %s1988, %s1997
          %s1999 = smul.addr %s1995, 6
          %s2000 = smul.addr %s27, 192
          %s2001 = sadd.s32 %s1999, %s2000
          %s2002 = smul.addr %s2001, 64
          %s2003 = scalar_lea.hbm %s5, %s2002
          %s2004 = sshll.u32 %s1991, 4
          %s2005 = int_to_ptr.vmem [resolvable:$true] %s2004
          %2010 = dma.vmem_to_hbm [thread:$0]  %s2005, 6144, %s2003, %s1988, 384, 384, 24
        $region52: #{tpu_custom_call.1} parent=39 // pred_fallthru
          _
      $region40: #{tpu_custom_call.1} parent=5 // pred_fallthru
        _
      %p2011 = scmp.le.s32.totalorder 2, %s18
      // Predicated region
      $region53: #{tpu_custom_call.1} parent=5 // pred_check
        %p2012 = pneg %p2011
      $region54: #{tpu_custom_call.1} parent=5 // pred_check_branch
        %2014 = sbr.rel (%p2012) target = $region56
      $region55: #{tpu_custom_call.1} parent=5 // pred_region
        %s2015 = ssub.s32 %s18, 2
        // Predicated region
        $region57: #{tpu_custom_call.1} parent=55 // pred_check
          %p2016 = pneg %p173
        $region58: #{tpu_custom_call.1} parent=55 // pred_check_branch
          %2018 = sbr.rel (%p2016) target = $region60
        $region59: #{tpu_custom_call.1} parent=55 // pred_region
          %s2019 = sand.u32 %s158, 1
          %s2020 = scalar_lea.sflag [#allocation4], %s2019
          %s2021 = sand.u32 %s158, 1
          %s2022 = smul.addr %s2021, 384
          %s2023 = scalar_lea.vmem [#allocation7], %s2022
          %2024 = dma.done %s2020, 6144
        $region60: #{tpu_custom_call.1} parent=55 // pred_fallthru
          _
      $region56: #{tpu_custom_call.1} parent=5 // pred_fallthru
        _
    $region6: #{tpu_custom_call.1} parent=1 // loop_footer
      %s22 = sadd.s32 1, %s18
    $region7: #{tpu_custom_call.1} parent=1 // loop_footer_branch
      %17 = sbr.rel target = $region3
    $region8: #{tpu_custom_call.1} parent=1 // loop_exit
      _
    %2025 = vsyncpa [#allocation3], 1
    %s2026 = scalar_lea.sflag [#allocation3], 1
    %2027 = vsyncpa %s2026, 1
    %2028 = vsyncpa [#allocation6], 1
    %2029 = vsyncpa [#allocation4], 1
    %s2030 = scalar_lea.sflag [#allocation4], 1
    %2031 = vsyncpa %s2030, 1

// kernel: tpu_custom_call.1
$region0: #{tpu_custom_call.1}
  #allocation0 [shape = 'u32[]', space=smem, size = 0x4, offset = 0x4, fixed_abs, tag = 'smem constant byte address 0x4 - core index']
  #allocation1 [shape = 'u32[144,128]{1,0:T(1,128)}', space=vmem, size = 0x12000, scoped, tag = 'internal scratch']
  %s0 = inlined_call_operand.hbm [shape: f32[2,256,256], index: 0, kind: input, shape index: {}]
  %s1 = inlined_call_operand.vmem [shape: f32[1,256], index: 1, kind: input, shape index: {}]
  %s2 = inlined_call_operand.vmem [shape: f32[1,256], index: 2, kind: input, shape index: {}]
  %s3 = inlined_call_operand.hbm [shape: bf16[256,768], index: 3, kind: input, shape index: {}]
  %s4 = inlined_call_operand.vmem [shape: f32[1,768], index: 4, kind: input, shape index: {}]
  %s5 = inlined_call_operand.hbm [shape: bf16[2,256,768], index: 5, kind: output, shape index: {}]
  %s6 = sld [smem:[#allocation0]]
  $region61: #{tpu_custom_call.1} parent=0
    _
  %s8 = ssub.s32 1, %s6
  %s9 = scalar_select 0, %s8, %s6
  $region1: #{tpu_custom_call.1} parent=0
    #allocation2 [shape = 'u8[262144]{0}', space=vmem, size = 0x40000, scoped, tag = 'input window, operand 0']
    #allocation3 [shape = 's32[2]{0}', space=sflag, size = 0x8, scoped, tag = 'scoped memory for tpu_custom_call.1']
    #allocation4 [shape = 's32[2]{0}', space=sflag, size = 0x8, scoped, tag = 'scoped memory for tpu_custom_call.1']
    #allocation5 [shape = 'u8[393216]{0}', space=vmem, size = 0x60000, scoped, tag = 'input window, operand 3, single buffered']
    #allocation6 [shape = 's32[1]{0}', space=sflag, size = 0x4, scoped, tag = 'scoped memory for tpu_custom_call.1']
    #allocation7 [shape = 'u8[393216]{0}', space=vmem, size = 0x60000, scoped, tag = 'output window, operand 0']
    %10 = vsyncpa [#allocation3], 0
    %s11 = scalar_lea.sflag [#allocation3], 1
    %12 = vsyncpa %s11, 0
    %13 = vsyncpa [#allocation6], 0
    %14 = vsyncpa [#allocation4], 0
    %s15 = scalar_lea.sflag [#allocation4], 1
    %16 = vsyncpa %s15, 0
    loop: start=0, step=1, limit=6
    $region2: #{tpu_custom_call.1} parent=1 // loop_pre_header
      _
    $region3: #{tpu_custom_call.1} parent=1 // loop_header
      %s18 = sphi 0, %s22
      %p19 = scmp.ge.s32.totalorder %s18, 6
      %s25 = sphi 0, %s37
      %s26 = sphi 0, %s33
      %s27 = sphi 0, %s25
      %s28 = sphi 0, %s26
      %s29 = sphi 0, %s27
      %s30 = sphi 0, %s28
      %s42 = sphi 0, %s44
      %s45 = sphi 0, %s42
      %s46 = sphi 0, %s45
      %s62 = sphi 0, %s46
      %s66 = sphi 0, %s66
      %s68 = sphi 0, %s66
      %s69 = sphi 0, %s68
      %s83 = sphi 0, %s69
      %s87 = sphi 0, %s87
      %s89 = sphi 0, %s87
      %s90 = sphi 0, %s89
      %s104 = sphi 0, %s90
      %s108 = sphi 0, %s108
      %s110 = sphi 0, %s108
      %s111 = sphi 0, %s110
      %s125 = sphi 0, %s111
      %s129 = sphi 0, %s129
      %s131 = sphi 0, %s129
      %s132 = sphi 0, %s131
      %s146 = sphi 0, %s132
      %s154 = sphi 0, %s156
      %s157 = sphi 0, %s154
      %s158 = sphi 0, %s157
      %s174 = sphi 0, %s158
    $region4: #{tpu_custom_call.1} parent=1 // loop_header_branch
      %21 = sbr.rel (%p19) target = $region8
    $region5: #{tpu_custom_call.1} parent=1 // loop_body
      %s23 = ssub.s32 %s18, 1
      %s24 = ssub.s32 %s18, 2
      %s31 = sadd.s32 1, %s26
      %p32 = scmp.ge.s32.totalorder %s31, 2
      %s33 = scalar_select %p32, 0, %s31
      %s34 = sadd.s32 1, %s25
      %s35 = scalar_select %p32, %s34, %s25
      %p36 = scmp.ge.s32.totalorder %s35, 2
      %s37 = scalar_select %p36, 0, %s35
      %s38 = ssub.s32 %s25, %s37
      %s39 = ssub.s32 %s26, %s33
      %s40 = sor.u32 %s38, %s39
      %p41 = scmp.eq.s32.totalorder %s40, 0
      %s43 = sadd.s32 %s42, 1
      %s44 = scalar_select %p41, %s42, %s43
      %p47 = pneg %p41
      %p48 = scmp.eq.s32.totalorder %s18, 3
      %p49 = por %p47, %p48
      %p50 = scmp.ne.s32.totalorder %s42, %s45
      %p51 = scmp.eq.s32.totalorder %s18, 0
      %p52 = por %p50, %p51
      %p53 = scmp.ne.s32.totalorder %s42, %s45
      %p54 = scmp.eq.s32.totalorder %s23, 3
      %p55 = por %p53, %p54
      %p56 = scmp.ne.s32.totalorder %s45, %s46
      %p57 = scmp.eq.s32.totalorder %s23, 0
      %p58 = por %p56, %p57
      %p59 = scmp.ne.s32.totalorder %s45, %s46
      %p60 = scmp.eq.s32.totalorder %s24, 3
      %p61 = por %p59, %p60
      %p63 = scmp.ne.s32.totalorder %s46, %s62
      %p64 = scmp.eq.s32.totalorder %s24, 0
      %p65 = por %p63, %p64
      %s67 = sadd.s32 %s66, 1
      %p70 = scmp.eq.s32.totalorder %s18, 3
      %p71 = scmp.ne.s32.totalorder %s66, %s68
      %p72 = scmp.eq.s32.totalorder %s18, 0
      %p73 = por %p71, %p72
      %p74 = scmp.ne.s32.totalorder %s66, %s68
      %p75 = scmp.eq.s32.totalorder %s23, 3
      %p76 = por %p74, %p75
      %p77 = scmp.ne.s32.totalorder %s68, %s69
      %p78 = scmp.eq.s32.totalorder %s23, 0
      %p79 = por %p77, %p78
      %p80 = scmp.ne.s32.totalorder %s68, %s69
      %p81 = scmp.eq.s32.totalorder %s24, 3
      %p82 = por %p80, %p81
      %p84 = scmp.ne.s32.totalorder %s69, %s83
      %p85 = scmp.eq.s32.totalorder %s24, 0
      %p86 = por %p84, %p85
      %s88 = sadd.s32 %s87, 1
      %p91 = scmp.eq.s32.totalorder %s18, 3
      %p92 = scmp.ne.s32.totalorder %s87, %s89
      %p93 = scmp.eq.s32.totalorder %s18, 0
      %p94 = por %p92, %p93
      %p95 = scmp.ne.s32.totalorder %s87, %s89
      %p96 = scmp.eq.s32.totalorder %s23, 3
      %p97 = por %p95, %p96
      %p98 = scmp.ne.s32.totalorder %s89, %s90
      %p99 = scmp.eq.s32.totalorder %s23, 0
      %p100 = por %p98, %p99
      %p101 = scmp.ne.s32.totalorder %s89, %s90
      %p102 = scmp.eq.s32.totalorder %s24, 3
      %p103 = por %p101, %p102
      %p105 = scmp.ne.s32.totalorder %s90, %s104
      %p106 = scmp.eq.s32.totalorder %s24, 0
      %p107 = por %p105, %p106
      %s109 = sadd.s32 %s108, 1
      %p112 = scmp.eq.s32.totalorder %s18, 3
      %p113 = scmp.ne.s32.totalorder %s108, %s110
      %p114 = scmp.eq.s32.totalorder %s18, 0
      %p115 = por %p113, %p114
      %p116 = scmp.ne.s32.totalorder %s108, %s110
      %p117 = scmp.eq.s32.totalorder %s23, 3
      %p118 = por %p116, %p117
      %p119 = scmp.ne.s32.totalorder %s110, %s111
      %p120 = scmp.eq.s32.totalorder %s23, 0
      %p121 = por %p119, %p120
      %p122 = scmp.ne.s32.totalorder %s110, %s111
      %p123 = scmp.eq.s32.totalorder %s24, 3
      %p124 = por %p122, %p123
      %p126 = scmp.ne.s32.totalorder %s111, %s125
      %p127 = scmp.eq.s32.totalorder %s24, 0
      %p128 = por %p126, %p127
      %s130 = sadd.s32 %s129, 1
      %p133 = scmp.eq.s32.totalorder %s18, 3
      %p134 = scmp.ne.s32.totalorder %s129, %s131
      %p135 = scmp.eq.s32.totalorder %s18, 0
      %p136 = por %p134, %p135
      %p137 = scmp.ne.s32.totalorder %s129, %s131
      %p138 = scmp.eq.s32.totalorder %s23, 3
      %p139 = por %p137, %p138
      %p140 = scmp.ne.s32.totalorder %s131, %s132
      %p141 = scmp.eq.s32.totalorder %s23, 0
      %p142 = por %p140, %p141
      %p143 = scmp.ne.s32.totalorder %s131, %s132
      %p144 = scmp.eq.s32.totalorder %s24, 3
      %p145 = por %p143, %p144
      %p147 = scmp.ne.s32.totalorder %s132, %s146
      %p148 = scmp.eq.s32.totalorder %s24, 0
      %p149 = por %p147, %p148
      %s150 = ssub.s32 %s25, %s37
      %s151 = ssub.s32 %s26, %s33
      %s152 = sor.u32 %s150, %s151
      %p153 = scmp.eq.s32.totalorder %s152, 0
      %s155 = sadd.s32 %s154, 1
      %s156 = scalar_select %p153, %s154, %s155
      %p159 = pneg %p153
      %p160 = scmp.eq.s32.totalorder %s18, 3
      %p161 = por %p159, %p160
      %p162 = scmp.ne.s32.totalorder %s154, %s157
      %p163 = scmp.eq.s32.totalorder %s18, 0
      %p164 = por %p162, %p163
      %p165 = scmp.ne.s32.totalorder %s154, %s157
      %p166 = scmp.eq.s32.totalorder %s23, 3
      %p167 = por %p165, %p166
      %p168 = scmp.ne.s32.totalorder %s157, %s158
      %p169 = scmp.eq.s32.totalorder %s23, 0
      %p170 = por %p168, %p169
      %p171 = scmp.ne.s32.totalorder %s157, %s158
      %p172 = scmp.eq.s32.totalorder %s24, 3
      %p173 = por %p171, %p172
      %p175 = scmp.ne.s32.totalorder %s158, %s174
      %p176 = scmp.eq.s32.totalorder %s24, 0
      %p177 = por %p175, %p176
      %p178 = scmp.le.s32.totalorder 1, %s18
      %p179 = scmp.lt.s32.totalorder %s18, 5
      %p180 = pnand %p178, %p179
      %p181 = pneg %p180
      // Predicated region
      $region9: #{tpu_custom_call.1} parent=5 // pred_check
        _
      $region10: #{tpu_custom_call.1} parent=5 // pred_check_branch
        %183 = sbr.rel (%p180) target = $region12
      $region11: #{tpu_custom_call.1} parent=5 // pred_region
        %s184 = ssub.s32 %s18, 1
        // Predicated region
        $region13: #{tpu_custom_call.1} parent=11 // pred_check
          %p185 = pneg %p79
        $region14: #{tpu_custom_call.1} parent=11 // pred_check_branch
          %187 = sbr.rel (%p185) target = $region16
        $region15: #{tpu_custom_call.1} parent=11 // pred_region
          _
        $region16: #{tpu_custom_call.1} parent=11 // pred_fallthru
          _
        // Predicated region
        $region17: #{tpu_custom_call.1} parent=11 // pred_check
          %p188 = pneg %p100
        $region18: #{tpu_custom_call.1} parent=11 // pred_check_branch
          %190 = sbr.rel (%p188) target = $region20
        $region19: #{tpu_custom_call.1} parent=11 // pred_region
          _
        $region20: #{tpu_custom_call.1} parent=11 // pred_fallthru
          _
        // Predicated region
        $region21: #{tpu_custom_call.1} parent=11 // pred_check
          %p191 = pneg %p121
        $region22: #{tpu_custom_call.1} parent=11 // pred_check_branch
          %193 = sbr.rel (%p191) target = $region24
        $region23: #{tpu_custom_call.1} parent=11 // pred_region
          %s195 = ssub.s32 12288, 12288
          %196 = vsyncadd [#allocation6], %s195
          %s197 = sshll.u32 [#allocation5], 4
          %s198 = int_to_ptr.vmem [resolvable:$true] %s197
          %203 = dma.hbm_to_vmem [thread:$0]  %s3, 12288, %s198, [#allocation6], 384, 384, 24
        $region24: #{tpu_custom_call.1} parent=11 // pred_fallthru
          _
        // Predicated region
        $region25: #{tpu_custom_call.1} parent=11 // pred_check
          %p204 = pneg %p142
        $region26: #{tpu_custom_call.1} parent=11 // pred_check_branch
          %206 = sbr.rel (%p204) target = $region28
        $region27: #{tpu_custom_call.1} parent=11 // pred_region
          _
        $region28: #{tpu_custom_call.1} parent=11 // pred_fallthru
          _
      $region12: #{tpu_custom_call.1} parent=5 // pred_fallthru
        _
      %p207 = scmp.lt.s32.totalorder %s18, 4
      // Predicated region
      $region29: #{tpu_custom_call.1} parent=5 // pred_check
        %p208 = pneg %p207
      $region30: #{tpu_custom_call.1} parent=5 // pred_check_branch
        %210 = sbr.rel (%p208) target = $region32
      $region31: #{tpu_custom_call.1} parent=5 // pred_region
        // Predicated region
        $region33: #{tpu_custom_call.1} parent=31 // pred_check
          %p211 = pneg %p52
        $region34: #{tpu_custom_call.1} parent=31 // pred_check_branch
          %213 = sbr.rel (%p211) target = $region36
        $region35: #{tpu_custom_call.1} parent=31 // pred_region
          %s214 = sand.u32 %s42, 1
          %s215 = scalar_lea.sflag [#allocation3], %s214
          %s216 = sand.u32 %s42, 1
          %s217 = smul.addr %s216, 256
          %s218 = scalar_lea.vmem [#allocation2], %s217
          %s219 = smul.u32 16, %s26
          %s221 = ssub.s32 4096, 4096
          %222 = vsyncadd %s215, %s221
          %s223 = smul.addr %s219, 2
          %s224 = smul.addr %s25, 64
          %s225 = sadd.s32 %s223, %s224
          %s226 = smul.addr %s225, 128
          %s227 = scalar_lea.hbm %s0, %s226
          %s228 = sshll.u32 %s218, 4
          %s229 = int_to_ptr.vmem [resolvable:$true] %s228
          %234 = dma.hbm_to_vmem [thread:$0]  %s227, 4096, %s229, %s215, 256, 256, 16
        $region36: #{tpu_custom_call.1} parent=31 // pred_fallthru
          _
      $region32: #{tpu_custom_call.1} parent=5 // pred_fallthru
        _
      %p235 = scmp.le.s32.totalorder 1, %s18
      %p236 = scmp.lt.s32.totalorder %s18, 5
      %p237 = pnand %p235, %p236
      %p238 = pneg %p237
      // Predicated region
      $region37: #{tpu_custom_call.1} parent=5 // pred_check
        _
      $region38: #{tpu_custom_call.1} parent=5 // pred_check_branch
        %240 = sbr.rel (%p237) target = $region40
      $region39: #{tpu_custom_call.1} parent=5 // pred_region
        %s241 = ssub.s32 %s18, 1
        %s242 = sand.u32 %s45, 1
        %s243 = scalar_lea.sflag [#allocation3], %s242
        %s244 = sand.u32 %s45, 1
        %s245 = smul.addr %s244, 256
        %s246 = scalar_lea.vmem [#allocation2], %s245
        // Predicated region
        $region41: #{tpu_custom_call.1} parent=39 // pred_check
          %p247 = pneg %p58
        $region42: #{tpu_custom_call.1} parent=39 // pred_check_branch
          %249 = sbr.rel (%p247) target = $region44
        $region43: #{tpu_custom_call.1} parent=39 // pred_region
          %250 = dma.done %s243, 4096
        $region44: #{tpu_custom_call.1} parent=39 // pred_fallthru
          _
        // Predicated region
        $region45: #{tpu_custom_call.1} parent=39 // pred_check
          %p251 = pneg %p121
        $region46: #{tpu_custom_call.1} parent=39 // pred_check_branch
          %253 = sbr.rel (%p251) target = $region48
        $region47: #{tpu_custom_call.1} parent=39 // pred_region
          %254 = dma.done [#allocation6], 12288
        $region48: #{tpu_custom_call.1} parent=39 // pred_fallthru
          _
        %s255 = sand.u32 %s45, 1
        %s256 = scalar_lea.sflag [#allocation3], %s255
        %s257 = sand.u32 %s45, 1
        %s258 = smul.addr %s257, 256
        %s259 = scalar_lea.vmem [#allocation2], %s258
        %p260 = pneg %p58
        %p261 = pneg %p55
        %p262 = pneg %p79
        %p263 = pneg %p76
        %p264 = pneg %p100
        %p265 = pneg %p97
        %p266 = pneg %p121
        %p267 = pneg %p118
        %p268 = pneg %p142
        %p269 = pneg %p139
        %p270 = pneg %p170
        %p271 = pneg %p167
        %s272 = sand.u32 %s157, 1
        %s273 = scalar_lea.sflag [#allocation4], %s272
        %s274 = sand.u32 %s157, 1
        %s275 = smul.addr %s274, 384
        %s276 = scalar_lea.vmem [#allocation7], %s275
        %s277 = smul.u32 16, %s28
        %s278 = smul.u32 16, %s28
        %v279 = vld [vmem:[%s246] sm:$0xff]
        %v280 = vld [vmem:[%s246 + $0x8] sm:$0xff]
        %v281 = vld [vmem:[%s246 + $0x10] sm:$0xff]
        %v282 = vld [vmem:[%s246 + $0x18] sm:$0xff]
        %v283 = vld [vmem:[%s246 + $0x20] sm:$0xff]
        %v284 = vld [vmem:[%s246 + $0x28] sm:$0xff]
        %v285 = vld [vmem:[%s246 + $0x30] sm:$0xff]
        %v286 = vld [vmem:[%s246 + $0x38] sm:$0xff]
        %v287 = vld [vmem:[%s246 + $0x40] sm:$0xff]
        %v288 = vld [vmem:[%s246 + $0x48] sm:$0xff]
        %v289 = vld [vmem:[%s246 + $0x50] sm:$0xff]
        %v290 = vld [vmem:[%s246 + $0x58] sm:$0xff]
        %v291 = vld [vmem:[%s246 + $0x60] sm:$0xff]
        %v292 = vld [vmem:[%s246 + $0x68] sm:$0xff]
        %v293 = vld [vmem:[%s246 + $0x70] sm:$0xff]
        %v294 = vld [vmem:[%s246 + $0x78] sm:$0xff]
        %v295 = vld [vmem:[%s246 + $0x80] sm:$0xff]
        %v296 = vld [vmem:[%s246 + $0x88] sm:$0xff]
        %v297 = vld [vmem:[%s246 + $0x90] sm:$0xff]
        %v298 = vld [vmem:[%s246 + $0x98] sm:$0xff]
        %v299 = vld [vmem:[%s246 + $0xa0] sm:$0xff]
        %v300 = vld [vmem:[%s246 + $0xa8] sm:$0xff]
        %v301 = vld [vmem:[%s246 + $0xb0] sm:$0xff]
        %v302 = vld [vmem:[%s246 + $0xb8] sm:$0xff]
        %v303 = vld [vmem:[%s246 + $0xc0] sm:$0xff]
        %v304 = vld [vmem:[%s246 + $0xc8] sm:$0xff]
        %v305 = vld [vmem:[%s246 + $0xd0] sm:$0xff]
        %v306 = vld [vmem:[%s246 + $0xd8] sm:$0xff]
        %v307 = vld [vmem:[%s246 + $0xe0] sm:$0xff]
        %v308 = vld [vmem:[%s246 + $0xe8] sm:$0xff]
        %v309 = vld [vmem:[%s246 + $0xf0] sm:$0xff]
        %v310 = vld [vmem:[%s246 + $0xf8] sm:$0xff]
        %v311 = vld [vmem:[%s1] sm:$0x3]
        %v312 = vld [vmem:[%s2] sm:$0x3]
        %v313 = vadd.f32 %v279, %v280
        %314 = vadd.xlane.f32.xlu0 %v313
        %v315 = vpop.xlane.xlu0 %314
        %v316 = vadd.f32 %v281, %v282
        %317 = vadd.xlane.f32.xlu0 %v316
        %v318 = vpop.xlane.xlu0 %317
        %v319 = vadd.f32 %v283, %v284
        %320 = vadd.xlane.f32.xlu0 %v319
        %v321 = vpop.xlane.xlu0 %320
        %v322 = vadd.f32 %v285, %v286
        %323 = vadd.xlane.f32.xlu0 %v322
        %v324 = vpop.xlane.xlu0 %323
        %v325 = vadd.f32 %v287, %v288
        %326 = vadd.xlane.f32.xlu0 %v325
        %v327 = vpop.xlane.xlu0 %326
        %v328 = vadd.f32 %v289, %v290
        %329 = vadd.xlane.f32.xlu0 %v328
        %v330 = vpop.xlane.xlu0 %329
        %v331 = vadd.f32 %v291, %v292
        %332 = vadd.xlane.f32.xlu0 %v331
        %v333 = vpop.xlane.xlu0 %332
        %v334 = vadd.f32 %v293, %v294
        %335 = vadd.xlane.f32.xlu0 %v334
        %v336 = vpop.xlane.xlu0 %335
        %v337 = vadd.f32 %v295, %v296
        %338 = vadd.xlane.f32.xlu0 %v337
        %v339 = vpop.xlane.xlu0 %338
        %v340 = vadd.f32 %v297, %v298
        %341 = vadd.xlane.f32.xlu0 %v340
        %v342 = vpop.xlane.xlu0 %341
        %v343 = vadd.f32 %v299, %v300
        %344 = vadd.xlane.f32.xlu0 %v343
        %v345 = vpop.xlane.xlu0 %344
        %v346 = vadd.f32 %v301, %v302
        %347 = vadd.xlane.f32.xlu0 %v346
        %v348 = vpop.xlane.xlu0 %347
        %v349 = vadd.f32 %v303, %v304
        %350 = vadd.xlane.f32.xlu0 %v349
        %v351 = vpop.xlane.xlu0 %350
        %v352 = vadd.f32 %v305, %v306
        %353 = vadd.xlane.f32.xlu0 %v352
        %v354 = vpop.xlane.xlu0 %353
        %v355 = vadd.f32 %v307, %v308
        %356 = vadd.xlane.f32.xlu0 %v355
        %v357 = vpop.xlane.xlu0 %356
        %v358 = vadd.f32 %v309, %v310
        %359 = vadd.xlane.f32.xlu0 %v358
        %v360 = vpop.xlane.xlu0 %359
        %v361 = vrcp.pop 256.0
        %v362 = vmul.f32 %v315, %v361
        %v363 = vmul.f32 %v318, %v361
        %v364 = vmul.f32 %v321, %v361
        %v365 = vmul.f32 %v324, %v361
        %v366 = vmul.f32 %v327, %v361
        %v367 = vmul.f32 %v330, %v361
        %v368 = vmul.f32 %v333, %v361
        %v369 = vmul.f32 %v336, %v361
        %v370 = vmul.f32 %v339, %v361
        %v371 = vmul.f32 %v342, %v361
        %v372 = vmul.f32 %v345, %v361
        %v373 = vmul.f32 %v348, %v361
        %v374 = vmul.f32 %v351, %v361
        %v375 = vmul.f32 %v354, %v361
        %v376 = vmul.f32 %v357, %v361
        %v377 = vmul.f32 %v360, %v361
        %v378 = vsub.f32 %v279, %v362
        %v379 = vsub.f32 %v280, %v362
        %v380 = vsub.f32 %v281, %v363
        %v381 = vsub.f32 %v282, %v363
        %v382 = vsub.f32 %v283, %v364
        %v383 = vsub.f32 %v284, %v364
        %v384 = vsub.f32 %v285, %v365
        %v385 = vsub.f32 %v286, %v365
        %v386 = vsub.f32 %v287, %v366
        %v387 = vsub.f32 %v288, %v366
        %v388 = vsub.f32 %v289, %v367
        %v389 = vsub.f32 %v290, %v367
        %v390 = vsub.f32 %v291, %v368
        %v391 = vsub.f32 %v292, %v368
        %v392 = vsub.f32 %v293, %v369
        %v393 = vsub.f32 %v294, %v369
        %v394 = vsub.f32 %v295, %v370
        %v395 = vsub.f32 %v296, %v370
        %v396 = vsub.f32 %v297, %v371
        %v397 = vsub.f32 %v298, %v371
        %v398 = vsub.f32 %v299, %v372
        %v399 = vsub.f32 %v300, %v372
        %v400 = vsub.f32 %v301, %v373
        %v401 = vsub.f32 %v302, %v373
        %v402 = vsub.f32 %v303, %v374
        %v403 = vsub.f32 %v304, %v374
        %v404 = vsub.f32 %v305, %v375
        %v405 = vsub.f32 %v306, %v375
        %v406 = vsub.f32 %v307, %v376
        %v407 = vsub.f32 %v308, %v376
        %v408 = vsub.f32 %v309, %v377
        %v409 = vsub.f32 %v310, %v377
        %v410 = vmul.f32 %v378, %v378
        %v411 = vmul.f32 %v379, %v379
        %v412 = vmul.f32 %v380, %v380
        %v413 = vmul.f32 %v381, %v381
        %v414 = vmul.f32 %v382, %v382
        %v415 = vmul.f32 %v383, %v383
        %v416 = vmul.f32 %v384, %v384
        %v417 = vmul.f32 %v385, %v385
        %v418 = vmul.f32 %v386, %v386
        %v419 = vmul.f32 %v387, %v387
        %v420 = vmul.f32 %v388, %v388
        %v421 = vmul.f32 %v389, %v389
        %v422 = vmul.f32 %v390, %v390
        %v423 = vmul.f32 %v391, %v391
        %v424 = vmul.f32 %v392, %v392
        %v425 = vmul.f32 %v393, %v393
        %v426 = vmul.f32 %v394, %v394
        %v427 = vmul.f32 %v395, %v395
        %v428 = vmul.f32 %v396, %v396
        %v429 = vmul.f32 %v397, %v397
        %v430 = vmul.f32 %v398, %v398
        %v431 = vmul.f32 %v399, %v399
        %v432 = vmul.f32 %v400, %v400
        %v433 = vmul.f32 %v401, %v401
        %v434 = vmul.f32 %v402, %v402
        %v435 = vmul.f32 %v403, %v403
        %v436 = vmul.f32 %v404, %v404
        %v437 = vmul.f32 %v405, %v405
        %v438 = vmul.f32 %v406, %v406
        %v439 = vmul.f32 %v407, %v407
        %v440 = vmul.f32 %v408, %v408
        %v441 = vmul.f32 %v409, %v409
        %v442 = vadd.f32 %v410, %v411
        %443 = vadd.xlane.f32.xlu0 %v442
        %v444 = vpop.xlane.xlu0 %443
        %v445 = vadd.f32 %v412, %v413
        %446 = vadd.xlane.f32.xlu0 %v445
        %v447 = vpop.xlane.xlu0 %446
        %v448 = vadd.f32 %v414, %v415
        %449 = vadd.xlane.f32.xlu0 %v448
        %v450 = vpop.xlane.xlu0 %449
        %v451 = vadd.f32 %v416, %v417
        %452 = vadd.xlane.f32.xlu0 %v451
        %v453 = vpop.xlane.xlu0 %452
        %v454 = vadd.f32 %v418, %v419
        %455 = vadd.xlane.f32.xlu0 %v454
        %v456 = vpop.xlane.xlu0 %455
        %v457 = vadd.f32 %v420, %v421
        %458 = vadd.xlane.f32.xlu0 %v457
        %v459 = vpop.xlane.xlu0 %458
        %v460 = vadd.f32 %v422, %v423
        %461 = vadd.xlane.f32.xlu0 %v460
        %v462 = vpop.xlane.xlu0 %461
        %v463 = vadd.f32 %v424, %v425
        %464 = vadd.xlane.f32.xlu0 %v463
        %v465 = vpop.xlane.xlu0 %464
        %v466 = vadd.f32 %v426, %v427
        %467 = vadd.xlane.f32.xlu0 %v466
        %v468 = vpop.xlane.xlu0 %467
        %v469 = vadd.f32 %v428, %v429
        %470 = vadd.xlane.f32.xlu0 %v469
        %v471 = vpop.xlane.xlu0 %470
        %v472 = vadd.f32 %v430, %v431
        %473 = vadd.xlane.f32.xlu0 %v472
        %v474 = vpop.xlane.xlu0 %473
        %v475 = vadd.f32 %v432, %v433
        %476 = vadd.xlane.f32.xlu0 %v475
        %v477 = vpop.xlane.xlu0 %476
        %v478 = vadd.f32 %v434, %v435
        %479 = vadd.xlane.f32.xlu0 %v478
        %v480 = vpop.xlane.xlu0 %479
        %v481 = vadd.f32 %v436, %v437
        %482 = vadd.xlane.f32.xlu0 %v481
        %v483 = vpop.xlane.xlu0 %482
        %v484 = vadd.f32 %v438, %v439
        %485 = vadd.xlane.f32.xlu0 %v484
        %v486 = vpop.xlane.xlu0 %485
        %v487 = vadd.f32 %v440, %v441
        %488 = vadd.xlane.f32.xlu0 %v487
        %v489 = vpop.xlane.xlu0 %488
        %v490 = vmul.f32 %v444, %v361
        %v491 = vmul.f32 %v447, %v361
        %v492 = vmul.f32 %v450, %v361
        %v493 = vmul.f32 %v453, %v361
        %v494 = vmul.f32 %v456, %v361
        %v495 = vmul.f32 %v459, %v361
        %v496 = vmul.f32 %v462, %v361
        %v497 = vmul.f32 %v465, %v361
        %v498 = vmul.f32 %v468, %v361
        %v499 = vmul.f32 %v471, %v361
        %v500 = vmul.f32 %v474, %v361
        %v501 = vmul.f32 %v477, %v361
        %v502 = vmul.f32 %v480, %v361
        %v503 = vmul.f32 %v483, %v361
        %v504 = vmul.f32 %v486, %v361
        %v505 = vmul.f32 %v489, %v361
        %v506 = vadd.f32 %v490, 1e-05
        %v507 = vadd.f32 %v491, 1e-05
        %v508 = vadd.f32 %v492, 1e-05
        %v509 = vadd.f32 %v493, 1e-05
        %v510 = vadd.f32 %v494, 1e-05
        %v511 = vadd.f32 %v495, 1e-05
        %v512 = vadd.f32 %v496, 1e-05
        %v513 = vadd.f32 %v497, 1e-05
        %v514 = vadd.f32 %v498, 1e-05
        %v515 = vadd.f32 %v499, 1e-05
        %v516 = vadd.f32 %v500, 1e-05
        %v517 = vadd.f32 %v501, 1e-05
        %v518 = vadd.f32 %v502, 1e-05
        %v519 = vadd.f32 %v503, 1e-05
        %v520 = vadd.f32 %v504, 1e-05
        %v521 = vadd.f32 %v505, 1e-05
        %v522 = vrsqrt.pop %v506
        %v523 = vrsqrt.pop %v507
        %v524 = vrsqrt.pop %v508
        %v525 = vrsqrt.pop %v509
        %v526 = vrsqrt.pop %v510
        %v527 = vrsqrt.pop %v511
        %v528 = vrsqrt.pop %v512
        %v529 = vrsqrt.pop %v513
        %v530 = vrsqrt.pop %v514
        %v531 = vrsqrt.pop %v515
        %v532 = vrsqrt.pop %v516
        %v533 = vrsqrt.pop %v517
        %v534 = vrsqrt.pop %v518
        %v535 = vrsqrt.pop %v519
        %v536 = vrsqrt.pop %v520
        %v537 = vrsqrt.pop %v521
        %v538 = vmul.f32 %v378, %v522
        %v539 = vmul.f32 %v379, %v522
        %v540 = vmul.f32 %v380, %v523
        %v541 = vmul.f32 %v381, %v523
        %v542 = vmul.f32 %v382, %v524
        %v543 = vmul.f32 %v383, %v524
        %v544 = vmul.f32 %v384, %v525
        %v545 = vmul.f32 %v385, %v525
        %v546 = vmul.f32 %v386, %v526
        %v547 = vmul.f32 %v387, %v526
        %v548 = vmul.f32 %v388, %v527
        %v549 = vmul.f32 %v389, %v527
        %v550 = vmul.f32 %v390, %v528
        %v551 = vmul.f32 %v391, %v528
        %v552 = vmul.f32 %v392, %v529
        %v553 = vmul.f32 %v393, %v529
        %v554 = vmul.f32 %v394, %v530
        %v555 = vmul.f32 %v395, %v530
        %v556 = vmul.f32 %v396, %v531
        %v557 = vmul.f32 %v397, %v531
        %v558 = vmul.f32 %v398, %v532
        %v559 = vmul.f32 %v399, %v532
        %v560 = vmul.f32 %v400, %v533
        %v561 = vmul.f32 %v401, %v533
        %v562 = vmul.f32 %v402, %v534
        %v563 = vmul.f32 %v403, %v534
        %v564 = vmul.f32 %v404, %v535
        %v565 = vmul.f32 %v405, %v535
        %v566 = vmul.f32 %v406, %v536
        %v567 = vmul.f32 %v407, %v536
        %v568 = vmul.f32 %v408, %v537
        %v569 = vmul.f32 %v409, %v537
        %v571 = vlaneseq
        %v572 = vshrl.u32 %v571, 7
        %v573 = vsub.s32 0, %v572
        %v574 = vrot.slane %v311, %v573
        %v575 = vlaneseq
        %v576 = vshrl.u32 %v575, 7
        %v577 = vsub.s32 1, %v576
        %v578 = vrot.slane %v311, %v577
        %v581 = vmul.f32 %v538, %v574
        %v582 = vmul.f32 %v539, %v578
        %v583 = vmul.f32 %v540, %v574
        %v584 = vmul.f32 %v541, %v578
        %v585 = vmul.f32 %v542, %v574
        %v586 = vmul.f32 %v543, %v578
        %v587 = vmul.f32 %v544, %v574
        %v588 = vmul.f32 %v545, %v578
        %v589 = vmul.f32 %v546, %v574
        %v590 = vmul.f32 %v547, %v578
        %v591 = vmul.f32 %v548, %v574
        %v592 = vmul.f32 %v549, %v578
        %v593 = vmul.f32 %v550, %v574
        %v594 = vmul.f32 %v551, %v578
        %v595 = vmul.f32 %v552, %v574
        %v596 = vmul.f32 %v553, %v578
        %v597 = vmul.f32 %v554, %v574
        %v598 = vmul.f32 %v555, %v578
        %v599 = vmul.f32 %v556, %v574
        %v600 = vmul.f32 %v557, %v578
        %v601 = vmul.f32 %v558, %v574
        %v602 = vmul.f32 %v559, %v578
        %v603 = vmul.f32 %v560, %v574
        %v604 = vmul.f32 %v561, %v578
        %v605 = vmul.f32 %v562, %v574
        %v606 = vmul.f32 %v563, %v578
        %v607 = vmul.f32 %v564, %v574
        %v608 = vmul.f32 %v565, %v578
        %v609 = vmul.f32 %v566, %v574
        %v610 = vmul.f32 %v567, %v578
        %v611 = vmul.f32 %v568, %v574
        %v612 = vmul.f32 %v569, %v578
        %v614 = vlaneseq
        %v615 = vshrl.u32 %v614, 7
        %v616 = vsub.s32 0, %v615
        %v617 = vrot.slane %v312, %v616
        %v618 = vlaneseq
        %v619 = vshrl.u32 %v618, 7
        %v620 = vsub.s32 1, %v619
        %v621 = vrot.slane %v312, %v620
        %v624 = vadd.f32 %v581, %v617
        %v625 = vadd.f32 %v582, %v621
        %v626 = vadd.f32 %v583, %v617
        %v627 = vadd.f32 %v584, %v621
        %v628 = vadd.f32 %v585, %v617
        %v629 = vadd.f32 %v586, %v621
        %v630 = vadd.f32 %v587, %v617
        %v631 = vadd.f32 %v588, %v621
        %v632 = vadd.f32 %v589, %v617
        %v633 = vadd.f32 %v590, %v621
        %v634 = vadd.f32 %v591, %v617
        %v635 = vadd.f32 %v592, %v621
        %v636 = vadd.f32 %v593, %v617
        %v637 = vadd.f32 %v594, %v621
        %v638 = vadd.f32 %v595, %v617
        %v639 = vadd.f32 %v596, %v621
        %v640 = vadd.f32 %v597, %v617
        %v641 = vadd.f32 %v598, %v621
        %v642 = vadd.f32 %v599, %v617
        %v643 = vadd.f32 %v600, %v621
        %v644 = vadd.f32 %v601, %v617
        %v645 = vadd.f32 %v602, %v621
        %v646 = vadd.f32 %v603, %v617
        %v647 = vadd.f32 %v604, %v621
        %v648 = vadd.f32 %v605, %v617
        %v649 = vadd.f32 %v606, %v621
        %v650 = vadd.f32 %v607, %v617
        %v651 = vadd.f32 %v608, %v621
        %v652 = vadd.f32 %v609, %v617
        %v653 = vadd.f32 %v610, %v621
        %v654 = vadd.f32 %v611, %v617
        %v655 = vadd.f32 %v612, %v621
        %v656 = vpack.c.bf16 %v626, %v624
        %v657 = vpack.c.bf16 %v627, %v625
        %v658 = vpack.c.bf16 %v630, %v628
        %v659 = vpack.c.bf16 %v631, %v629
        %v660 = vpack.c.bf16 %v634, %v632
        %v661 = vpack.c.bf16 %v635, %v633
        %v662 = vpack.c.bf16 %v638, %v636
        %v663 = vpack.c.bf16 %v639, %v637
        %v664 = vpack.c.bf16 %v642, %v640
        %v665 = vpack.c.bf16 %v643, %v641
        %v666 = vpack.c.bf16 %v646, %v644
        %v667 = vpack.c.bf16 %v647, %v645
        %v668 = vpack.c.bf16 %v650, %v648
        %v669 = vpack.c.bf16 %v651, %v649
        %v670 = vpack.c.bf16 %v654, %v652
        %v671 = vpack.c.bf16 %v655, %v653
        %v672 = vld [vmem:[#allocation5] sm:$0xff]
        %v673 = vld [vmem:[#allocation5 + $0x8] sm:$0xff]
        %v674 = vld [vmem:[#allocation5 + $0x10] sm:$0xff]
        %v675 = vld [vmem:[#allocation5 + $0x18] sm:$0xff]
        %v676 = vld [vmem:[#allocation5 + $0x20] sm:$0xff]
        %v677 = vld [vmem:[#allocation5 + $0x28] sm:$0xff]
        %v678 = vld [vmem:[#allocation5 + $0x30] sm:$0xff]
        %v679 = vld [vmem:[#allocation5 + $0x38] sm:$0xff]
        %v680 = vld [vmem:[#allocation5 + $0x40] sm:$0xff]
        %v681 = vld [vmem:[#allocation5 + $0x48] sm:$0xff]
        %v682 = vld [vmem:[#allocation5 + $0x50] sm:$0xff]
        %v683 = vld [vmem:[#allocation5 + $0x58] sm:$0xff]
        %v684 = vld [vmem:[#allocation5 + $0x60] sm:$0xff]
        %v685 = vld [vmem:[#allocation5 + $0x68] sm:$0xff]
        %v686 = vld [vmem:[#allocation5 + $0x70] sm:$0xff]
        %v687 = vld [vmem:[#allocation5 + $0x78] sm:$0xff]
        %v688 = vld [vmem:[#allocation5 + $0x80] sm:$0xff]
        %v689 = vld [vmem:[#allocation5 + $0x88] sm:$0xff]
        %v690 = vld [vmem:[#allocation5 + $0x90] sm:$0xff]
        %v691 = vld [vmem:[#allocation5 + $0x98] sm:$0xff]
        %v692 = vld [vmem:[#allocation5 + $0xa0] sm:$0xff]
        %v693 = vld [vmem:[#allocation5 + $0xa8] sm:$0xff]
        %v694 = vld [vmem:[#allocation5 + $0xb0] sm:$0xff]
        %v695 = vld [vmem:[#allocation5 + $0xb8] sm:$0xff]
        %v696 = vld [vmem:[#allocation5 + $0xc0] sm:$0xff]
        %v697 = vld [vmem:[#allocation5 + $0xc8] sm:$0xff]
        %v698 = vld [vmem:[#allocation5 + $0xd0] sm:$0xff]
        %v699 = vld [vmem:[#allocation5 + $0xd8] sm:$0xff]
        %v700 = vld [vmem:[#allocation5 + $0xe0] sm:$0xff]
        %v701 = vld [vmem:[#allocation5 + $0xe8] sm:$0xff]
        %v702 = vld [vmem:[#allocation5 + $0xf0] sm:$0xff]
        %v703 = vld [vmem:[#allocation5 + $0xf8] sm:$0xff]
        %v704 = vld [vmem:[#allocation5 + $0x100] sm:$0xff]
        %v705 = vld [vmem:[#allocation5 + $0x108] sm:$0xff]
        %v706 = vld [vmem:[#allocation5 + $0x110] sm:$0xff]
        %v707 = vld [vmem:[#allocation5 + $0x118] sm:$0xff]
        %v708 = vld [vmem:[#allocation5 + $0x120] sm:$0xff]
        %v709 = vld [vmem:[#allocation5 + $0x128] sm:$0xff]
        %v710 = vld [vmem:[#allocation5 + $0x130] sm:$0xff]
        %v711 = vld [vmem:[#allocation5 + $0x138] sm:$0xff]
        %v712 = vld [vmem:[#allocation5 + $0x140] sm:$0xff]
        %v713 = vld [vmem:[#allocation5 + $0x148] sm:$0xff]
        %v714 = vld [vmem:[#allocation5 + $0x150] sm:$0xff]
        %v715 = vld [vmem:[#allocation5 + $0x158] sm:$0xff]
        %v716 = vld [vmem:[#allocation5 + $0x160] sm:$0xff]
        %v717 = vld [vmem:[#allocation5 + $0x168] sm:$0xff]
        %v718 = vld [vmem:[#allocation5 + $0x170] sm:$0xff]
        %v719 = vld [vmem:[#allocation5 + $0x178] sm:$0xff]
        %v720 = vld [vmem:[#allocation5 + $0x180] sm:$0xff]
        %v721 = vld [vmem:[#allocation5 + $0x188] sm:$0xff]
        %v722 = vld [vmem:[#allocation5 + $0x190] sm:$0xff]
        %v723 = vld [vmem:[#allocation5 + $0x198] sm:$0xff]
        %v724 = vld [vmem:[#allocation5 + $0x1a0] sm:$0xff]
        %v725 = vld [vmem:[#allocation5 + $0x1a8] sm:$0xff]
        %v726 = vld [vmem:[#allocation5 + $0x1b0] sm:$0xff]
        %v727 = vld [vmem:[#allocation5 + $0x1b8] sm:$0xff]
        %v728 = vld [vmem:[#allocation5 + $0x1c0] sm:$0xff]
        %v729 = vld [vmem:[#allocation5 + $0x1c8] sm:$0xff]
        %v730 = vld [vmem:[#allocation5 + $0x1d0] sm:$0xff]
        %v731 = vld [vmem:[#allocation5 + $0x1d8] sm:$0xff]
        %v732 = vld [vmem:[#allocation5 + $0x1e0] sm:$0xff]
        %v733 = vld [vmem:[#allocation5 + $0x1e8] sm:$0xff]
        %v734 = vld [vmem:[#allocation5 + $0x1f0] sm:$0xff]
        %v735 = vld [vmem:[#allocation5 + $0x1f8] sm:$0xff]
        %v736 = vld [vmem:[#allocation5 + $0x200] sm:$0xff]
        %v737 = vld [vmem:[#allocation5 + $0x208] sm:$0xff]
        %v738 = vld [vmem:[#allocation5 + $0x210] sm:$0xff]
        %v739 = vld [vmem:[#allocation5 + $0x218] sm:$0xff]
        %v740 = vld [vmem:[#allocation5 + $0x220] sm:$0xff]
        %v741 = vld [vmem:[#allocation5 + $0x228] sm:$0xff]
        %v742 = vld [vmem:[#allocation5 + $0x230] sm:$0xff]
        %v743 = vld [vmem:[#allocation5 + $0x238] sm:$0xff]
        %v744 = vld [vmem:[#allocation5 + $0x240] sm:$0xff]
        %v745 = vld [vmem:[#allocation5 + $0x248] sm:$0xff]
        %v746 = vld [vmem:[#allocation5 + $0x250] sm:$0xff]
        %v747 = vld [vmem:[#allocation5 + $0x258] sm:$0xff]
        %v748 = vld [vmem:[#allocation5 + $0x260] sm:$0xff]
        %v749 = vld [vmem:[#allocation5 + $0x268] sm:$0xff]
        %v750 = vld [vmem:[#allocation5 + $0x270] sm:$0xff]
        %v751 = vld [vmem:[#allocation5 + $0x278] sm:$0xff]
        %v752 = vld [vmem:[#allocation5 + $0x280] sm:$0xff]
        %v753 = vld [vmem:[#allocation5 + $0x288] sm:$0xff]
        %v754 = vld [vmem:[#allocation5 + $0x290] sm:$0xff]
        %v755 = vld [vmem:[#allocation5 + $0x298] sm:$0xff]
        %v756 = vld [vmem:[#allocation5 + $0x2a0] sm:$0xff]
        %v757 = vld [vmem:[#allocation5 + $0x2a8] sm:$0xff]
        %v758 = vld [vmem:[#allocation5 + $0x2b0] sm:$0xff]
        %v759 = vld [vmem:[#allocation5 + $0x2b8] sm:$0xff]
        %v760 = vld [vmem:[#allocation5 + $0x2c0] sm:$0xff]
        %v761 = vld [vmem:[#allocation5 + $0x2c8] sm:$0xff]
        %v762 = vld [vmem:[#allocation5 + $0x2d0] sm:$0xff]
        %v763 = vld [vmem:[#allocation5 + $0x2d8] sm:$0xff]
        %v764 = vld [vmem:[#allocation5 + $0x2e0] sm:$0xff]
        %v765 = vld [vmem:[#allocation5 + $0x2e8] sm:$0xff]
        %v766 = vld [vmem:[#allocation5 + $0x2f0] sm:$0xff]
        %v767 = vld [vmem:[#allocation5 + $0x2f8] sm:$0xff]
        %v768 = vld [vmem:[%s4] sm:$0x3f]
        %v770 = vlaneseq
        %v771 = vshrl.u32 %v770, 7
        %v772 = vsub.s32 0, %v771
        %v773 = vrot.slane %v768, %v772
        %v774 = vlaneseq
        %v775 = vshrl.u32 %v774, 7
        %v776 = vsub.s32 1, %v775
        %v777 = vrot.slane %v768, %v776
        %v778 = vlaneseq
        %v779 = vshrl.u32 %v778, 7
        %v780 = vsub.s32 2, %v779
        %v781 = vrot.slane %v768, %v780
        %v782 = vlaneseq
        %v783 = vshrl.u32 %v782, 7
        %v784 = vsub.s32 3, %v783
        %v785 = vrot.slane %v768, %v784
        %v786 = vlaneseq
        %v787 = vshrl.u32 %v786, 7
        %v788 = vsub.s32 4, %v787
        %v789 = vrot.slane %v768, %v788
        %v790 = vlaneseq
        %v791 = vshrl.u32 %v790, 7
        %v792 = vsub.s32 5, %v791
        %v793 = vrot.slane %v768, %v792
        %v896 = vunpack.c.l.b16 %v672
        %v897 = vunpack.c.h.b16 %v672
        %v898 = vunpack.c.l.b16 %v673
        %v899 = vunpack.c.h.b16 %v673
        %v900 = vunpack.c.l.b16 %v674
        %v901 = vunpack.c.h.b16 %v674
        %v902 = vunpack.c.l.b16 %v675
        %v903 = vunpack.c.h.b16 %v675
        %v904 = vunpack.c.l.b16 %v676
        %v905 = vunpack.c.h.b16 %v676
        %v906 = vunpack.c.l.b16 %v677
        %v907 = vunpack.c.h.b16 %v677
        %v908 = vunpack.c.l.b16 %v678
        %v909 = vunpack.c.h.b16 %v678
        %v910 = vunpack.c.l.b16 %v679
        %v911 = vunpack.c.h.b16 %v679
        %v912 = vunpack.c.l.b16 %v680
        %v913 = vunpack.c.h.b16 %v680
        %v914 = vunpack.c.l.b16 %v681
        %v915 = vunpack.c.h.b16 %v681
        %v916 = vunpack.c.l.b16 %v682
        %v917 = vunpack.c.h.b16 %v682
        %v918 = vunpack.c.l.b16 %v683
        %v919 = vunpack.c.h.b16 %v683
        %v920 = vunpack.c.l.b16 %v684
        %v921 = vunpack.c.h.b16 %v684
        %v922 = vunpack.c.l.b16 %v685
        %v923 = vunpack.c.h.b16 %v685
        %v924 = vunpack.c.l.b16 %v686
        %v925 = vunpack.c.h.b16 %v686
        %v926 = vunpack.c.l.b16 %v687
        %v927 = vunpack.c.h.b16 %v687
        %v928 = vunpack.c.l.b16 %v688
        %v929 = vunpack.c.h.b16 %v688
        %v930 = vunpack.c.l.b16 %v689
        %v931 = vunpack.c.h.b16 %v689
        %v932 = vunpack.c.l.b16 %v690
        %v933 = vunpack.c.h.b16 %v690
        %v934 = vunpack.c.l.b16 %v691
        %v935 = vunpack.c.h.b16 %v691
        %v936 = vunpack.c.l.b16 %v692
        %v937 = vunpack.c.h.b16 %v692
        %v938 = vunpack.c.l.b16 %v693
        %v939 = vunpack.c.h.b16 %v693
        %v940 = vunpack.c.l.b16 %v694
        %v941 = vunpack.c.h.b16 %v694
        %v942 = vunpack.c.l.b16 %v695
        %v943 = vunpack.c.h.b16 %v695
        %v944 = vunpack.c.l.b16 %v696
        %v945 = vunpack.c.h.b16 %v696
        %v946 = vunpack.c.l.b16 %v697
        %v947 = vunpack.c.h.b16 %v697
        %v948 = vunpack.c.l.b16 %v698
        %v949 = vunpack.c.h.b16 %v698
        %v950 = vunpack.c.l.b16 %v699
        %v951 = vunpack.c.h.b16 %v699
        %v952 = vunpack.c.l.b16 %v700
        %v953 = vunpack.c.h.b16 %v700
        %v954 = vunpack.c.l.b16 %v701
        %v955 = vunpack.c.h.b16 %v701
        %v956 = vunpack.c.l.b16 %v702
        %v957 = vunpack.c.h.b16 %v702
        %v958 = vunpack.c.l.b16 %v703
        %v959 = vunpack.c.h.b16 %v703
        %v960 = vunpack.c.l.b16 %v704
        %v961 = vunpack.c.h.b16 %v704
        %v962 = vunpack.c.l.b16 %v705
        %v963 = vunpack.c.h.b16 %v705
        %v964 = vunpack.c.l.b16 %v706
        %v965 = vunpack.c.h.b16 %v706
        %v966 = vunpack.c.l.b16 %v707
        %v967 = vunpack.c.h.b16 %v707
        %v968 = vunpack.c.l.b16 %v708
        %v969 = vunpack.c.h.b16 %v708
        %v970 = vunpack.c.l.b16 %v709
        %v971 = vunpack.c.h.b16 %v709
        %v972 = vunpack.c.l.b16 %v710
        %v973 = vunpack.c.h.b16 %v710
        %v974 = vunpack.c.l.b16 %v711
        %v975 = vunpack.c.h.b16 %v711
        %v976 = vunpack.c.l.b16 %v712
        %v977 = vunpack.c.h.b16 %v712
        %v978 = vunpack.c.l.b16 %v713
        %v979 = vunpack.c.h.b16 %v713
        %v980 = vunpack.c.l.b16 %v714
        %v981 = vunpack.c.h.b16 %v714
        %v982 = vunpack.c.l.b16 %v715
        %v983 = vunpack.c.h.b16 %v715
        %v984 = vunpack.c.l.b16 %v716
        %v985 = vunpack.c.h.b16 %v716
        %v986 = vunpack.c.l.b16 %v717
        %v987 = vunpack.c.h.b16 %v717
        %v988 = vunpack.c.l.b16 %v718
        %v989 = vunpack.c.h.b16 %v718
        %v990 = vunpack.c.l.b16 %v719
        %v991 = vunpack.c.h.b16 %v719
        %v992 = vunpack.c.l.b16 %v720
        %v993 = vunpack.c.h.b16 %v720
        %v994 = vunpack.c.l.b16 %v721
        %v995 = vunpack.c.h.b16 %v721
        %v996 = vunpack.c.l.b16 %v722
        %v997 = vunpack.c.h.b16 %v722
        %v998 = vunpack.c.l.b16 %v723
        %v999 = vunpack.c.h.b16 %v723
        %v1000 = vunpack.c.l.b16 %v724
        %v1001 = vunpack.c.h.b16 %v724
        %v1002 = vunpack.c.l.b16 %v725
        %v1003 = vunpack.c.h.b16 %v725
        %v1004 = vunpack.c.l.b16 %v726
        %v1005 = vunpack.c.h.b16 %v726
        %v1006 = vunpack.c.l.b16 %v727
        %v1007 = vunpack.c.h.b16 %v727
        %v1008 = vunpack.c.l.b16 %v728
        %v1009 = vunpack.c.h.b16 %v728
        %v1010 = vunpack.c.l.b16 %v729
        %v1011 = vunpack.c.h.b16 %v729
        %v1012 = vunpack.c.l.b16 %v730
        %v1013 = vunpack.c.h.b16 %v730
        %v1014 = vunpack.c.l.b16 %v731
        %v1015 = vunpack.c.h.b16 %v731
        %v1016 = vunpack.c.l.b16 %v732
        %v1017 = vunpack.c.h.b16 %v732
        %v1018 = vunpack.c.l.b16 %v733
        %v1019 = vunpack.c.h.b16 %v733
        %v1020 = vunpack.c.l.b16 %v734
        %v1021 = vunpack.c.h.b16 %v734
        %v1022 = vunpack.c.l.b16 %v735
        %v1023 = vunpack.c.h.b16 %v735
        %v1024 = vunpack.c.l.b16 %v736
        %v1025 = vunpack.c.h.b16 %v736
        %v1026 = vunpack.c.l.b16 %v737
        %v1027 = vunpack.c.h.b16 %v737
        %v1028 = vunpack.c.l.b16 %v738
        %v1029 = vunpack.c.h.b16 %v738
        %v1030 = vunpack.c.l.b16 %v739
        %v1031 = vunpack.c.h.b16 %v739
        %v1032 = vunpack.c.l.b16 %v740
        %v1033 = vunpack.c.h.b16 %v740
        %v1034 = vunpack.c.l.b16 %v741
        %v1035 = vunpack.c.h.b16 %v741
        %v1036 = vunpack.c.l.b16 %v742
        %v1037 = vunpack.c.h.b16 %v742
        %v1038 = vunpack.c.l.b16 %v743
        %v1039 = vunpack.c.h.b16 %v743
        %v1040 = vunpack.c.l.b16 %v744
        %v1041 = vunpack.c.h.b16 %v744
        %v1042 = vunpack.c.l.b16 %v745
        %v1043 = vunpack.c.h.b16 %v745
        %v1044 = vunpack.c.l.b16 %v746
        %v1045 = vunpack.c.h.b16 %v746
        %v1046 = vunpack.c.l.b16 %v747
        %v1047 = vunpack.c.h.b16 %v747
        %v1048 = vunpack.c.l.b16 %v748
        %v1049 = vunpack.c.h.b16 %v748
        %v1050 = vunpack.c.l.b16 %v749
        %v1051 = vunpack.c.h.b16 %v749
        %v1052 = vunpack.c.l.b16 %v750
        %v1053 = vunpack.c.h.b16 %v750
        %v1054 = vunpack.c.l.b16 %v751
        %v1055 = vunpack.c.h.b16 %v751
        %v1056 = vunpack.c.l.b16 %v752
        %v1057 = vunpack.c.h.b16 %v752
        %v1058 = vunpack.c.l.b16 %v753
        %v1059 = vunpack.c.h.b16 %v753
        %v1060 = vunpack.c.l.b16 %v754
        %v1061 = vunpack.c.h.b16 %v754
        %v1062 = vunpack.c.l.b16 %v755
        %v1063 = vunpack.c.h.b16 %v755
        %v1064 = vunpack.c.l.b16 %v756
        %v1065 = vunpack.c.h.b16 %v756
        %v1066 = vunpack.c.l.b16 %v757
        %v1067 = vunpack.c.h.b16 %v757
        %v1068 = vunpack.c.l.b16 %v758
        %v1069 = vunpack.c.h.b16 %v758
        %v1070 = vunpack.c.l.b16 %v759
        %v1071 = vunpack.c.h.b16 %v759
        %v1072 = vunpack.c.l.b16 %v760
        %v1073 = vunpack.c.h.b16 %v760
        %v1074 = vunpack.c.l.b16 %v761
        %v1075 = vunpack.c.h.b16 %v761
        %v1076 = vunpack.c.l.b16 %v762
        %v1077 = vunpack.c.h.b16 %v762
        %v1078 = vunpack.c.l.b16 %v763
        %v1079 = vunpack.c.h.b16 %v763
        %v1080 = vunpack.c.l.b16 %v764
        %v1081 = vunpack.c.h.b16 %v764
        %v1082 = vunpack.c.l.b16 %v765
        %v1083 = vunpack.c.h.b16 %v765
        %v1084 = vunpack.c.l.b16 %v766
        %v1085 = vunpack.c.h.b16 %v766
        %v1086 = vunpack.c.l.b16 %v767
        %v1087 = vunpack.c.h.b16 %v767
        %v1088 = vpack.c.b16 %v902, %v896
        %v1089 = vpack.c.b16 %v903, %v897
        %v1090 = vpack.c.b16 %v904, %v898
        %v1091 = vpack.c.b16 %v905, %v899
        %v1092 = vpack.c.b16 %v906, %v900
        %v1093 = vpack.c.b16 %v907, %v901
        %v1094 = vpack.c.b16 %v914, %v908
        %v1095 = vpack.c.b16 %v915, %v909
        %v1096 = vpack.c.b16 %v916, %v910
        %v1097 = vpack.c.b16 %v917, %v911
        %v1098 = vpack.c.b16 %v918, %v912
        %v1099 = vpack.c.b16 %v919, %v913
        %v1100 = vpack.c.b16 %v926, %v920
        %v1101 = vpack.c.b16 %v927, %v921
        %v1102 = vpack.c.b16 %v928, %v922
        %v1103 = vpack.c.b16 %v929, %v923
        %v1104 = vpack.c.b16 %v930, %v924
        %v1105 = vpack.c.b16 %v931, %v925
        %v1106 = vpack.c.b16 %v938, %v932
        %v1107 = vpack.c.b16 %v939, %v933
        %v1108 = vpack.c.b16 %v940, %v934
        %v1109 = vpack.c.b16 %v941, %v935
        %v1110 = vpack.c.b16 %v942, %v936
        %v1111 = vpack.c.b16 %v943, %v937
        %v1112 = vpack.c.b16 %v950, %v944
        %v1113 = vpack.c.b16 %v951, %v945
        %v1114 = vpack.c.b16 %v952, %v946
        %v1115 = vpack.c.b16 %v953, %v947
        %v1116 = vpack.c.b16 %v954, %v948
        %v1117 = vpack.c.b16 %v955, %v949
        %v1118 = vpack.c.b16 %v962, %v956
        %v1119 = vpack.c.b16 %v963, %v957
        %v1120 = vpack.c.b16 %v964, %v958
        %v1121 = vpack.c.b16 %v965, %v959
        %v1122 = vpack.c.b16 %v966, %v960
        %v1123 = vpack.c.b16 %v967, %v961
        %v1124 = vpack.c.b16 %v974, %v968
        %v1125 = vpack.c.b16 %v975, %v969
        %v1126 = vpack.c.b16 %v976, %v970
        %v1127 = vpack.c.b16 %v977, %v971
        %v1128 = vpack.c.b16 %v978, %v972
        %v1129 = vpack.c.b16 %v979, %v973
        %v1130 = vpack.c.b16 %v986, %v980
        %v1131 = vpack.c.b16 %v987, %v981
        %v1132 = vpack.c.b16 %v988, %v982
        %v1133 = vpack.c.b16 %v989, %v983
        %v1134 = vpack.c.b16 %v990, %v984
        %v1135 = vpack.c.b16 %v991, %v985
        %v1136 = vpack.c.b16 %v998, %v992
        %v1137 = vpack.c.b16 %v999, %v993
        %v1138 = vpack.c.b16 %v1000, %v994
        %v1139 = vpack.c.b16 %v1001, %v995
        %v1140 = vpack.c.b16 %v1002, %v996
        %v1141 = vpack.c.b16 %v1003, %v997
        %v1142 = vpack.c.b16 %v1010, %v1004
        %v1143 = vpack.c.b16 %v1011, %v1005
        %v1144 = vpack.c.b16 %v1012, %v1006
        %v1145 = vpack.c.b16 %v1013, %v1007
        %v1146 = vpack.c.b16 %v1014, %v1008
        %v1147 = vpack.c.b16 %v1015, %v1009
        %v1148 = vpack.c.b16 %v1022, %v1016
        %v1149 = vpack.c.b16 %v1023, %v1017
        %v1150 = vpack.c.b16 %v1024, %v1018
        %v1151 = vpack.c.b16 %v1025, %v1019
        %v1152 = vpack.c.b16 %v1026, %v1020
        %v1153 = vpack.c.b16 %v1027, %v1021
        %v1154 = vpack.c.b16 %v1034, %v1028
        %v1155 = vpack.c.b16 %v1035, %v1029
        %v1156 = vpack.c.b16 %v1036, %v1030
        %v1157 = vpack.c.b16 %v1037, %v1031
        %v1158 = vpack.c.b16 %v1038, %v1032
        %v1159 = vpack.c.b16 %v1039, %v1033
        %v1160 = vpack.c.b16 %v1046, %v1040
        %v1161 = vpack.c.b16 %v1047, %v1041
        %v1162 = vpack.c.b16 %v1048, %v1042
        %v1163 = vpack.c.b16 %v1049, %v1043
        %v1164 = vpack.c.b16 %v1050, %v1044
        %v1165 = vpack.c.b16 %v1051, %v1045
        %v1166 = vpack.c.b16 %v1058, %v1052
        %v1167 = vpack.c.b16 %v1059, %v1053
        %v1168 = vpack.c.b16 %v1060, %v1054
        %v1169 = vpack.c.b16 %v1061, %v1055
        %v1170 = vpack.c.b16 %v1062, %v1056
        %v1171 = vpack.c.b16 %v1063, %v1057
        %v1172 = vpack.c.b16 %v1070, %v1064
        %v1173 = vpack.c.b16 %v1071, %v1065
        %v1174 = vpack.c.b16 %v1072, %v1066
        %v1175 = vpack.c.b16 %v1073, %v1067
        %v1176 = vpack.c.b16 %v1074, %v1068
        %v1177 = vpack.c.b16 %v1075, %v1069
        %v1178 = vpack.c.b16 %v1082, %v1076
        %v1179 = vpack.c.b16 %v1083, %v1077
        %v1180 = vpack.c.b16 %v1084, %v1078
        %v1181 = vpack.c.b16 %v1085, %v1079
        %v1182 = vpack.c.b16 %v1086, %v1080
        %v1183 = vpack.c.b16 %v1087, %v1081
        %1280 = vmatprep.subr.bf16.mxu0 %v1089
        %1281 = vmatpush1.bf16.msra.mxu0 %v1088
        %1282 = vmatprep.subr.bf16.mxu0 %v1095
        %1283 = vmatpush1.bf16.msra.mxu0 %v1094
        %1284 = vmatprep.subr.bf16.mxu0 %v1101
        %1285 = vmatpush1.bf16.msra.mxu0 %v1100
        %1286 = vmatprep.subr.bf16.mxu0 %v1107
        %1287 = vmatpush1.bf16.msra.mxu0 %v1106
        %1288 = vmatprep.subr.bf16.mxu0 %v1113
        %1289 = vmatpush1.bf16.msra.mxu0 %v1112
        %1290 = vmatprep.subr.bf16.mxu0 %v1119
        %1291 = vmatpush1.bf16.msra.mxu0 %v1118
        %1292 = vmatprep.subr.bf16.mxu0 %v1125
        %1293 = vmatpush1.bf16.msra.mxu0 %v1124
        %1294 = vmatprep.subr.bf16.mxu0 %v1131
        %1295 = vmatpush1.bf16.msra.mxu0 %v1130
        %1296 = vmatprep.subr.bf16.mxu0 %v1137
        %1297 = vmatpush1.bf16.msra.mxu0 %v1136
        %1298 = vmatprep.subr.bf16.mxu0 %v1143
        %1299 = vmatpush1.bf16.msra.mxu0 %v1142
        %1300 = vmatprep.subr.bf16.mxu0 %v1149
        %1301 = vmatpush1.bf16.msra.mxu0 %v1148
        %1302 = vmatprep.subr.bf16.mxu0 %v1155
        %1303 = vmatpush1.bf16.msra.mxu0 %v1154
        %1304 = vmatprep.subr.bf16.mxu0 %v1161
        %1305 = vmatpush1.bf16.msra.mxu0 %v1160
        %1306 = vmatprep.subr.bf16.mxu0 %v1167
        %1307 = vmatpush1.bf16.msra.mxu0 %v1166
        %1308 = vmatprep.subr.bf16.mxu0 %v1173
        %1309 = vmatpush1.bf16.msra.mxu0 %v1172
        %1310 = vmatprep.subr.bf16.mxu0 %v1179
        %1311 = vmatpush1.bf16.msra.mxu0 %v1178
        %1312 = vmatprep.mubr.bf16.mxu0 %v657
        %1313 = vmatmul.mubr.bf16.gmra.mrb[0].mxu0 %v656
        %v1314 = vpop.f32.mrb[0].mxu0
        %v1315 = vadd.f32 %v773, %v1314
        %v1316 = vpop.f32.mrb[0].mxu0
        %v1317 = vadd.f32 %v777, %v1316
        %v1318 = vpop.f32.mrb[0].mxu0
        %v1319 = vadd.f32 %v773, %v1318
        %v1320 = vpop.f32.mrb[0].mxu0
        %v1321 = vadd.f32 %v777, %v1320
        %1322 = vmatprep.mubr.bf16.mxu0 %v659
        %1323 = vmatmul.mubr.bf16.gmra.mrb[0].mxu0 %v658
        %v1324 = vpop.f32.mrb[0].mxu0
        %v1325 = vadd.f32 %v773, %v1324
        %v1326 = vpop.f32.mrb[0].mxu0
        %v1327 = vadd.f32 %v777, %v1326
        %v1328 = vpop.f32.mrb[0].mxu0
        %v1329 = vadd.f32 %v773, %v1328
        %v1330 = vpop.f32.mrb[0].mxu0
        %v1331 = vadd.f32 %v777, %v1330
        %1332 = vmatprep.mubr.bf16.mxu0 %v661
        %1333 = vmatmul.mubr.bf16.gmra.mrb[0].mxu0 %v660
        %v1334 = vpop.f32.mrb[0].mxu0
        %v1335 = vadd.f32 %v773, %v1334
        %v1336 = vpop.f32.mrb[0].mxu0
        %v1337 = vadd.f32 %v777, %v1336
        %v1338 = vpop.f32.mrb[0].mxu0
        %v1339 = vadd.f32 %v773, %v1338
        %v1340 = vpop.f32.mrb[0].mxu0
        %v1341 = vadd.f32 %v777, %v1340
        %1342 = vmatprep.mubr.bf16.mxu0 %v663
        %1343 = vmatmul.mubr.bf16.gmra.mrb[0].mxu0 %v662
        %v1344 = vpop.f32.mrb[0].mxu0
        %v1345 = vadd.f32 %v773, %v1344
        %v1346 = vpop.f32.mrb[0].mxu0
        %v1347 = vadd.f32 %v777, %v1346
        %v1348 = vpop.f32.mrb[0].mxu0
        %v1349 = vadd.f32 %v773, %v1348
        %v1350 = vpop.f32.mrb[0].mxu0
        %v1351 = vadd.f32 %v777, %v1350
        %1352 = vmatprep.mubr.bf16.mxu0 %v665
        %1353 = vmatmul.mubr.bf16.gmra.mrb[0].mxu0 %v664
        %v1354 = vpop.f32.mrb[0].mxu0
        %v1355 = vadd.f32 %v773, %v1354
        %v1356 = vpop.f32.mrb[0].mxu0
        %v1357 = vadd.f32 %v777, %v1356
        %v1358 = vpop.f32.mrb[0].mxu0
        %v1359 = vadd.f32 %v773, %v1358
        %v1360 = vpop.f32.mrb[0].mxu0
        %v1361 = vadd.f32 %v777, %v1360
        %1362 = vmatprep.mubr.bf16.mxu0 %v667
        %1363 = vmatmul.mubr.bf16.gmra.mrb[0].mxu0 %v666
        %v1364 = vpop.f32.mrb[0].mxu0
        %v1365 = vadd.f32 %v773, %v1364
        %v1366 = vpop.f32.mrb[0].mxu0
        %v1367 = vadd.f32 %v777, %v1366
        %v1368 = vpop.f32.mrb[0].mxu0
        %v1369 = vadd.f32 %v773, %v1368
        %v1370 = vpop.f32.mrb[0].mxu0
        %v1371 = vadd.f32 %v777, %v1370
        %1372 = vmatprep.mubr.bf16.mxu0 %v669
        %1373 = vmatmul.mubr.bf16.gmra.mrb[0].mxu0 %v668
        %v1374 = vpop.f32.mrb[0].mxu0
        %v1375 = vadd.f32 %v773, %v1374
        %v1376 = vpop.f32.mrb[0].mxu0
        %v1377 = vadd.f32 %v777, %v1376
        %v1378 = vpop.f32.mrb[0].mxu0
        %v1379 = vadd.f32 %v773, %v1378
        %v1380 = vpop.f32.mrb[0].mxu0
        %v1381 = vadd.f32 %v777, %v1380
        %1382 = vmatprep.mubr.bf16.mxu0 %v671
        %1383 = vmatmul.mubr.bf16.gmra.mrb[0].mxu0 %v670
        %v1384 = vpop.f32.mrb[0].mxu0
        %v1385 = vadd.f32 %v773, %v1384
        %v1386 = vpop.f32.mrb[0].mxu0
        %v1387 = vadd.f32 %v777, %v1386
        %v1388 = vpop.f32.mrb[0].mxu0
        %v1389 = vadd.f32 %v773, %v1388
        %v1390 = vpop.f32.mrb[0].mxu0
        %v1391 = vadd.f32 %v777, %v1390
        %1392 = vdwg.mxu0
        %1393 = vmatprep.subr.bf16.mxu0 %v1091
        %1394 = vmatpush1.bf16.msra.mxu0 %v1090
        %1395 = vmatprep.subr.bf16.mxu0 %v1097
        %1396 = vmatpush1.bf16.msra.mxu0 %v1096
        %1397 = vmatprep.subr.bf16.mxu0 %v1103
        %1398 = vmatpush1.bf16.msra.mxu0 %v1102
        %1399 = vmatprep.subr.bf16.mxu0 %v1109
        %1400 = vmatpush1.bf16.msra.mxu0 %v1108
        %1401 = vmatprep.subr.bf16.mxu0 %v1115
        %1402 = vmatpush1.bf16.msra.mxu0 %v1114
        %1403 = vmatprep.subr.bf16.mxu0 %v1121
        %1404 = vmatpush1.bf16.msra.mxu0 %v1120
        %1405 = vmatprep.subr.bf16.mxu0 %v1127
        %1406 = vmatpush1.bf16.msra.mxu0 %v1126
        %1407 = vmatprep.subr.bf16.mxu0 %v1133
        %1408 = vmatpush1.bf16.msra.mxu0 %v1132
        %1409 = vmatprep.subr.bf16.mxu0 %v1139
        %1410 = vmatpush1.bf16.msra.mxu0 %v1138
        %1411 = vmatprep.subr.bf16.mxu0 %v1145
        %1412 = vmatpush1.bf16.msra.mxu0 %v1144
        %1413 = vmatprep.subr.bf16.mxu0 %v1151
        %1414 = vmatpush1.bf16.msra.mxu0 %v1150
        %1415 = vmatprep.subr.bf16.mxu0 %v1157
        %1416 = vmatpush1.bf16.msra.mxu0 %v1156
        %1417 = vmatprep.subr.bf16.mxu0 %v1163
        %1418 = vmatpush1.bf16.msra.mxu0 %v1162
        %1419 = vmatprep.subr.bf16.mxu0 %v1169
        %1420 = vmatpush1.bf16.msra.mxu0 %v1168
        %1421 = vmatprep.subr.bf16.mxu0 %v1175
        %1422 = vmatpush1.bf16.msra.mxu0 %v1174
        %1423 = vmatprep.subr.bf16.mxu0 %v1181
        %1424 = vmatpush1.bf16.msra.mxu0 %v1180
        %1425 = vmatprep.mubr.bf16.mxu0 %v657
        %1426 = vmatmul.mubr.bf16.gmra.mrb[0].mxu0 %v656
        %v1427 = vpop.f32.mrb[0].mxu0
        %v1428 = vadd.f32 %v781, %v1427
        %v1429 = vpop.f32.mrb[0].mxu0
        %v1430 = vadd.f32 %v785, %v1429
        %v1431 = vpop.f32.mrb[0].mxu0
        %v1432 = vadd.f32 %v781, %v1431
        %v1433 = vpop.f32.mrb[0].mxu0
        %v1434 = vadd.f32 %v785, %v1433
        %1435 = vmatprep.mubr.bf16.mxu0 %v659
        %1436 = vmatmul.mubr.bf16.gmra.mrb[0].mxu0 %v658
        %v1437 = vpop.f32.mrb[0].mxu0
        %v1438 = vadd.f32 %v781, %v1437
        %v1439 = vpop.f32.mrb[0].mxu0
        %v1440 = vadd.f32 %v785, %v1439
        %v1441 = vpop.f32.mrb[0].mxu0
        %v1442 = vadd.f32 %v781, %v1441
        %v1443 = vpop.f32.mrb[0].mxu0
        %v1444 = vadd.f32 %v785, %v1443
        %1445 = vmatprep.mubr.bf16.mxu0 %v661
        %1446 = vmatmul.mubr.bf16.gmra.mrb[0].mxu0 %v660
        %v1447 = vpop.f32.mrb[0].mxu0
        %v1448 = vadd.f32 %v781, %v1447
        %v1449 = vpop.f32.mrb[0].mxu0
        %v1450 = vadd.f32 %v785, %v1449
        %v1451 = vpop.f32.mrb[0].mxu0
        %v1452 = vadd.f32 %v781, %v1451
        %v1453 = vpop.f32.mrb[0].mxu0
        %v1454 = vadd.f32 %v785, %v1453
        %1455 = vmatprep.mubr.bf16.mxu0 %v663
        %1456 = vmatmul.mubr.bf16.gmra.mrb[0].mxu0 %v662
        %v1457 = vpop.f32.mrb[0].mxu0
        %v1458 = vadd.f32 %v781, %v1457
        %v1459 = vpop.f32.mrb[0].mxu0
        %v1460 = vadd.f32 %v785, %v1459
        %v1461 = vpop.f32.mrb[0].mxu0
        %v1462 = vadd.f32 %v781, %v1461
        %v1463 = vpop.f32.mrb[0].mxu0
        %v1464 = vadd.f32 %v785, %v1463
        %1465 = vmatprep.mubr.bf16.mxu0 %v665
        %1466 = vmatmul.mubr.bf16.gmra.mrb[0].mxu0 %v664
        %v1467 = vpop.f32.mrb[0].mxu0
        %v1468 = vadd.f32 %v781, %v1467
        %v1469 = vpop.f32.mrb[0].mxu0
        %v1470 = vadd.f32 %v785, %v1469
        %v1471 = vpop.f32.mrb[0].mxu0
        %v1472 = vadd.f32 %v781, %v1471
        %v1473 = vpop.f32.mrb[0].mxu0
        %v1474 = vadd.f32 %v785, %v1473
        %1475 = vmatprep.mubr.bf16.mxu0 %v667
        %1476 = vmatmul.mubr.bf16.gmra.mrb[0].mxu0 %v666
        %v1477 = vpop.f32.mrb[0].mxu0
        %v1478 = vadd.f32 %v781, %v1477
        %v1479 = vpop.f32.mrb[0].mxu0
        %v1480 = vadd.f32 %v785, %v1479
        %v1481 = vpop.f32.mrb[0].mxu0
        %v1482 = vadd.f32 %v781, %v1481
        %v1483 = vpop.f32.mrb[0].mxu0
        %v1484 = vadd.f32 %v785, %v1483
        %1485 = vmatprep.mubr.bf16.mxu0 %v669
        %1486 = vmatmul.mubr.bf16.gmra.mrb[0].mxu0 %v668
        %v1487 = vpop.f32.mrb[0].mxu0
        %v1488 = vadd.f32 %v781, %v1487
        %v1489 = vpop.f32.mrb[0].mxu0
        %v1490 = vadd.f32 %v785, %v1489
        %v1491 = vpop.f32.mrb[0].mxu0
        %v1492 = vadd.f32 %v781, %v1491
        %v1493 = vpop.f32.mrb[0].mxu0
        %v1494 = vadd.f32 %v785, %v1493
        %1495 = vmatprep.mubr.bf16.mxu0 %v671
        %1496 = vmatmul.mubr.bf16.gmra.mrb[0].mxu0 %v670
        %v1497 = vpop.f32.mrb[0].mxu0
        %v1498 = vadd.f32 %v781, %v1497
        %v1499 = vpop.f32.mrb[0].mxu0
        %v1500 = vadd.f32 %v785, %v1499
        %v1501 = vpop.f32.mrb[0].mxu0
        %v1502 = vadd.f32 %v781, %v1501
        %v1503 = vpop.f32.mrb[0].mxu0
        %v1504 = vadd.f32 %v785, %v1503
        %1505 = vdwg.mxu0
        %1506 = vmatprep.subr.bf16.mxu0 %v1093
        %1507 = vmatpush1.bf16.msra.mxu0 %v1092
        %1508 = vmatprep.subr.bf16.mxu0 %v1099
        %1509 = vmatpush1.bf16.msra.mxu0 %v1098
        %1510 = vmatprep.subr.bf16.mxu0 %v1105
        %1511 = vmatpush1.bf16.msra.mxu0 %v1104
        %1512 = vmatprep.subr.bf16.mxu0 %v1111
        %1513 = vmatpush1.bf16.msra.mxu0 %v1110
        %1514 = vmatprep.subr.bf16.mxu0 %v1117
        %1515 = vmatpush1.bf16.msra.mxu0 %v1116
        %1516 = vmatprep.subr.bf16.mxu0 %v1123
        %1517 = vmatpush1.bf16.msra.mxu0 %v1122
        %1518 = vmatprep.subr.bf16.mxu0 %v1129
        %1519 = vmatpush1.bf16.msra.mxu0 %v1128
        %1520 = vmatprep.subr.bf16.mxu0 %v1135
        %1521 = vmatpush1.bf16.msra.mxu0 %v1134
        %1522 = vmatprep.subr.bf16.mxu0 %v1141
        %1523 = vmatpush1.bf16.msra.mxu0 %v1140
        %1524 = vmatprep.subr.bf16.mxu0 %v1147
        %1525 = vmatpush1.bf16.msra.mxu0 %v1146
        %1526 = vmatprep.subr.bf16.mxu0 %v1153
        %1527 = vmatpush1.bf16.msra.mxu0 %v1152
        %1528 = vmatprep.subr.bf16.mxu0 %v1159
        %1529 = vmatpush1.bf16.msra.mxu0 %v1158
        %1530 = vmatprep.subr.bf16.mxu0 %v1165
        %1531 = vmatpush1.bf16.msra.mxu0 %v1164
        %1532 = vmatprep.subr.bf16.mxu0 %v1171
        %1533 = vmatpush1.bf16.msra.mxu0 %v1170
        %1534 = vmatprep.subr.bf16.mxu0 %v1177
        %1535 = vmatpush1.bf16.msra.mxu0 %v1176
        %1536 = vmatprep.subr.bf16.mxu0 %v1183
        %1537 = vmatpush1.bf16.msra.mxu0 %v1182
        %1538 = vmatprep.mubr.bf16.mxu0 %v657
        %1539 = vmatmul.mubr.bf16.gmra.mrb[0].mxu0 %v656
        %v1540 = vpop.f32.mrb[0].mxu0
        %v1541 = vadd.f32 %v789, %v1540
        %v1542 = vpop.f32.mrb[0].mxu0
        %v1543 = vadd.f32 %v793, %v1542
        %v1544 = vpop.f32.mrb[0].mxu0
        %v1545 = vadd.f32 %v789, %v1544
        %v1546 = vpop.f32.mrb[0].mxu0
        %v1547 = vadd.f32 %v793, %v1546
        %1548 = vmatprep.mubr.bf16.mxu0 %v659
        %1549 = vmatmul.mubr.bf16.gmra.mrb[0].mxu0 %v658
        %v1550 = vpop.f32.mrb[0].mxu0
        %v1551 = vadd.f32 %v789, %v1550
        %v1552 = vpop.f32.mrb[0].mxu0
        %v1553 = vadd.f32 %v793, %v1552
        %v1554 = vpop.f32.mrb[0].mxu0
        %v1555 = vadd.f32 %v789, %v1554
        %v1556 = vpop.f32.mrb[0].mxu0
        %v1557 = vadd.f32 %v793, %v1556
        %1558 = vmatprep.mubr.bf16.mxu0 %v661
        %1559 = vmatmul.mubr.bf16.gmra.mrb[0].mxu0 %v660
        %v1560 = vpop.f32.mrb[0].mxu0
        %v1561 = vadd.f32 %v789, %v1560
        %v1562 = vpop.f32.mrb[0].mxu0
        %v1563 = vadd.f32 %v793, %v1562
        %v1564 = vpop.f32.mrb[0].mxu0
        %v1565 = vadd.f32 %v789, %v1564
        %v1566 = vpop.f32.mrb[0].mxu0
        %v1567 = vadd.f32 %v793, %v1566
        %1568 = vmatprep.mubr.bf16.mxu0 %v663
        %1569 = vmatmul.mubr.bf16.gmra.mrb[0].mxu0 %v662
        %v1570 = vpop.f32.mrb[0].mxu0
        %v1571 = vadd.f32 %v789, %v1570
        %v1572 = vpop.f32.mrb[0].mxu0
        %v1573 = vadd.f32 %v793, %v1572
        %v1574 = vpop.f32.mrb[0].mxu0
        %v1575 = vadd.f32 %v789, %v1574
        %v1576 = vpop.f32.mrb[0].mxu0
        %v1577 = vadd.f32 %v793, %v1576
        %1578 = vmatprep.mubr.bf16.mxu0 %v665
        %1579 = vmatmul.mubr.bf16.gmra.mrb[0].mxu0 %v664
        %v1580 = vpop.f32.mrb[0].mxu0
        %v1581 = vadd.f32 %v789, %v1580
        %v1582 = vpop.f32.mrb[0].mxu0
        %v1583 = vadd.f32 %v793, %v1582
        %v1584 = vpop.f32.mrb[0].mxu0
        %v1585 = vadd.f32 %v789, %v1584
        %v1586 = vpop.f32.mrb[0].mxu0
        %v1587 = vadd.f32 %v793, %v1586
        %1588 = vmatprep.mubr.bf16.mxu0 %v667
        %1589 = vmatmul.mubr.bf16.gmra.mrb[0].mxu0 %v666
        %v1590 = vpop.f32.mrb[0].mxu0
        %v1591 = vadd.f32 %v789, %v1590
        %v1592 = vpop.f32.mrb[0].mxu0
        %v1593 = vadd.f32 %v793, %v1592
        %v1594 = vpop.f32.mrb[0].mxu0
        %v1595 = vadd.f32 %v789, %v1594
        %v1596 = vpop.f32.mrb[0].mxu0
        %v1597 = vadd.f32 %v793, %v1596
        %1598 = vmatprep.mubr.bf16.mxu0 %v669
        %1599 = vmatmul.mubr.bf16.gmra.mrb[0].mxu0 %v668
        %v1600 = vpop.f32.mrb[0].mxu0
        %v1601 = vadd.f32 %v789, %v1600
        %v1602 = vpop.f32.mrb[0].mxu0
        %v1603 = vadd.f32 %v793, %v1602
        %v1604 = vpop.f32.mrb[0].mxu0
        %v1605 = vadd.f32 %v789, %v1604
        %v1606 = vpop.f32.mrb[0].mxu0
        %v1607 = vadd.f32 %v793, %v1606
        %1608 = vmatprep.mubr.bf16.mxu0 %v671
        %1609 = vmatmul.mubr.bf16.gmra.mrb[0].mxu0 %v670
        %v1610 = vpop.f32.mrb[0].mxu0
        %v1611 = vadd.f32 %v789, %v1610
        %v1612 = vpop.f32.mrb[0].mxu0
        %v1613 = vadd.f32 %v793, %v1612
        %v1614 = vpop.f32.mrb[0].mxu0
        %v1615 = vadd.f32 %v789, %v1614
        %v1616 = vpop.f32.mrb[0].mxu0
        %v1617 = vadd.f32 %v793, %v1616
        %1618 = vdwg.mxu0
        %v1619 = vmul.f32 %v1315, 0.088388346
        %v1620 = vmul.f32 %v1317, 0.088388346
        %v1621 = vmul.f32 %v1319, 0.088388346
        %v1622 = vmul.f32 %v1321, 0.088388346
        %v1623 = vmul.f32 %v1325, 0.088388346
        %v1624 = vmul.f32 %v1327, 0.088388346
        %v1625 = vmul.f32 %v1329, 0.088388346
        %v1626 = vmul.f32 %v1331, 0.088388346
        %v1627 = vmul.f32 %v1335, 0.088388346
        %v1628 = vmul.f32 %v1337, 0.088388346
        %v1629 = vmul.f32 %v1339, 0.088388346
        %v1630 = vmul.f32 %v1341, 0.088388346
        %v1631 = vmul.f32 %v1345, 0.088388346
        %v1632 = vmul.f32 %v1347, 0.088388346
        %v1633 = vmul.f32 %v1349, 0.088388346
        %v1634 = vmul.f32 %v1351, 0.088388346
        %v1635 = vmul.f32 %v1355, 0.088388346
        %v1636 = vmul.f32 %v1357, 0.088388346
        %v1637 = vmul.f32 %v1359, 0.088388346
        %v1638 = vmul.f32 %v1361, 0.088388346
        %v1639 = vmul.f32 %v1365, 0.088388346
        %v1640 = vmul.f32 %v1367, 0.088388346
        %v1641 = vmul.f32 %v1369, 0.088388346
        %v1642 = vmul.f32 %v1371, 0.088388346
        %v1643 = vmul.f32 %v1375, 0.088388346
        %v1644 = vmul.f32 %v1377, 0.088388346
        %v1645 = vmul.f32 %v1379, 0.088388346
        %v1646 = vmul.f32 %v1381, 0.088388346
        %v1647 = vmul.f32 %v1385, 0.088388346
        %v1648 = vmul.f32 %v1387, 0.088388346
        %v1649 = vmul.f32 %v1389, 0.088388346
        %v1650 = vmul.f32 %v1391, 0.088388346
        %v1651 = vpack.c.bf16 %v1621, %v1619
        %v1652 = vpack.c.bf16 %v1622, %v1620
        %v1653 = vpack.c.bf16 %v1625, %v1623
        %v1654 = vpack.c.bf16 %v1626, %v1624
        %v1655 = vpack.c.bf16 %v1629, %v1627
        %v1656 = vpack.c.bf16 %v1630, %v1628
        %v1657 = vpack.c.bf16 %v1633, %v1631
        %v1658 = vpack.c.bf16 %v1634, %v1632
        %v1659 = vpack.c.bf16 %v1637, %v1635
        %v1660 = vpack.c.bf16 %v1638, %v1636
        %v1661 = vpack.c.bf16 %v1641, %v1639
        %v1662 = vpack.c.bf16 %v1642, %v1640
        %v1663 = vpack.c.bf16 %v1645, %v1643
        %v1664 = vpack.c.bf16 %v1646, %v1644
        %v1665 = vpack.c.bf16 %v1649, %v1647
        %v1666 = vpack.c.bf16 %v1650, %v1648
        %v1683 = vunpack.c.l.b16 %v1651
        %v1684 = vunpack.c.l.b16 %v1652
        %v1685 = vunpack.c.h.b16 %v1651
        %v1686 = vunpack.c.h.b16 %v1652
        %v1687 = vunpack.c.l.b16 %v1653
        %v1688 = vunpack.c.l.b16 %v1654
        %v1689 = vunpack.c.h.b16 %v1653
        %v1690 = vunpack.c.h.b16 %v1654
        %v1691 = vunpack.c.l.b16 %v1655
        %v1692 = vunpack.c.l.b16 %v1656
        %v1693 = vunpack.c.h.b16 %v1655
        %v1694 = vunpack.c.h.b16 %v1656
        %v1695 = vunpack.c.l.b16 %v1657
        %v1696 = vunpack.c.l.b16 %v1658
        %v1697 = vunpack.c.h.b16 %v1657
        %v1698 = vunpack.c.h.b16 %v1658
        %v1699 = vunpack.c.l.b16 %v1659
        %v1700 = vunpack.c.l.b16 %v1660
        %v1701 = vunpack.c.h.b16 %v1659
        %v1702 = vunpack.c.h.b16 %v1660
        %v1703 = vunpack.c.l.b16 %v1661
        %v1704 = vunpack.c.l.b16 %v1662
        %v1705 = vunpack.c.h.b16 %v1661
        %v1706 = vunpack.c.h.b16 %v1662
        %v1707 = vunpack.c.l.b16 %v1663
        %v1708 = vunpack.c.l.b16 %v1664
        %v1709 = vunpack.c.h.b16 %v1663
        %v1710 = vunpack.c.h.b16 %v1664
        %v1711 = vunpack.c.l.b16 %v1665
        %v1712 = vunpack.c.l.b16 %v1666
        %v1713 = vunpack.c.h.b16 %v1665
        %v1714 = vunpack.c.h.b16 %v1666
        %v1715 = vpack.c.b16 %v1684, %v1683
        %v1716 = vpack.c.b16 %v1686, %v1685
        %v1717 = vpack.c.b16 %v1688, %v1687
        %v1718 = vpack.c.b16 %v1690, %v1689
        %v1719 = vpack.c.b16 %v1692, %v1691
        %v1720 = vpack.c.b16 %v1694, %v1693
        %v1721 = vpack.c.b16 %v1696, %v1695
        %v1722 = vpack.c.b16 %v1698, %v1697
        %v1723 = vpack.c.b16 %v1700, %v1699
        %v1724 = vpack.c.b16 %v1702, %v1701
        %v1725 = vpack.c.b16 %v1704, %v1703
        %v1726 = vpack.c.b16 %v1706, %v1705
        %v1727 = vpack.c.b16 %v1708, %v1707
        %v1728 = vpack.c.b16 %v1710, %v1709
        %v1729 = vpack.c.b16 %v1712, %v1711
        %v1730 = vpack.c.b16 %v1714, %v1713
        %1747 = vst [vmem:[%s276] sm:$0xff] %v1715
        %1748 = vst [vmem:[%s276 + $0x18] sm:$0xff] %v1716
        %1749 = vst [vmem:[%s276 + $0x30] sm:$0xff] %v1717
        %1750 = vst [vmem:[%s276 + $0x48] sm:$0xff] %v1718
        %1751 = vst [vmem:[%s276 + $0x60] sm:$0xff] %v1719
        %1752 = vst [vmem:[%s276 + $0x78] sm:$0xff] %v1720
        %1753 = vst [vmem:[%s276 + $0x90] sm:$0xff] %v1721
        %1754 = vst [vmem:[%s276 + $0xa8] sm:$0xff] %v1722
        %1755 = vst [vmem:[%s276 + $0xc0] sm:$0xff] %v1723
        %1756 = vst [vmem:[%s276 + $0xd8] sm:$0xff] %v1724
        %1757 = vst [vmem:[%s276 + $0xf0] sm:$0xff] %v1725
        %1758 = vst [vmem:[%s276 + $0x108] sm:$0xff] %v1726
        %1759 = vst [vmem:[%s276 + $0x120] sm:$0xff] %v1727
        %1760 = vst [vmem:[%s276 + $0x138] sm:$0xff] %v1728
        %1761 = vst [vmem:[%s276 + $0x150] sm:$0xff] %v1729
        %1762 = vst [vmem:[%s276 + $0x168] sm:$0xff] %v1730
        %v1763 = vpack.c.bf16 %v1432, %v1428
        %v1764 = vpack.c.bf16 %v1434, %v1430
        %v1765 = vpack.c.bf16 %v1545, %v1541
        %v1766 = vpack.c.bf16 %v1547, %v1543
        %v1767 = vpack.c.bf16 %v1442, %v1438
        %v1768 = vpack.c.bf16 %v1444, %v1440
        %v1769 = vpack.c.bf16 %v1555, %v1551
        %v1770 = vpack.c.bf16 %v1557, %v1553
        %v1771 = vpack.c.bf16 %v1452, %v1448
        %v1772 = vpack.c.bf16 %v1454, %v1450
        %v1773 = vpack.c.bf16 %v1565, %v1561
        %v1774 = vpack.c.bf16 %v1567, %v1563
        %v1775 = vpack.c.bf16 %v1462, %v1458
        %v1776 = vpack.c.bf16 %v1464, %v1460
        %v1777 = vpack.c.bf16 %v1575, %v1571
        %v1778 = vpack.c.bf16 %v1577, %v1573
        %v1779 = vpack.c.bf16 %v1472, %v1468
        %v1780 = vpack.c.bf16 %v1474, %v1470
        %v1781 = vpack.c.bf16 %v1585, %v1581
        %v1782 = vpack.c.bf16 %v1587, %v1583
        %v1783 = vpack.c.bf16 %v1482, %v1478
        %v1784 = vpack.c.bf16 %v1484, %v1480
        %v1785 = vpack.c.bf16 %v1595, %v1591
        %v1786 = vpack.c.bf16 %v1597, %v1593
        %v1787 = vpack.c.bf16 %v1492, %v1488
        %v1788 = vpack.c.bf16 %v1494, %v1490
        %v1789 = vpack.c.bf16 %v1605, %v1601
        %v1790 = vpack.c.bf16 %v1607, %v1603
        %v1791 = vpack.c.bf16 %v1502, %v1498
        %v1792 = vpack.c.bf16 %v1504, %v1500
        %v1793 = vpack.c.bf16 %v1615, %v1611
        %v1794 = vpack.c.bf16 %v1617, %v1613
        %v1827 = vunpack.c.l.b16 %v1763
        %v1828 = vunpack.c.l.b16 %v1764
        %v1829 = vunpack.c.l.b16 %v1765
        %v1830 = vunpack.c.l.b16 %v1766
        %v1831 = vunpack.c.h.b16 %v1763
        %v1832 = vunpack.c.h.b16 %v1764
        %v1833 = vunpack.c.h.b16 %v1765
        %v1834 = vunpack.c.h.b16 %v1766
        %v1835 = vunpack.c.l.b16 %v1767
        %v1836 = vunpack.c.l.b16 %v1768
        %v1837 = vunpack.c.l.b16 %v1769
        %v1838 = vunpack.c.l.b16 %v1770
        %v1839 = vunpack.c.h.b16 %v1767
        %v1840 = vunpack.c.h.b16 %v1768
        %v1841 = vunpack.c.h.b16 %v1769
        %v1842 = vunpack.c.h.b16 %v1770
        %v1843 = vunpack.c.l.b16 %v1771
        %v1844 = vunpack.c.l.b16 %v1772
        %v1845 = vunpack.c.l.b16 %v1773
        %v1846 = vunpack.c.l.b16 %v1774
        %v1847 = vunpack.c.h.b16 %v1771
        %v1848 = vunpack.c.h.b16 %v1772
        %v1849 = vunpack.c.h.b16 %v1773
        %v1850 = vunpack.c.h.b16 %v1774
        %v1851 = vunpack.c.l.b16 %v1775
        %v1852 = vunpack.c.l.b16 %v1776
        %v1853 = vunpack.c.l.b16 %v1777
        %v1854 = vunpack.c.l.b16 %v1778
        %v1855 = vunpack.c.h.b16 %v1775
        %v1856 = vunpack.c.h.b16 %v1776
        %v1857 = vunpack.c.h.b16 %v1777
        %v1858 = vunpack.c.h.b16 %v1778
        %v1859 = vunpack.c.l.b16 %v1779
        %v1860 = vunpack.c.l.b16 %v1780
        %v1861 = vunpack.c.l.b16 %v1781
        %v1862 = vunpack.c.l.b16 %v1782
        %v1863 = vunpack.c.h.b16 %v1779
        %v1864 = vunpack.c.h.b16 %v1780
        %v1865 = vunpack.c.h.b16 %v1781
        %v1866 = vunpack.c.h.b16 %v1782
        %v1867 = vunpack.c.l.b16 %v1783
        %v1868 = vunpack.c.l.b16 %v1784
        %v1869 = vunpack.c.l.b16 %v1785
        %v1870 = vunpack.c.l.b16 %v1786
        %v1871 = vunpack.c.h.b16 %v1783
        %v1872 = vunpack.c.h.b16 %v1784
        %v1873 = vunpack.c.h.b16 %v1785
        %v1874 = vunpack.c.h.b16 %v1786
        %v1875 = vunpack.c.l.b16 %v1787
        %v1876 = vunpack.c.l.b16 %v1788
        %v1877 = vunpack.c.l.b16 %v1789
        %v1878 = vunpack.c.l.b16 %v1790
        %v1879 = vunpack.c.h.b16 %v1787
        %v1880 = vunpack.c.h.b16 %v1788
        %v1881 = vunpack.c.h.b16 %v1789
        %v1882 = vunpack.c.h.b16 %v1790
        %v1883 = vunpack.c.l.b16 %v1791
        %v1884 = vunpack.c.l.b16 %v1792
        %v1885 = vunpack.c.l.b16 %v1793
        %v1886 = vunpack.c.l.b16 %v1794
        %v1887 = vunpack.c.h.b16 %v1791
        %v1888 = vunpack.c.h.b16 %v1792
        %v1889 = vunpack.c.h.b16 %v1793
        %v1890 = vunpack.c.h.b16 %v1794
        %v1891 = vpack.c.b16 %v1828, %v1827
        %v1892 = vpack.c.b16 %v1830, %v1829
        %v1893 = vpack.c.b16 %v1832, %v1831
        %v1894 = vpack.c.b16 %v1834, %v1833
        %v1895 = vpack.c.b16 %v1836, %v1835
        %v1896 = vpack.c.b16 %v1838, %v1837
        %v1897 = vpack.c.b16 %v1840, %v1839
        %v1898 = vpack.c.b16 %v1842, %v1841
        %v1899 = vpack.c.b16 %v1844, %v1843
        %v1900 = vpack.c.b16 %v1846, %v1845
        %v1901 = vpack.c.b16 %v1848, %v1847
        %v1902 = vpack.c.b16 %v1850, %v1849
        %v1903 = vpack.c.b16 %v1852, %v1851
        %v1904 = vpack.c.b16 %v1854, %v1853
        %v1905 = vpack.c.b16 %v1856, %v1855
        %v1906 = vpack.c.b16 %v1858, %v1857
        %v1907 = vpack.c.b16 %v1860, %v1859
        %v1908 = vpack.c.b16 %v1862, %v1861
        %v1909 = vpack.c.b16 %v1864, %v1863
        %v1910 = vpack.c.b16 %v1866, %v1865
        %v1911 = vpack.c.b16 %v1868, %v1867
        %v1912 = vpack.c.b16 %v1870, %v1869
        %v1913 = vpack.c.b16 %v1872, %v1871
        %v1914 = vpack.c.b16 %v1874, %v1873
        %v1915 = vpack.c.b16 %v1876, %v1875
        %v1916 = vpack.c.b16 %v1878, %v1877
        %v1917 = vpack.c.b16 %v1880, %v1879
        %v1918 = vpack.c.b16 %v1882, %v1881
        %v1919 = vpack.c.b16 %v1884, %v1883
        %v1920 = vpack.c.b16 %v1886, %v1885
        %v1921 = vpack.c.b16 %v1888, %v1887
        %v1922 = vpack.c.b16 %v1890, %v1889
        %1955 = vst [vmem:[%s276 + $0x8] sm:$0xff] %v1891
        %1956 = vst [vmem:[%s276 + $0x10] sm:$0xff] %v1892
        %1957 = vst [vmem:[%s276 + $0x20] sm:$0xff] %v1893
        %1958 = vst [vmem:[%s276 + $0x28] sm:$0xff] %v1894
        %1959 = vst [vmem:[%s276 + $0x38] sm:$0xff] %v1895
        %1960 = vst [vmem:[%s276 + $0x40] sm:$0xff] %v1896
        %1961 = vst [vmem:[%s276 + $0x50] sm:$0xff] %v1897
        %1962 = vst [vmem:[%s276 + $0x58] sm:$0xff] %v1898
        %1963 = vst [vmem:[%s276 + $0x68] sm:$0xff] %v1899
        %1964 = vst [vmem:[%s276 + $0x70] sm:$0xff] %v1900
        %1965 = vst [vmem:[%s276 + $0x80] sm:$0xff] %v1901
        %1966 = vst [vmem:[%s276 + $0x88] sm:$0xff] %v1902
        %1967 = vst [vmem:[%s276 + $0x98] sm:$0xff] %v1903
        %1968 = vst [vmem:[%s276 + $0xa0] sm:$0xff] %v1904
        %1969 = vst [vmem:[%s276 + $0xb0] sm:$0xff] %v1905
        %1970 = vst [vmem:[%s276 + $0xb8] sm:$0xff] %v1906
        %1971 = vst [vmem:[%s276 + $0xc8] sm:$0xff] %v1907
        %1972 = vst [vmem:[%s276 + $0xd0] sm:$0xff] %v1908
        %1973 = vst [vmem:[%s276 + $0xe0] sm:$0xff] %v1909
        %1974 = vst [vmem:[%s276 + $0xe8] sm:$0xff] %v1910
        %1975 = vst [vmem:[%s276 + $0xf8] sm:$0xff] %v1911
        %1976 = vst [vmem:[%s276 + $0x100] sm:$0xff] %v1912
        %1977 = vst [vmem:[%s276 + $0x110] sm:$0xff] %v1913
        %1978 = vst [vmem:[%s276 + $0x118] sm:$0xff] %v1914
        %1979 = vst [vmem:[%s276 + $0x128] sm:$0xff] %v1915
        %1980 = vst [vmem:[%s276 + $0x130] sm:$0xff] %v1916
        %1981 = vst [vmem:[%s276 + $0x140] sm:$0xff] %v1917
        %1982 = vst [vmem:[%s276 + $0x148] sm:$0xff] %v1918
        %1983 = vst [vmem:[%s276 + $0x158] sm:$0xff] %v1919
        %1984 = vst [vmem:[%s276 + $0x160] sm:$0xff] %v1920
        %1985 = vst [vmem:[%s276 + $0x170] sm:$0xff] %v1921
        %1986 = vst [vmem:[%s276 + $0x178] sm:$0xff] %v1922
        %s1987 = sand.u32 %s157, 1
        %s1988 = scalar_lea.sflag [#allocation4], %s1987
        %s1989 = sand.u32 %s157, 1
        %s1990 = smul.addr %s1989, 384
        %s1991 = scalar_lea.vmem [#allocation7], %s1990
        // Predicated region
        $region49: #{tpu_custom_call.1} parent=39 // pred_check
          %p1992 = pneg %p167
        $region50: #{tpu_custom_call.1} parent=39 // pred_check_branch
          %1994 = sbr.rel (%p1992) target = $region52
        $region51: #{tpu_custom_call.1} parent=39 // pred_region
          %s1995 = smul.u32 16, %s28
          %s1997 = ssub.s32 6144, 6144
          %1998 = vsyncadd %s1988, %s1997
          %s1999 = smul.addr %s1995, 6
          %s2000 = smul.addr %s27, 192
          %s2001 = sadd.s32 %s1999, %s2000
          %s2002 = smul.addr %s2001, 64
          %s2003 = scalar_lea.hbm %s5, %s2002
          %s2004 = sshll.u32 %s1991, 4
          %s2005 = int_to_ptr.vmem [resolvable:$true] %s2004
          %2010 = dma.vmem_to_hbm [thread:$0]  %s2005, 6144, %s2003, %s1988, 384, 384, 24
        $region52: #{tpu_custom_call.1} parent=39 // pred_fallthru
          _
      $region40: #{tpu_custom_call.1} parent=5 // pred_fallthru
        _
      %p2011 = scmp.le.s32.totalorder 2, %s18
      // Predicated region
      $region53: #{tpu_custom_call.1} parent=5 // pred_check
        %p2012 = pneg %p2011
      $region54: #{tpu_custom_call.1} parent=5 // pred_check_branch
        %2014 = sbr.rel (%p2012) target = $region56
      $region55: #{tpu_custom_call.1} parent=5 // pred_region
        %s2015 = ssub.s32 %s18, 2
        // Predicated region
        $region57: #{tpu_custom_call.1} parent=55 // pred_check
          %p2016 = pneg %p173
        $region58: #{tpu_custom_call.1} parent=55 // pred_check_branch
          %2018 = sbr.rel (%p2016) target = $region60
        $region59: #{tpu_custom_call.1} parent=55 // pred_region
          %s2019 = sand.u32 %s158, 1
          %s2020 = scalar_lea.sflag [#allocation4], %s2019
          %s2021 = sand.u32 %s158, 1
          %s2022 = smul.addr %s2021, 384
          %s2023 = scalar_lea.vmem [#allocation7], %s2022
          %2024 = dma.done %s2020, 6144
        $region60: #{tpu_custom_call.1} parent=55 // pred_fallthru
          _
      $region56: #{tpu_custom_call.1} parent=5 // pred_fallthru
        _
    $region6: #{tpu_custom_call.1} parent=1 // loop_footer
      %s22 = sadd.s32 1, %s18
    $region7: #{tpu_custom_call.1} parent=1 // loop_footer_branch
      %17 = sbr.rel target = $region3
    $region8: #{tpu_custom_call.1} parent=1 // loop_exit
      _
    %2025 = vsyncpa [#allocation3], 1
    %s2026 = scalar_lea.sflag [#allocation3], 1
    %2027 = vsyncpa %s2026, 1
    %2028 = vsyncpa [#allocation6], 1
    %2029 = vsyncpa [#allocation4], 1
    %s2030 = scalar_lea.sflag [#allocation4], 1
    %2031 = vsyncpa %s2030, 1

</llo_original>
